<compile_context>
chip_gen: v7x
topology: tpu7x:2x2x1
jax: 0.10.0
libtpu: 0.0.40
codegen_flags: <defaults>
</compile_context>

<pallas_src>
import jax
import jax.numpy as jnp
from jax.experimental import pallas as pl
from jax.experimental.pallas import tpu as pltpu

MXU_DTYPE = jnp.bfloat16     # matmul operand dtype (accumulation stays f32)
ACT_DTYPE = jnp.bfloat16     # inter-layer activation storage dtype
BN_EPS = 1e-5
TM_TARGET = 512              # rows per grid step (VMEM-bounded on v5e/v6e/v7x)


# ----------------------------- Pallas kernels -----------------------------

def _matmul_bias_stats_kernel(a_ref, b_ref, bias_ref, y_ref, s_ref):
    """y = A @ B + bias (f32 accum); also emit per-column sum / sum-of-squares."""
    y = jnp.dot(a_ref[...], b_ref[...], preferred_element_type=jnp.float32)
    y = y + bias_ref[...]
    y_ref[...] = y
    s_ref[...] = jnp.concatenate(
        [jnp.sum(y, axis=0, keepdims=True),
         jnp.sum(y * y, axis=0, keepdims=True)], axis=0)


def _matmul_bias_tanh_kernel(a_ref, b_ref, bias_ref, o_ref):
    y = jnp.dot(a_ref[...], b_ref[...], preferred_element_type=jnp.float32)
    o_ref[...] = jnp.tanh(y + bias_ref[...])


def _bn_apply_relu_kernel(x_ref, aff_ref, o_ref):
    # aff row 0 = scale, row 1 = shift (precomputed in f32 from batch stats).
    y = x_ref[...] * aff_ref[0:1, :] + aff_ref[1:2, :]
    o_ref[...] = jnp.maximum(y, 0.0).astype(o_ref.dtype)


# --------------------------- pallas_call wrappers --------------------------

def _row_tile(m, target=TM_TARGET):
    """Largest multiple-of-8 divisor of m that is <= target (or m itself)."""
    if m <= target:
        return m
    for t in range(target, 7, -8):
        if m % t == 0:
            return t
    return m


def dense_proj_stats(a, b, bias, col_tile=1024):
    """(M,K)@(K,N)+bias with per-column sum/sumsq, tiled over output columns."""
    M, K = a.shape
    N = b.shape[1]
    ct = col_tile if N % col_tile == 0 else N
    return pl.pallas_call(
        _matmul_bias_stats_kernel,
        grid=(N // ct,),
        in_specs=[
            pl.BlockSpec((M, K), lambda j: (0, 0)),
            pl.BlockSpec((K, ct), lambda j: (0, j)),
            pl.BlockSpec((1, ct), lambda j: (0, j)),
        ],
        out_specs=[
            pl.BlockSpec((M, ct), lambda j: (0, j)),
            pl.BlockSpec((2, ct), lambda j: (0, j)),
        ],
        out_shape=(jax.ShapeDtypeStruct((M, N), jnp.float32),
                   jax.ShapeDtypeStruct((2, N), jnp.float32)),
        compiler_params=pltpu.CompilerParams(dimension_semantics=("parallel",)),
    )(a.astype(MXU_DTYPE), b.astype(MXU_DTYPE),
      bias.reshape(1, N).astype(jnp.float32))


def phase_conv_stats(a_all, b_all, bias):
    """Per-phase matmuls (P,M,K)@(P,K,C)+bias -> (P,M,C) f32 plus per-tile stats."""
    P, M, K = a_all.shape
    C = b_all.shape[2]
    tm = _row_tile(M)
    nt = M // tm
    return pl.pallas_call(
        _matmul_bias_stats_kernel,
        grid=(P, nt),
        in_specs=[
            pl.BlockSpec((None, tm, K), lambda p, t: (p, t, 0)),
            pl.BlockSpec((None, K, C), lambda p, t: (p, 0, 0)),
            pl.BlockSpec((1, C), lambda p, t: (0, 0)),
        ],
        out_specs=[
            pl.BlockSpec((None, tm, C), lambda p, t: (p, t, 0)),
            pl.BlockSpec((None, None, 2, C), lambda p, t: (p, t, 0, 0)),
        ],
        out_shape=(jax.ShapeDtypeStruct((P, M, C), jnp.float32),
                   jax.ShapeDtypeStruct((P, nt, 2, C), jnp.float32)),
        compiler_params=pltpu.CompilerParams(
            dimension_semantics=("parallel", "parallel")),
    )(a_all.astype(MXU_DTYPE), b_all.astype(MXU_DTYPE),
      bias.reshape(1, C).astype(jnp.float32))


def matmul_bias_tanh(a, b, bias):
    M, K = a.shape
    C = b.shape[1]
    tm = _row_tile(M)
    return pl.pallas_call(
        _matmul_bias_tanh_kernel,
        grid=(M // tm,),
        in_specs=[
            pl.BlockSpec((tm, K), lambda t: (t, 0)),
            pl.BlockSpec((K, C), lambda t: (0, 0)),
            pl.BlockSpec((1, C), lambda t: (0, 0)),
        ],
        out_specs=pl.BlockSpec((tm, C), lambda t: (t, 0)),
        out_shape=jax.ShapeDtypeStruct((M, C), jnp.float32),
        compiler_params=pltpu.CompilerParams(dimension_semantics=("parallel",)),
    )(a.astype(MXU_DTYPE), b.astype(MXU_DTYPE),
      bias.reshape(1, C).astype(jnp.float32))


def bn_apply_relu(x2d, scale, shift):
    """(x*scale + shift) then ReLU, tiled over rows; stored as ACT_DTYPE."""
    M, C = x2d.shape
    tm = _row_tile(M)
    aff = jnp.stack([scale, shift], axis=0).astype(jnp.float32)   # (2, C)
    return pl.pallas_call(
        _bn_apply_relu_kernel,
        grid=(M // tm,),
        in_specs=[
            pl.BlockSpec((tm, C), lambda t: (t, 0)),
            pl.BlockSpec((2, C), lambda t: (0, 0)),
        ],
        out_specs=pl.BlockSpec((tm, C), lambda t: (t, 0)),
        out_shape=jax.ShapeDtypeStruct((M, C), ACT_DTYPE),
        compiler_params=pltpu.CompilerParams(dimension_semantics=("parallel",)),
    )(x2d, aff)


# ----------------------- BatchNorm statistics (f32) ------------------------

def _bn_affine(sum_x, sum_x2, count, gamma, beta, eps=BN_EPS):
    mean = sum_x / count
    var = jnp.maximum(sum_x2 / count - mean * mean, 0.0)   # biased batch variance
    scale = gamma * jax.lax.rsqrt(var + eps)
    shift = beta - mean * scale
    return scale, shift


# ------------------ sub-pixel (phase) decomposition glue -------------------
# For k=4, s=2, p=1: output row 2m+ph reads the (un-dilated, 1-padded) input
# rows m+ph+dh (dh in {0,1}) against kernel rows _K4_TAP[ph][dh]; same along W.
_K4_TAP = ((3, 1), (2, 0))

# TODO(synk): the window slicing below is XLA layout glue; moving it into the
# Pallas kernel would need Element-offset windows / manual DMA (not done here).


def _phase_im2col_k4(x):
    """x: (N,H,W,C) -> A (4, N*H*W, 4*C); phases (ph,pw), columns (dh,dw,c)."""
    N, H, W, C = x.shape
    xp = jnp.pad(x, ((0, 0), (1, 1), (1, 1), (0, 0)))
    phases = []
    for ph in range(2):
        for pw in range(2):
            cols = [xp[:, ph + dh:ph + dh + H, pw + dw:pw + dw + W, :]
                    .reshape(N * H * W, C)
                    for dh in range(2) for dw in range(2)]
            phases.append(jnp.concatenate(cols, axis=1))
    return jnp.stack(phases, axis=0)


def _phase_weights_k4(w_t):
    """w_t: (C_in, C_out, 4, 4) -> B (4, 4*C_in, C_out) matching _phase_im2col_k4."""
    phases = []
    for ph in range(2):
        for pw in range(2):
            blocks = [w_t[:, :, _K4_TAP[ph][dh], _K4_TAP[pw][dw]]
                      for dh in range(2) for dw in range(2)]
            phases.append(jnp.concatenate(blocks, axis=0))     # (4*C_in, C_out)
    return jnp.stack(phases, axis=0)


def _interleave_phases(y_flat, N, H, W, C):
    """y_flat: (4*N*H*W, C) ordered (ph,pw,n,h,w) -> NHWC (N, 2H, 2W, C)."""
    y = y_flat.reshape(2, 2, N, H, W, C).transpose(2, 3, 0, 4, 1, 5)
    return y.reshape(N, 2 * H, 2 * W, C)


def convt_k4s2p1_bn_relu(x, w_t, bias, gamma, beta):
    """NHWC ConvTranspose2d(k=4,s=2,p=1) + train-mode BatchNorm2d + ReLU."""
    N, H, W, _ = x.shape
    C_out = w_t.shape[1]
    a_all = _phase_im2col_k4(x)
    b_all = _phase_weights_k4(w_t)
    y, stats = phase_conv_stats(a_all, b_all, bias)            # f32 outputs
    sums = jnp.sum(stats, axis=(0, 1))                         # (2, C_out)
    scale, shift = _bn_affine(sums[0], sums[1], 4.0 * N * H * W, gamma, beta)
    yb = bn_apply_relu(y.reshape(4 * N * H * W, C_out), scale, shift)
    return _interleave_phases(yb, N, H, W, C_out)


# Final layer (k=3, s=2, p=1, C_out=1): 2x2 union windows, 4 phase columns
# padded to 128 lanes.  _K3_TAP[ph] maps window offset dh -> kernel row.
_K3_TAP = ({0: 1}, {0: 2, 1: 0})


def _union_im2col_k3(x):
    """x: (N,H,W,C) -> A (N*H*W, 4*C): 2x2 windows, zero-padded bottom/right."""
    N, H, W, C = x.shape
    xq = jnp.pad(x, ((0, 0), (0, 1), (0, 1), (0, 0)))
    cols = [xq[:, dh:dh + H, dw:dw + W, :].reshape(N * H * W, C)
            for dh in range(2) for dw in range(2)]
    return jnp.concatenate(cols, axis=1)


def _union_weights_k3(w_t, lane_pad=128):
    """w_t: (C_in, 1, 3, 3) -> B (4*C_in, lane_pad); cols 0..3 = phases (ph,pw)."""
    c_in = w_t.shape[0]
    blocks = []
    for dh in range(2):
        for dw in range(2):
            cols = []
            for ph in range(2):
                for pw in range(2):
                    kh = _K3_TAP[ph].get(dh)
                    kw = _K3_TAP[pw].get(dw)
                    if kh is None or kw is None:
                        cols.append(jnp.zeros((c_in, 1), w_t.dtype))
                    else:
                        cols.append(w_t[:, 0:1, kh, kw])
            blocks.append(jnp.concatenate(cols, axis=1))        # (C_in, 4)
    b = jnp.concatenate(blocks, axis=0)                         # (4*C_in, 4)
    return jnp.pad(b, ((0, 0), (0, lane_pad - 4)))


def convt_k3s2p1_tanh(x, w_t, bias, lane_pad=128):
    """NHWC ConvTranspose2d(k=3,s=2,p=1,C_out=1) + tanh -> NCHW (N,1,2H-1,2W-1)."""
    N, H, W, _ = x.shape
    a = _union_im2col_k3(x)
    b = _union_weights_k3(w_t, lane_pad)
    bias_v = jnp.zeros((lane_pad,), jnp.float32).at[:4].set(bias[0])
    y = matmul_bias_tanh(a, b, bias_v)                          # (N*H*W, lane_pad)
    y = y[:, :4].reshape(N, H, W, 2, 2).transpose(0, 1, 3, 2, 4)
    y = y.reshape(N, 2 * H, 2 * W)[:, :2 * H - 1, :2 * W - 1]
    return y[:, None, :, :]


# ------------------------------ the module --------------------------------

def init_params(key, latent_dim):
    ks = jax.random.split(key, 14)

    def uw(k, shape, fan_in):
        bound = 1.0 / jnp.sqrt(fan_in)
        return jax.random.uniform(k, shape, jnp.float32, -bound, bound)

    p = {}
    # ConvTranspose2d weights: (C_in, C_out, kH, kW)  (PyTorch layout)
    p["w1"] = uw(ks[0], (latent_dim, 256, 4, 4), latent_dim * 16)
    p["b1"] = uw(ks[1], (256,), latent_dim * 16)
    p["w2"] = uw(ks[2], (256, 128, 4, 4), 256 * 16)
    p["b2"] = uw(ks[3], (128,), 256 * 16)
    p["w3"] = uw(ks[4], (128, 64, 4, 4), 128 * 16)
    p["b3"] = uw(ks[5], (64,), 128 * 16)
    p["w4"] = uw(ks[6], (64, 1, 3, 3), 64 * 9)
    p["b4"] = uw(ks[7], (1,), 64 * 9)
    # BatchNorm affine params
    p["g1"] = 1.0 + 0.1 * jax.random.normal(ks[8], (256,), jnp.float32)
    p["be1"] = 0.1 * jax.random.normal(ks[9], (256,), jnp.float32)
    p["g2"] = 1.0 + 0.1 * jax.random.normal(ks[10], (128,), jnp.float32)
    p["be2"] = 0.1 * jax.random.normal(ks[11], (128,), jnp.float32)
    p["g3"] = 1.0 + 0.1 * jax.random.normal(ks[12], (64,), jnp.float32)
    p["be3"] = 0.1 * jax.random.normal(ks[13], (64,), jnp.float32)
    return p


def wgan_generator_forward(z, params):
    # z: (N, latent_dim, 1, 1)  (NCHW, matching PyTorch)
    N, latent = z.shape[0], z.shape[1]

    # Block 1: ConvT(latent,256,4,1,0) on a 1x1 input == dense projection
    #          -> BN -> ReLU                              : 1x1 -> 4x4
    b1 = params["w1"].transpose(0, 2, 3, 1).reshape(latent, 4 * 4 * 256)
    y1, s1 = dense_proj_stats(z.reshape(N, latent), b1, jnp.tile(params["b1"], 16))
    sums = s1.reshape(2, 16, 256).sum(axis=1)          # fold the 16 (h,w) groups
    scale, shift = _bn_affine(sums[0], sums[1], 16.0 * N, params["g1"], params["be1"])
    x = bn_apply_relu(y1.reshape(N * 16, 256), scale, shift).reshape(N, 4, 4, 256)

    # Block 2: ConvT(256,128,4,2,1) -> BN -> ReLU        : 4x4 -> 8x8
    x = convt_k4s2p1_bn_relu(x, params["w2"], params["b2"], params["g2"], params["be2"])
    # Block 3: ConvT(128,64,4,2,1) -> BN -> ReLU         : 8x8 -> 16x16
    x = convt_k4s2p1_bn_relu(x, params["w3"], params["b3"], params["g3"], params["be3"])
    # Block 4: ConvT(64,1,3,2,1) -> Tanh                 : 16x16 -> 31x31 (NCHW)
    return convt_k3s2p1_tanh(x, params["w4"], params["b4"])


if __name__ == "__main__":
    key = jax.random.PRNGKey(0)
    latent_dim, batch = 32, 2
    pkey, zkey = jax.random.split(key)
    params = init_params(pkey, latent_dim)
    z = jax.random.normal(zkey, (batch, latent_dim, 1, 1), jnp.float32)

    fwd = jax.jit(lambda zz: wgan_generator_forward(zz, params))
    out = jax.block_until_ready(fwd(z))

    assert out.shape == (batch, 1, 31, 31), out.shape
    assert bool(jnp.all(jnp.isfinite(out)))
    assert bool(jnp.all(jnp.abs(out) <= 1.0))  # tanh output range
    print("KERNEL_OK")
</pallas_src>

<mosaic_0001>
module attributes {stable_mosaic.version = 11 : i64} {
  func.func @_matmul_bias_stats_kernel(%arg0: i32, %arg1: memref<2x32xbf16, #tpu.memory_space<vmem>>, %arg2: memref<32x1024xbf16, #tpu.memory_space<vmem>>, %arg3: memref<1x1024xf32, #tpu.memory_space<vmem>>, %arg4: memref<2x1024xf32, #tpu.memory_space<vmem>>, %arg5: memref<2x1024xf32, #tpu.memory_space<vmem>>) attributes {dimension_semantics = [#tpu.dimension_semantics<parallel>], iteration_bounds = array<i64: 4>, scalar_prefetch = 0 : i64, scratch_operands = 0 : i64, tpu.core_type = #tpu.core_type<tc>, window_params = [{pipeline_mode = #tpu.pipeline_mode<synchronous>, transform_indices = @transform_0, window_bounds = array<i64: 2, 32>}, {transform_indices = @transform_1, window_bounds = array<i64: 32, 1024>}, {transform_indices = @transform_2, window_bounds = array<i64: 1, 1024>}, {transform_indices = @transform_3, window_bounds = array<i64: 2, 1024>}, {transform_indices = @transform_4, window_bounds = array<i64: 2, 1024>}]} {
    %c0 = arith.constant 0 : index
    %c0_0 = arith.constant 0 : index
    %0 = vector.load %arg1[%c0, %c0_0] : memref<2x32xbf16, #tpu.memory_space<vmem>>, vector<2x32xbf16>
    %c0_1 = arith.constant 0 : index
    %c0_2 = arith.constant 0 : index
    %1 = vector.load %arg2[%c0_1, %c0_2] : memref<32x1024xbf16, #tpu.memory_space<vmem>>, vector<32x1024xbf16>
    %cst = arith.constant dense<0.000000e+00> : vector<2x1024xf32>
    %2 = tpu.matmul %0, %1, %cst {dimension_numbers = #tpu.dot_dimension_numbers<[1], [0], [0], [1], [0, 0, 1, 1], [], []>} : vector<2x32xbf16>, vector<32x1024xbf16>, vector<2x1024xf32> -> vector<2x1024xf32>
    %c0_3 = arith.constant 0 : index
    %c0_4 = arith.constant 0 : index
    %3 = vector.load %arg3[%c0_3, %c0_4] : memref<1x1024xf32, #tpu.memory_space<vmem>>, vector<1x1024xf32>
    %4 = vector.broadcast %3 : vector<1x1024xf32> to vector<2x1024xf32>
    %5 = arith.addf %2, %4 : vector<2x1024xf32>
    %c0_5 = arith.constant 0 : index
    %c0_6 = arith.constant 0 : index
    %6 = vector.load %arg4[%c0_5, %c0_6] : memref<2x1024xf32, #tpu.memory_space<vmem>>, vector<2x1024xf32>
    tpu.vector_store %arg4[%c0_5, %c0_6], %5 {strides = array<i32>} : memref<2x1024xf32, #tpu.memory_space<vmem>>, vector<2x1024xf32>,
    %cst_7 = arith.constant dense<0.000000e+00> : vector<1024xf32>
    %7 = vector.multi_reduction <add>, %5, %cst_7 [0] : vector<2x1024xf32> to vector<1024xf32>
    %8 = vector.shape_cast %7 : vector<1024xf32> to vector<1x1024xf32>
    %9 = arith.mulf %5, %5 : vector<2x1024xf32>
    %cst_8 = arith.constant dense<0.000000e+00> : vector<1024xf32>
    %10 = vector.multi_reduction <add>, %9, %cst_8 [0] : vector<2x1024xf32> to vector<1024xf32>
    %11 = vector.shape_cast %10 : vector<1024xf32> to vector<1x1024xf32>
    %12 = tpu.concatenate %8, %11 in 0 : vector<1x1024xf32>, vector<1x1024xf32> -> vector<2x1024xf32>
    %c0_9 = arith.constant 0 : index
    %c0_10 = arith.constant 0 : index
    %13 = vector.load %arg5[%c0_9, %c0_10] : memref<2x1024xf32, #tpu.memory_space<vmem>>, vector<2x1024xf32>
    tpu.vector_store %arg5[%c0_9, %c0_10], %12 {strides = array<i32>} : memref<2x1024xf32, #tpu.memory_space<vmem>>, vector<2x1024xf32>,
    return
  }
  func.func @transform_0(%arg0: i32) -> (i32, i32) {
    %c0_i32 = arith.constant 0 : i32
    %c0_i32_0 = arith.constant 0 : i32
    %c0_i32_1 = arith.constant 0 : i32
    return %c0_i32, %c0_i32_0 : i32, i32
  }
  func.func @transform_1(%arg0: i32) -> (i32, i32) {
    %c0_i32 = arith.constant 0 : i32
    %c0_i32_0 = arith.constant 0 : i32
    return %c0_i32, %arg0 : i32, i32
  }
  func.func @transform_2(%arg0: i32) -> (i32, i32) {
    %c0_i32 = arith.constant 0 : i32
    %c0_i32_0 = arith.constant 0 : i32
    return %c0_i32, %arg0 : i32, i32
  }
  func.func @transform_3(%arg0: i32) -> (i32, i32) {
    %c0_i32 = arith.constant 0 : i32
    %c0_i32_0 = arith.constant 0 : i32
    return %c0_i32, %arg0 : i32, i32
  }
  func.func @transform_4(%arg0: i32) -> (i32, i32) {
    %c0_i32 = arith.constant 0 : i32
    %c0_i32_0 = arith.constant 0 : i32
    return %c0_i32, %arg0 : i32, i32
  }
}

module attributes {stable_mosaic.version = 11 : i64} {
  func.func @_bn_apply_relu_kernel(%arg0: i32, %arg1: memref<32x256xf32, #tpu.memory_space<vmem>>, %arg2: memref<2x256xf32, #tpu.memory_space<vmem>>, %arg3: memref<32x256xbf16, #tpu.memory_space<vmem>>) attributes {dimension_semantics = [#tpu.dimension_semantics<parallel>], iteration_bounds = array<i64: 1>, scalar_prefetch = 0 : i64, scratch_operands = 0 : i64, tpu.core_type = #tpu.core_type<tc>, window_params = [{transform_indices = @transform_0, window_bounds = array<i64: 32, 256>}, {pipeline_mode = #tpu.pipeline_mode<synchronous>, transform_indices = @transform_1, window_bounds = array<i64: 2, 256>}, {transform_indices = @transform_2, window_bounds = array<i64: 32, 256>}]} {
    %c0 = arith.constant 0 : index
    %c0_0 = arith.constant 0 : index
    %0 = vector.load %arg1[%c0, %c0_0] : memref<32x256xf32, #tpu.memory_space<vmem>>, vector<32x256xf32>
    %c0_1 = arith.constant 0 : index
    %c0_2 = arith.constant 0 : index
    %1 = vector.load %arg2[%c0_1, %c0_2] : memref<2x256xf32, #tpu.memory_space<vmem>>, vector<1x256xf32>
    %2 = vector.broadcast %1 : vector<1x256xf32> to vector<32x256xf32>
    %3 = arith.mulf %0, %2 : vector<32x256xf32>
    %c1 = arith.constant 1 : index
    %c0_3 = arith.constant 0 : index
    %4 = vector.load %arg2[%c1, %c0_3] : memref<2x256xf32, #tpu.memory_space<vmem>>, vector<1x256xf32>
    %5 = vector.broadcast %4 : vector<1x256xf32> to vector<32x256xf32>
    %6 = arith.addf %3, %5 : vector<32x256xf32>
    %cst = arith.constant 0.000000e+00 : f32
    %7 = vector.broadcast %cst : f32 to vector<32x256xf32>
    %8 = arith.maximumf %6, %7 : vector<32x256xf32>
    %9 = arith.truncf %8 : vector<32x256xf32> to vector<32x256xbf16>
    %c0_4 = arith.constant 0 : index
    %c0_5 = arith.constant 0 : index
    %10 = vector.load %arg3[%c0_4, %c0_5] : memref<32x256xbf16, #tpu.memory_space<vmem>>, vector<32x256xbf16>
    tpu.vector_store %arg3[%c0_4, %c0_5], %9 {strides = array<i32>} : memref<32x256xbf16, #tpu.memory_space<vmem>>, vector<32x256xbf16>,
    return
  }
  func.func @transform_0(%arg0: i32) -> (i32, i32) {
    %c0_i32 = arith.constant 0 : i32
    %c0_i32_0 = arith.constant 0 : i32
    return %arg0, %c0_i32 : i32, i32
  }
  func.func @transform_1(%arg0: i32) -> (i32, i32) {
    %c0_i32 = arith.constant 0 : i32
    %c0_i32_0 = arith.constant 0 : i32
    %c0_i32_1 = arith.constant 0 : i32
    return %c0_i32, %c0_i32_0 : i32, i32
  }
  func.func @transform_2(%arg0: i32) -> (i32, i32) {
    %c0_i32 = arith.constant 0 : i32
    %c0_i32_0 = arith.constant 0 : i32
    return %arg0, %c0_i32 : i32, i32
  }
}

module attributes {stable_mosaic.version = 11 : i64} {
  func.func @_matmul_bias_stats_kernel(%arg0: i32, %arg1: i32, %arg2: memref<1x32x1024xbf16, #tpu.memory_space<vmem>>, %arg3: memref<1x1024x128xbf16, #tpu.memory_space<vmem>>, %arg4: memref<1x128xf32, #tpu.memory_space<vmem>>, %arg5: memref<1x32x128xf32, #tpu.memory_space<vmem>>, %arg6: memref<1x1x2x128xf32, #tpu.memory_space<vmem>>) attributes {dimension_semantics = [#tpu.dimension_semantics<parallel>, #tpu.dimension_semantics<parallel>], iteration_bounds = array<i64: 4, 1>, scalar_prefetch = 0 : i64, scratch_operands = 0 : i64, tpu.core_type = #tpu.core_type<tc>, window_params = [{transform_indices = @transform_0, window_bounds = array<i64: 1, 32, 1024>}, {transform_indices = @transform_1, window_bounds = array<i64: 1, 1024, 128>}, {pipeline_mode = #tpu.pipeline_mode<synchronous>, transform_indices = @transform_2, window_bounds = array<i64: 1, 128>}, {transform_indices = @transform_3, window_bounds = array<i64: 1, 32, 128>}, {transform_indices = @transform_4, window_bounds = array<i64: 1, 1, 2, 128>}]} {
    %c0 = arith.constant 0 : index
    %c0_0 = arith.constant 0 : index
    %c0_1 = arith.constant 0 : index
    %0 = vector.load %arg2[%c0, %c0_0, %c0_1] : memref<1x32x1024xbf16, #tpu.memory_space<vmem>>, vector<1x32x1024xbf16>
    %1 = vector.shape_cast %0 : vector<1x32x1024xbf16> to vector<32x1024xbf16>
    %c0_2 = arith.constant 0 : index
    %c0_3 = arith.constant 0 : index
    %c0_4 = arith.constant 0 : index
    %2 = vector.load %arg3[%c0_2, %c0_3, %c0_4] : memref<1x1024x128xbf16, #tpu.memory_space<vmem>>, vector<1x1024x128xbf16>
    %3 = vector.shape_cast %2 : vector<1x1024x128xbf16> to vector<1024x128xbf16>
    %cst = arith.constant dense<0.000000e+00> : vector<32x128xf32>
    %4 = tpu.matmul %1, %3, %cst {dimension_numbers = #tpu.dot_dimension_numbers<[1], [0], [0], [1], [0, 0, 1, 1], [], []>} : vector<32x1024xbf16>, vector<1024x128xbf16>, vector<32x128xf32> -> vector<32x128xf32>
    %c0_5 = arith.constant 0 : index
    %c0_6 = arith.constant 0 : index
    %5 = vector.load %arg4[%c0_5, %c0_6] : memref<1x128xf32, #tpu.memory_space<vmem>>, vector<1x128xf32>
    %6 = vector.broadcast %5 : vector<1x128xf32> to vector<32x128xf32>
    %7 = arith.addf %4, %6 : vector<32x128xf32>
    %c0_7 = arith.constant 0 : index
    %c0_8 = arith.constant 0 : index
    %c0_9 = arith.constant 0 : index
    %8 = vector.load %arg5[%c0_7, %c0_8, %c0_9] : memref<1x32x128xf32, #tpu.memory_space<vmem>>, vector<1x32x128xf32>
    %9 = vector.shape_cast %8 : vector<1x32x128xf32> to vector<32x128xf32>
    %10 = vector.shape_cast %7 : vector<32x128xf32> to vector<1x32x128xf32>
    tpu.vector_store %arg5[%c0_7, %c0_8, %c0_9], %10 {strides = array<i32>} : memref<1x32x128xf32, #tpu.memory_space<vmem>>, vector<1x32x128xf32>,
    %cst_10 = arith.constant dense<0.000000e+00> : vector<128xf32>
    %11 = vector.multi_reduction <add>, %7, %cst_10 [0] : vector<32x128xf32> to vector<128xf32>
    %12 = vector.shape_cast %11 : vector<128xf32> to vector<1x128xf32>
    %13 = arith.mulf %7, %7 : vector<32x128xf32>
    %cst_11 = arith.constant dense<0.000000e+00> : vector<128xf32>
    %14 = vector.multi_reduction <add>, %13, %cst_11 [0] : vector<32x128xf32> to vector<128xf32>
    %15 = vector.shape_cast %14 : vector<128xf32> to vector<1x128xf32>
    %16 = tpu.concatenate %12, %15 in 0 : vector<1x128xf32>, vector<1x128xf32> -> vector<2x128xf32>
    %c0_12 = arith.constant 0 : index
    %c0_13 = arith.constant 0 : index
    %c0_14 = arith.constant 0 : index
    %c0_15 = arith.constant 0 : index
    %17 = vector.load %arg6[%c0_12, %c0_13, %c0_14, %c0_15] : memref<1x1x2x128xf32, #tpu.memory_space<vmem>>, vector<1x1x2x128xf32>
    %18 = vector.shape_cast %17 : vector<1x1x2x128xf32> to vector<2x128xf32>
    %19 = vector.shape_cast %16 : vector<2x128xf32> to vector<1x1x2x128xf32>
    tpu.vector_store %arg6[%c0_12, %c0_13, %c0_14, %c0_15], %19 {strides = array<i32>} : memref<1x1x2x128xf32, #tpu.memory_space<vmem>>, vector<1x1x2x128xf32>,
    return
  }
  func.func @transform_0(%arg0: i32, %arg1: i32) -> (i32, i32, i32) {
    %c0_i32 = arith.constant 0 : i32
    %c0_i32_0 = arith.constant 0 : i32
    return %arg0, %arg1, %c0_i32 : i32, i32, i32
  }
  func.func @transform_1(%arg0: i32, %arg1: i32) -> (i32, i32, i32) {
    %c0_i32 = arith.constant 0 : i32
    %c0_i32_0 = arith.constant 0 : i32
    %c0_i32_1 = arith.constant 0 : i32
    return %arg0, %c0_i32, %c0_i32_0 : i32, i32, i32
  }
  func.func @transform_2(%arg0: i32, %arg1: i32) -> (i32, i32) {
    %c0_i32 = arith.constant 0 : i32
    %c0_i32_0 = arith.constant 0 : i32
    %c0_i32_1 = arith.constant 0 : i32
    return %c0_i32, %c0_i32_0 : i32, i32
  }
  func.func @transform_3(%arg0: i32, %arg1: i32) -> (i32, i32, i32) {
    %c0_i32 = arith.constant 0 : i32
    %c0_i32_0 = arith.constant 0 : i32
    return %arg0, %arg1, %c0_i32 : i32, i32, i32
  }
  func.func @transform_4(%arg0: i32, %arg1: i32) -> (i32, i32, i32, i32) {
    %c0_i32 = arith.constant 0 : i32
    %c0_i32_0 = arith.constant 0 : i32
    %c0_i32_1 = arith.constant 0 : i32
    return %arg0, %arg1, %c0_i32, %c0_i32_0 : i32, i32, i32, i32
  }
}

module attributes {stable_mosaic.version = 11 : i64} {
  func.func @_bn_apply_relu_kernel(%arg0: i32, %arg1: memref<128x128xf32, #tpu.memory_space<vmem>>, %arg2: memref<2x128xf32, #tpu.memory_space<vmem>>, %arg3: memref<128x128xbf16, #tpu.memory_space<vmem>>) attributes {dimension_semantics = [#tpu.dimension_semantics<parallel>], iteration_bounds = array<i64: 1>, scalar_prefetch = 0 : i64, scratch_operands = 0 : i64, tpu.core_type = #tpu.core_type<tc>, window_params = [{transform_indices = @transform_0, window_bounds = array<i64: 128, 128>}, {pipeline_mode = #tpu.pipeline_mode<synchronous>, transform_indices = @transform_1, window_bounds = array<i64: 2, 128>}, {transform_indices = @transform_2, window_bounds = array<i64: 128, 128>}]} {
    %c0 = arith.constant 0 : index
    %c0_0 = arith.constant 0 : index
    %0 = vector.load %arg1[%c0, %c0_0] : memref<128x128xf32, #tpu.memory_space<vmem>>, vector<128x128xf32>
    %c0_1 = arith.constant 0 : index
    %c0_2 = arith.constant 0 : index
    %1 = vector.load %arg2[%c0_1, %c0_2] : memref<2x128xf32, #tpu.memory_space<vmem>>, vector<1x128xf32>
    %2 = vector.broadcast %1 : vector<1x128xf32> to vector<128x128xf32>
    %3 = arith.mulf %0, %2 : vector<128x128xf32>
    %c1 = arith.constant 1 : index
    %c0_3 = arith.constant 0 : index
    %4 = vector.load %arg2[%c1, %c0_3] : memref<2x128xf32, #tpu.memory_space<vmem>>, vector<1x128xf32>
    %5 = vector.broadcast %4 : vector<1x128xf32> to vector<128x128xf32>
    %6 = arith.addf %3, %5 : vector<128x128xf32>
    %cst = arith.constant 0.000000e+00 : f32
    %7 = vector.broadcast %cst : f32 to vector<128x128xf32>
    %8 = arith.maximumf %6, %7 : vector<128x128xf32>
    %9 = arith.truncf %8 : vector<128x128xf32> to vector<128x128xbf16>
    %c0_4 = arith.constant 0 : index
    %c0_5 = arith.constant 0 : index
    %10 = vector.load %arg3[%c0_4, %c0_5] : memref<128x128xbf16, #tpu.memory_space<vmem>>, vector<128x128xbf16>
    tpu.vector_store %arg3[%c0_4, %c0_5], %9 {strides = array<i32>} : memref<128x128xbf16, #tpu.memory_space<vmem>>, vector<128x128xbf16>,
    return
  }
  func.func @transform_0(%arg0: i32) -> (i32, i32) {
    %c0_i32 = arith.constant 0 : i32
    %c0_i32_0 = arith.constant 0 : i32
    return %arg0, %c0_i32 : i32, i32
  }
  func.func @transform_1(%arg0: i32) -> (i32, i32) {
    %c0_i32 = arith.constant 0 : i32
    %c0_i32_0 = arith.constant 0 : i32
    %c0_i32_1 = arith.constant 0 : i32
    return %c0_i32, %c0_i32_0 : i32, i32
  }
  func.func @transform_2(%arg0: i32) -> (i32, i32) {
    %c0_i32 = arith.constant 0 : i32
    %c0_i32_0 = arith.constant 0 : i32
    return %arg0, %c0_i32 : i32, i32
  }
}

module attributes {stable_mosaic.version = 11 : i64} {
  func.func @_matmul_bias_stats_kernel(%arg0: i32, %arg1: i32, %arg2: memref<1x128x512xbf16, #tpu.memory_space<vmem>>, %arg3: memref<1x512x64xbf16, #tpu.memory_space<vmem>>, %arg4: memref<1x64xf32, #tpu.memory_space<vmem>>, %arg5: memref<1x128x64xf32, #tpu.memory_space<vmem>>, %arg6: memref<1x1x2x64xf32, #tpu.memory_space<vmem>>) attributes {dimension_semantics = [#tpu.dimension_semantics<parallel>, #tpu.dimension_semantics<parallel>], iteration_bounds = array<i64: 4, 1>, scalar_prefetch = 0 : i64, scratch_operands = 0 : i64, tpu.core_type = #tpu.core_type<tc>, window_params = [{transform_indices = @transform_0, window_bounds = array<i64: 1, 128, 512>}, {transform_indices = @transform_1, window_bounds = array<i64: 1, 512, 64>}, {pipeline_mode = #tpu.pipeline_mode<synchronous>, transform_indices = @transform_2, window_bounds = array<i64: 1, 64>}, {transform_indices = @transform_3, window_bounds = array<i64: 1, 128, 64>}, {transform_indices = @transform_4, window_bounds = array<i64: 1, 1, 2, 64>}]} {
    %c0 = arith.constant 0 : index
    %c0_0 = arith.constant 0 : index
    %c0_1 = arith.constant 0 : index
    %0 = vector.load %arg2[%c0, %c0_0, %c0_1] : memref<1x128x512xbf16, #tpu.memory_space<vmem>>, vector<1x128x512xbf16>
    %1 = vector.shape_cast %0 : vector<1x128x512xbf16> to vector<128x512xbf16>
    %c0_2 = arith.constant 0 : index
    %c0_3 = arith.constant 0 : index
    %c0_4 = arith.constant 0 : index
    %2 = vector.load %arg3[%c0_2, %c0_3, %c0_4] : memref<1x512x64xbf16, #tpu.memory_space<vmem>>, vector<1x512x64xbf16>
    %3 = vector.shape_cast %2 : vector<1x512x64xbf16> to vector<512x64xbf16>
    %cst = arith.constant dense<0.000000e+00> : vector<128x64xf32>
    %4 = tpu.matmul %1, %3, %cst {dimension_numbers = #tpu.dot_dimension_numbers<[1], [0], [0], [1], [0, 0, 1, 1], [], []>} : vector<128x512xbf16>, vector<512x64xbf16>, vector<128x64xf32> -> vector<128x64xf32>
    %c0_5 = arith.constant 0 : index
    %c0_6 = arith.constant 0 : index
    %5 = vector.load %arg4[%c0_5, %c0_6] : memref<1x64xf32, #tpu.memory_space<vmem>>, vector<1x64xf32>
    %6 = vector.broadcast %5 : vector<1x64xf32> to vector<128x64xf32>
    %7 = arith.addf %4, %6 : vector<128x64xf32>
    %c0_7 = arith.constant 0 : index
    %c0_8 = arith.constant 0 : index
    %c0_9 = arith.constant 0 : index
    %8 = vector.load %arg5[%c0_7, %c0_8, %c0_9] : memref<1x128x64xf32, #tpu.memory_space<vmem>>, vector<1x128x64xf32>
    %9 = vector.shape_cast %8 : vector<1x128x64xf32> to vector<128x64xf32>
    %10 = vector.shape_cast %7 : vector<128x64xf32> to vector<1x128x64xf32>
    tpu.vector_store %arg5[%c0_7, %c0_8, %c0_9], %10 {strides = array<i32>} : memref<1x128x64xf32, #tpu.memory_space<vmem>>, vector<1x128x64xf32>,
    %cst_10 = arith.constant dense<0.000000e+00> : vector<64xf32>
    %11 = vector.multi_reduction <add>, %7, %cst_10 [0] : vector<128x64xf32> to vector<64xf32>
    %12 = vector.shape_cast %11 : vector<64xf32> to vector<1x64xf32>
    %13 = arith.mulf %7, %7 : vector<128x64xf32>
    %cst_11 = arith.constant dense<0.000000e+00> : vector<64xf32>
    %14 = vector.multi_reduction <add>, %13, %cst_11 [0] : vector<128x64xf32> to vector<64xf32>
    %15 = vector.shape_cast %14 : vector<64xf32> to vector<1x64xf32>
    %16 = tpu.concatenate %12, %15 in 0 : vector<1x64xf32>, vector<1x64xf32> -> vector<2x64xf32>
    %c0_12 = arith.constant 0 : index
    %c0_13 = arith.constant 0 : index
    %c0_14 = arith.constant 0 : index
    %c0_15 = arith.constant 0 : index
    %17 = vector.load %arg6[%c0_12, %c0_13, %c0_14, %c0_15] : memref<1x1x2x64xf32, #tpu.memory_space<vmem>>, vector<1x1x2x64xf32>
    %18 = vector.shape_cast %17 : vector<1x1x2x64xf32> to vector<2x64xf32>
    %19 = vector.shape_cast %16 : vector<2x64xf32> to vector<1x1x2x64xf32>
    tpu.vector_store %arg6[%c0_12, %c0_13, %c0_14, %c0_15], %19 {strides = array<i32>} : memref<1x1x2x64xf32, #tpu.memory_space<vmem>>, vector<1x1x2x64xf32>,
    return
  }
  func.func @transform_0(%arg0: i32, %arg1: i32) -> (i32, i32, i32) {
    %c0_i32 = arith.constant 0 : i32
    %c0_i32_0 = arith.constant 0 : i32
    return %arg0, %arg1, %c0_i32 : i32, i32, i32
  }
  func.func @transform_1(%arg0: i32, %arg1: i32) -> (i32, i32, i32) {
    %c0_i32 = arith.constant 0 : i32
    %c0_i32_0 = arith.constant 0 : i32
    %c0_i32_1 = arith.constant 0 : i32
    return %arg0, %c0_i32, %c0_i32_0 : i32, i32, i32
  }
  func.func @transform_2(%arg0: i32, %arg1: i32) -> (i32, i32) {
    %c0_i32 = arith.constant 0 : i32
    %c0_i32_0 = arith.constant 0 : i32
    %c0_i32_1 = arith.constant 0 : i32
    return %c0_i32, %c0_i32_0 : i32, i32
  }
  func.func @transform_3(%arg0: i32, %arg1: i32) -> (i32, i32, i32) {
    %c0_i32 = arith.constant 0 : i32
    %c0_i32_0 = arith.constant 0 : i32
    return %arg0, %arg1, %c0_i32 : i32, i32, i32
  }
  func.func @transform_4(%arg0: i32, %arg1: i32) -> (i32, i32, i32, i32) {
    %c0_i32 = arith.constant 0 : i32
    %c0_i32_0 = arith.constant 0 : i32
    %c0_i32_1 = arith.constant 0 : i32
    return %arg0, %arg1, %c0_i32, %c0_i32_0 : i32, i32, i32, i32
  }
}

module attributes {stable_mosaic.version = 11 : i64} {
  func.func @_bn_apply_relu_kernel(%arg0: i32, %arg1: memref<512x64xf32, #tpu.memory_space<vmem>>, %arg2: memref<2x64xf32, #tpu.memory_space<vmem>>, %arg3: memref<512x64xbf16, #tpu.memory_space<vmem>>) attributes {dimension_semantics = [#tpu.dimension_semantics<parallel>], iteration_bounds = array<i64: 1>, scalar_prefetch = 0 : i64, scratch_operands = 0 : i64, tpu.core_type = #tpu.core_type<tc>, window_params = [{transform_indices = @transform_0, window_bounds = array<i64: 512, 64>}, {pipeline_mode = #tpu.pipeline_mode<synchronous>, transform_indices = @transform_1, window_bounds = array<i64: 2, 64>}, {transform_indices = @transform_2, window_bounds = array<i64: 512, 64>}]} {
    %c0 = arith.constant 0 : index
    %c0_0 = arith.constant 0 : index
    %0 = vector.load %arg1[%c0, %c0_0] : memref<512x64xf32, #tpu.memory_space<vmem>>, vector<512x64xf32>
    %c0_1 = arith.constant 0 : index
    %c0_2 = arith.constant 0 : index
    %1 = vector.load %arg2[%c0_1, %c0_2] : memref<2x64xf32, #tpu.memory_space<vmem>>, vector<1x64xf32>
    %2 = vector.broadcast %1 : vector<1x64xf32> to vector<512x64xf32>
    %3 = arith.mulf %0, %2 : vector<512x64xf32>
    %c1 = arith.constant 1 : index
    %c0_3 = arith.constant 0 : index
    %4 = vector.load %arg2[%c1, %c0_3] : memref<2x64xf32, #tpu.memory_space<vmem>>, vector<1x64xf32>
    %5 = vector.broadcast %4 : vector<1x64xf32> to vector<512x64xf32>
    %6 = arith.addf %3, %5 : vector<512x64xf32>
    %cst = arith.constant 0.000000e+00 : f32
    %7 = vector.broadcast %cst : f32 to vector<512x64xf32>
    %8 = arith.maximumf %6, %7 : vector<512x64xf32>
    %9 = arith.truncf %8 : vector<512x64xf32> to vector<512x64xbf16>
    %c0_4 = arith.constant 0 : index
    %c0_5 = arith.constant 0 : index
    %10 = vector.load %arg3[%c0_4, %c0_5] : memref<512x64xbf16, #tpu.memory_space<vmem>>, vector<512x64xbf16>
    tpu.vector_store %arg3[%c0_4, %c0_5], %9 {strides = array<i32>} : memref<512x64xbf16, #tpu.memory_space<vmem>>, vector<512x64xbf16>,
    return
  }
  func.func @transform_0(%arg0: i32) -> (i32, i32) {
    %c0_i32 = arith.constant 0 : i32
    %c0_i32_0 = arith.constant 0 : i32
    return %arg0, %c0_i32 : i32, i32
  }
  func.func @transform_1(%arg0: i32) -> (i32, i32) {
    %c0_i32 = arith.constant 0 : i32
    %c0_i32_0 = arith.constant 0 : i32
    %c0_i32_1 = arith.constant 0 : i32
    return %c0_i32, %c0_i32_0 : i32, i32
  }
  func.func @transform_2(%arg0: i32) -> (i32, i32) {
    %c0_i32 = arith.constant 0 : i32
    %c0_i32_0 = arith.constant 0 : i32
    return %arg0, %c0_i32 : i32, i32
  }
}

module attributes {stable_mosaic.version = 11 : i64} {
  func.func @_matmul_bias_tanh_kernel(%arg0: i32, %arg1: memref<512x256xbf16, #tpu.memory_space<vmem>>, %arg2: memref<256x128xbf16, #tpu.memory_space<vmem>>, %arg3: memref<1x128xf32, #tpu.memory_space<vmem>>, %arg4: memref<512x128xf32, #tpu.memory_space<vmem>>) attributes {dimension_semantics = [#tpu.dimension_semantics<parallel>], iteration_bounds = array<i64: 1>, scalar_prefetch = 0 : i64, scratch_operands = 0 : i64, tpu.core_type = #tpu.core_type<tc>, window_params = [{transform_indices = @transform_0, window_bounds = array<i64: 512, 256>}, {pipeline_mode = #tpu.pipeline_mode<synchronous>, transform_indices = @transform_1, window_bounds = array<i64: 256, 128>}, {pipeline_mode = #tpu.pipeline_mode<synchronous>, transform_indices = @transform_2, window_bounds = array<i64: 1, 128>}, {transform_indices = @transform_3, window_bounds = array<i64: 512, 128>}]} {
    %c0 = arith.constant 0 : index
    %c0_0 = arith.constant 0 : index
    %0 = vector.load %arg1[%c0, %c0_0] : memref<512x256xbf16, #tpu.memory_space<vmem>>, vector<512x256xbf16>
    %c0_1 = arith.constant 0 : index
    %c0_2 = arith.constant 0 : index
    %1 = vector.load %arg2[%c0_1, %c0_2] : memref<256x128xbf16, #tpu.memory_space<vmem>>, vector<256x128xbf16>
    %cst = arith.constant dense<0.000000e+00> : vector<512x128xf32>
    %2 = tpu.matmul %0, %1, %cst {dimension_numbers = #tpu.dot_dimension_numbers<[1], [0], [0], [1], [0, 0, 1, 1], [], []>} : vector<512x256xbf16>, vector<256x128xbf16>, vector<512x128xf32> -> vector<512x128xf32>
    %c0_3 = arith.constant 0 : index
    %c0_4 = arith.constant 0 : index
    %3 = vector.load %arg3[%c0_3, %c0_4] : memref<1x128xf32, #tpu.memory_space<vmem>>, vector<1x128xf32>
    %4 = vector.broadcast %3 : vector<1x128xf32> to vector<512x128xf32>
    %5 = arith.addf %2, %4 : vector<512x128xf32>
    %6 = math.tanh %5 : vector<512x128xf32>
    %c0_5 = arith.constant 0 : index
    %c0_6 = arith.constant 0 : index
    %7 = vector.load %arg4[%c0_5, %c0_6] : memref<512x128xf32, #tpu.memory_space<vmem>>, vector<512x128xf32>
    tpu.vector_store %arg4[%c0_5, %c0_6], %6 {strides = array<i32>} : memref<512x128xf32, #tpu.memory_space<vmem>>, vector<512x128xf32>,
    return
  }
  func.func @transform_0(%arg0: i32) -> (i32, i32) {
    %c0_i32 = arith.constant 0 : i32
    %c0_i32_0 = arith.constant 0 : i32
    return %arg0, %c0_i32 : i32, i32
  }
  func.func @transform_1(%arg0: i32) -> (i32, i32) {
    %c0_i32 = arith.constant 0 : i32
    %c0_i32_0 = arith.constant 0 : i32
    %c0_i32_1 = arith.constant 0 : i32
    return %c0_i32, %c0_i32_0 : i32, i32
  }
  func.func @transform_2(%arg0: i32) -> (i32, i32) {
    %c0_i32 = arith.constant 0 : i32
    %c0_i32_0 = arith.constant 0 : i32
    %c0_i32_1 = arith.constant 0 : i32
    return %c0_i32, %c0_i32_0 : i32, i32
  }
  func.func @transform_3(%arg0: i32) -> (i32, i32) {
    %c0_i32 = arith.constant 0 : i32
    %c0_i32_0 = arith.constant 0 : i32
    return %arg0, %c0_i32 : i32, i32
  }
}

</mosaic_0001>

<llo_original>
// kernel: _lambda_.8
$region0: #{_lambda_.8}
  #allocation0 [shape = 'u32[]', space=smem, size = 0x4, offset = 0x4, fixed_abs, tag = 'smem constant byte address 0x4 - core index']
  #allocation1 [shape = 'u32[144,128]{1,0:T(1,128)}', space=vmem, size = 0x12000, scoped, tag = 'internal scratch']
  %s0 = inlined_call_operand.vmem [shape: f32[32,256], index: 0, kind: input, shape index: {}]
  %s1 = inlined_call_operand.vmem [shape: f32[2,256], index: 1, kind: input, shape index: {}]
  %s2 = inlined_call_operand.vmem [shape: bf16[32,256], index: 2, kind: output, shape index: {}]
  %s3 = sld [smem:[#allocation0]]
  $region18: #{_lambda_.8} parent=0
    _
  %s5 = ssub.s32 1, %s3
  %s6 = scalar_select 0, %s5, %s3
  // Predicated region
  $region2: #{_lambda_.8} parent=0 // pred_check
    _
  $region3: #{_lambda_.8} parent=0 // pred_check_branch
    %8 = sbr.rel (0) target = $region5
  $region4: #{_lambda_.8} parent=0 // pred_region
    _
  $region5: #{_lambda_.8} parent=0 // pred_fallthru
    _
  // Predicated region
  $region6: #{_lambda_.8} parent=0 // pred_check
    _
  $region7: #{_lambda_.8} parent=0 // pred_check_branch
    %10 = sbr.rel (0) target = $region9
  $region8: #{_lambda_.8} parent=0 // pred_region
    _
  $region9: #{_lambda_.8} parent=0 // pred_fallthru
    _
  %v11 = vld [vmem:[%s0] sm:$0xff]
  %v12 = vld [vmem:[%s0 + $0x8] sm:$0xff]
  %v13 = vld [vmem:[%s0 + $0x10] sm:$0xff]
  %v14 = vld [vmem:[%s0 + $0x18] sm:$0xff]
  %v15 = vld [vmem:[%s0 + $0x20] sm:$0xff]
  %v16 = vld [vmem:[%s0 + $0x28] sm:$0xff]
  %v17 = vld [vmem:[%s0 + $0x30] sm:$0xff]
  %v18 = vld [vmem:[%s0 + $0x38] sm:$0xff]
  %v19 = vld [vmem:[%s1] ss:$2 sm:$0x3]
  %v21 = vlaneseq
  %v22 = vshrl.u32 %v21, 7
  %v23 = vsub.s32 0, %v22
  %v24 = vrot.slane %v19, %v23
  %v25 = vlaneseq
  %v26 = vshrl.u32 %v25, 7
  %v27 = vsub.s32 1, %v26
  %v28 = vrot.slane %v19, %v27
  %v31 = vmul.f32 %v11, %v24
  %v32 = vmul.f32 %v12, %v28
  %v33 = vmul.f32 %v13, %v24
  %v34 = vmul.f32 %v14, %v28
  %v35 = vmul.f32 %v15, %v24
  %v36 = vmul.f32 %v16, %v28
  %v37 = vmul.f32 %v17, %v24
  %v38 = vmul.f32 %v18, %v28
  %s39 = scalar_lea.vmem %s1, 1
  %v40 = vld [vmem:[%s39] ss:$2 sm:$0x3]
  %v42 = vlaneseq
  %v43 = vshrl.u32 %v42, 7
  %v44 = vsub.s32 0, %v43
  %v45 = vrot.slane %v40, %v44
  %v46 = vlaneseq
  %v47 = vshrl.u32 %v46, 7
  %v48 = vsub.s32 1, %v47
  %v49 = vrot.slane %v40, %v48
  %v52 = vadd.f32 %v31, %v45
  %v53 = vadd.f32 %v32, %v49
  %v54 = vadd.f32 %v33, %v45
  %v55 = vadd.f32 %v34, %v49
  %v56 = vadd.f32 %v35, %v45
  %v57 = vadd.f32 %v36, %v49
  %v58 = vadd.f32 %v37, %v45
  %v59 = vadd.f32 %v38, %v49
  %v60 = vmax.f32 %v52, 0.0
  %v61 = vmax.f32 %v53, 0.0
  %v62 = vmax.f32 %v54, 0.0
  %v63 = vmax.f32 %v55, 0.0
  %v64 = vmax.f32 %v56, 0.0
  %v65 = vmax.f32 %v57, 0.0
  %v66 = vmax.f32 %v58, 0.0
  %v67 = vmax.f32 %v59, 0.0
  %v68 = vpack.c.bf16 %v62, %v60
  %v69 = vpack.c.bf16 %v63, %v61
  %v70 = vpack.c.bf16 %v66, %v64
  %v71 = vpack.c.bf16 %v67, %v65
  %v76 = vunpack.c.l.b16 %v68
  %v77 = vunpack.c.l.b16 %v69
  %v78 = vunpack.c.h.b16 %v68
  %v79 = vunpack.c.h.b16 %v69
  %v80 = vunpack.c.l.b16 %v70
  %v81 = vunpack.c.l.b16 %v71
  %v82 = vunpack.c.h.b16 %v70
  %v83 = vunpack.c.h.b16 %v71
  %v84 = vpack.c.b16 %v77, %v76
  %v85 = vpack.c.b16 %v79, %v78
  %v86 = vpack.c.b16 %v81, %v80
  %v87 = vpack.c.b16 %v83, %v82
  %92 = vst [vmem:[%s2] sm:$0xff] %v84
  %93 = vst [vmem:[%s2 + $0x8] sm:$0xff] %v85
  %94 = vst [vmem:[%s2 + $0x10] sm:$0xff] %v86
  %95 = vst [vmem:[%s2 + $0x18] sm:$0xff] %v87
  // Predicated region
  $region10: #{_lambda_.8} parent=0 // pred_check
    _
  $region11: #{_lambda_.8} parent=0 // pred_check_branch
    %97 = sbr.rel (0) target = $region13
  $region12: #{_lambda_.8} parent=0 // pred_region
    _
  $region13: #{_lambda_.8} parent=0 // pred_fallthru
    _
  // Predicated region
  $region14: #{_lambda_.8} parent=0 // pred_check
    _
  $region15: #{_lambda_.8} parent=0 // pred_check_branch
    %99 = sbr.rel (0) target = $region17
  $region16: #{_lambda_.8} parent=0 // pred_region
    _
  $region17: #{_lambda_.8} parent=0 // pred_fallthru
    _

// kernel: _lambda_.7
$region0: #{_lambda_.7}
  #allocation0 [shape = 'u32[]', space=smem, size = 0x4, offset = 0x4, fixed_abs, tag = 'smem constant byte address 0x4 - core index']
  #allocation1 [shape = 'u32[144,128]{1,0:T(1,128)}', space=vmem, size = 0x12000, scoped, tag = 'internal scratch']
  %s0 = inlined_call_operand.vmem [shape: bf16[2,32], index: 0, kind: input, shape index: {}]
  %s1 = inlined_call_operand.vmem [shape: bf16[32,4096], index: 1, kind: input, shape index: {}]
  %s2 = inlined_call_operand.vmem [shape: f32[1,4096], index: 2, kind: input, shape index: {}]
  %s3 = inlined_call_operand.vmem [shape: f32[2,4096], index: 3, kind: output, shape index: {0}]
  %s4 = inlined_call_operand.vmem [shape: f32[2,4096], index: 4, kind: output, shape index: {1}]
  %5 = xla_tuple %s3, %s4
  %s6 = sld [smem:[#allocation0]]
  $region76: #{_lambda_.7} parent=0
    _
  %s8 = ssub.s32 1, %s6
  %s9 = scalar_select 0, %s8, %s6
  $region1: #{_lambda_.7} parent=0
    #allocation2 [shape = 'u8[131072]{0}', space=vmem, size = 0x20000, scoped, tag = 'input window, operand 1']
    loop: start=0, step=1, limit=6
    $region2: #{_lambda_.7} parent=1 // loop_pre_header
      _
    $region3: #{_lambda_.7} parent=1 // loop_header
      %s11 = sphi 0, %s15
      %p12 = scmp.ge.s32.totalorder %s11, 6
      %s19 = sphi 0, %s19
      %s21 = sphi 0, %s19
      %s22 = sphi 0, %s21
      %s36 = sphi 0, %s22
      %s42 = sphi 0, %s44
      %s45 = sphi 0, %s42
      %s46 = sphi 0, %s45
      %s62 = sphi 0, %s46
      %s68 = sphi 0, %s70
      %s71 = sphi 0, %s68
      %s72 = sphi 0, %s71
      %s88 = sphi 0, %s72
      %s94 = sphi 0, %s96
      %s97 = sphi 0, %s94
      %s98 = sphi 0, %s97
      %s114 = sphi 0, %s98
      %s120 = sphi 0, %s122
      %s123 = sphi 0, %s120
      %s124 = sphi 0, %s123
      %s140 = sphi 0, %s124
    $region4: #{_lambda_.7} parent=1 // loop_header_branch
      %14 = sbr.rel (%p12) target = $region8
    $region5: #{_lambda_.7} parent=1 // loop_body
      %s16 = ssub.s32 %s11, 1
      %s17 = ssub.s32 %s11, 2
      %s18 = sadd.s32 %s11, 1
      %s20 = sadd.s32 %s19, 1
      %p23 = scmp.eq.s32.totalorder %s11, 3
      %p24 = scmp.ne.s32.totalorder %s19, %s21
      %p25 = scmp.eq.s32.totalorder %s11, 0
      %p26 = por %p24, %p25
      %p27 = scmp.ne.s32.totalorder %s19, %s21
      %p28 = scmp.eq.s32.totalorder %s16, 3
      %p29 = por %p27, %p28
      %p30 = scmp.ne.s32.totalorder %s21, %s22
      %p31 = scmp.eq.s32.totalorder %s16, 0
      %p32 = por %p30, %p31
      %p33 = scmp.ne.s32.totalorder %s21, %s22
      %p34 = scmp.eq.s32.totalorder %s17, 3
      %p35 = por %p33, %p34
      %p37 = scmp.ne.s32.totalorder %s22, %s36
      %p38 = scmp.eq.s32.totalorder %s17, 0
      %p39 = por %p37, %p38
      %s40 = ssub.s32 %s11, %s18
      %p41 = scmp.eq.s32.totalorder %s40, 0
      %s43 = sadd.s32 %s42, 1
      %s44 = scalar_select %p41, %s42, %s43
      %p47 = pneg %p41
      %p48 = scmp.eq.s32.totalorder %s11, 3
      %p49 = por %p47, %p48
      %p50 = scmp.ne.s32.totalorder %s42, %s45
      %p51 = scmp.eq.s32.totalorder %s11, 0
      %p52 = por %p50, %p51
      %p53 = scmp.ne.s32.totalorder %s42, %s45
      %p54 = scmp.eq.s32.totalorder %s16, 3
      %p55 = por %p53, %p54
      %p56 = scmp.ne.s32.totalorder %s45, %s46
      %p57 = scmp.eq.s32.totalorder %s16, 0
      %p58 = por %p56, %p57
      %p59 = scmp.ne.s32.totalorder %s45, %s46
      %p60 = scmp.eq.s32.totalorder %s17, 3
      %p61 = por %p59, %p60
      %p63 = scmp.ne.s32.totalorder %s46, %s62
      %p64 = scmp.eq.s32.totalorder %s17, 0
      %p65 = por %p63, %p64
      %s66 = ssub.s32 %s11, %s18
      %p67 = scmp.eq.s32.totalorder %s66, 0
      %s69 = sadd.s32 %s68, 1
      %s70 = scalar_select %p67, %s68, %s69
      %p73 = pneg %p67
      %p74 = scmp.eq.s32.totalorder %s11, 3
      %p75 = por %p73, %p74
      %p76 = scmp.ne.s32.totalorder %s68, %s71
      %p77 = scmp.eq.s32.totalorder %s11, 0
      %p78 = por %p76, %p77
      %p79 = scmp.ne.s32.totalorder %s68, %s71
      %p80 = scmp.eq.s32.totalorder %s16, 3
      %p81 = por %p79, %p80
      %p82 = scmp.ne.s32.totalorder %s71, %s72
      %p83 = scmp.eq.s32.totalorder %s16, 0
      %p84 = por %p82, %p83
      %p85 = scmp.ne.s32.totalorder %s71, %s72
      %p86 = scmp.eq.s32.totalorder %s17, 3
      %p87 = por %p85, %p86
      %p89 = scmp.ne.s32.totalorder %s72, %s88
      %p90 = scmp.eq.s32.totalorder %s17, 0
      %p91 = por %p89, %p90
      %s92 = ssub.s32 %s11, %s18
      %p93 = scmp.eq.s32.totalorder %s92, 0
      %s95 = sadd.s32 %s94, 1
      %s96 = scalar_select %p93, %s94, %s95
      %p99 = pneg %p93
      %p100 = scmp.eq.s32.totalorder %s11, 3
      %p101 = por %p99, %p100
      %p102 = scmp.ne.s32.totalorder %s94, %s97
      %p103 = scmp.eq.s32.totalorder %s11, 0
      %p104 = por %p102, %p103
      %p105 = scmp.ne.s32.totalorder %s94, %s97
      %p106 = scmp.eq.s32.totalorder %s16, 3
      %p107 = por %p105, %p106
      %p108 = scmp.ne.s32.totalorder %s97, %s98
      %p109 = scmp.eq.s32.totalorder %s16, 0
      %p110 = por %p108, %p109
      %p111 = scmp.ne.s32.totalorder %s97, %s98
      %p112 = scmp.eq.s32.totalorder %s17, 3
      %p113 = por %p111, %p112
      %p115 = scmp.ne.s32.totalorder %s98, %s114
      %p116 = scmp.eq.s32.totalorder %s17, 0
      %p117 = por %p115, %p116
      %s118 = ssub.s32 %s11, %s18
      %p119 = scmp.eq.s32.totalorder %s118, 0
      %s121 = sadd.s32 %s120, 1
      %s122 = scalar_select %p119, %s120, %s121
      %p125 = pneg %p119
      %p126 = scmp.eq.s32.totalorder %s11, 3
      %p127 = por %p125, %p126
      %p128 = scmp.ne.s32.totalorder %s120, %s123
      %p129 = scmp.eq.s32.totalorder %s11, 0
      %p130 = por %p128, %p129
      %p131 = scmp.ne.s32.totalorder %s120, %s123
      %p132 = scmp.eq.s32.totalorder %s16, 3
      %p133 = por %p131, %p132
      %p134 = scmp.ne.s32.totalorder %s123, %s124
      %p135 = scmp.eq.s32.totalorder %s16, 0
      %p136 = por %p134, %p135
      %p137 = scmp.ne.s32.totalorder %s123, %s124
      %p138 = scmp.eq.s32.totalorder %s17, 3
      %p139 = por %p137, %p138
      %p141 = scmp.ne.s32.totalorder %s124, %s140
      %p142 = scmp.eq.s32.totalorder %s17, 0
      %p143 = por %p141, %p142
      %p144 = scmp.le.s32.totalorder 1, %s11
      %p145 = scmp.lt.s32.totalorder %s11, 5
      %p146 = pnand %p144, %p145
      %p147 = pneg %p146
      // Predicated region
      $region9: #{_lambda_.7} parent=5 // pred_check
        _
      $region10: #{_lambda_.7} parent=5 // pred_check_branch
        %149 = sbr.rel (%p146) target = $region12
      $region11: #{_lambda_.7} parent=5 // pred_region
        %s150 = ssub.s32 %s11, 1
        // Predicated region
        $region13: #{_lambda_.7} parent=11 // pred_check
          %p151 = pneg %p32
        $region14: #{_lambda_.7} parent=11 // pred_check_branch
          %153 = sbr.rel (%p151) target = $region16
        $region15: #{_lambda_.7} parent=11 // pred_region
          _
        $region16: #{_lambda_.7} parent=11 // pred_fallthru
          _
      $region12: #{_lambda_.7} parent=5 // pred_fallthru
        _
      %p154 = scmp.lt.s32.totalorder %s11, 4
      // Predicated region
      $region17: #{_lambda_.7} parent=5 // pred_check
        %p155 = pneg %p154
      $region18: #{_lambda_.7} parent=5 // pred_check_branch
        %157 = sbr.rel (%p155) target = $region20
      $region19: #{_lambda_.7} parent=5 // pred_region
        // Predicated region
        $region21: #{_lambda_.7} parent=19 // pred_check
          %p158 = pneg %p52
        $region22: #{_lambda_.7} parent=19 // pred_check_branch
          %160 = sbr.rel (%p158) target = $region24
        $region23: #{_lambda_.7} parent=19 // pred_region
          %s161 = sand.u32 %s42, 1
          %s162 = sand.u32 %s42, 1
          %s163 = smul.addr %s162, 128
          %s164 = scalar_lea.vmem [#allocation2], %s163
          %s165 = smul.u32 8, %s11
          %s166 = smul.addr %s165, 4
          %s167 = scalar_lea.vmem %s1, %s166
          // Predicated region
          $region25: #{_lambda_.7} parent=23 // pred_check
            _
          $region26: #{_lambda_.7} parent=23 // pred_check_branch
            %169 = sbr.rel (0) target = $region28
          $region27: #{_lambda_.7} parent=23 // pred_region
            // Predicated region
            $region29: #{_lambda_.7} parent=27 // pred_check
              _
            $region30: #{_lambda_.7} parent=27 // pred_check_branch
              %171 = sbr.rel (0) target = $region32
            $region31: #{_lambda_.7} parent=27 // pred_region
              loop: start=0, step=1, limit=1
              $region33: #{_lambda_.7} parent=31 // loop_pre_header
                _
              $region34: #{_lambda_.7} parent=31 // loop_header
                %s173 = sphi 0, %s177
                %p174 = scmp.ge.s32.totalorder %s173, 1
                %s178 = sphi %s167, %s167
                %s179 = sphi %s164, %s164
              $region35: #{_lambda_.7} parent=31 // loop_header_branch
                %176 = sbr.rel (%p174) target = $region39
              $region36: #{_lambda_.7} parent=31 // loop_body
                %v180 = vld [vmem:[%s178] sm:$0xff]
                %181 = vst [vmem:[%s179] sm:$0xff] %v180
                %v182 = vld [vmem:[%s178 + $0x8] sm:$0xff]
                %183 = vst [vmem:[%s179 + $0x8] sm:$0xff] %v182
                %v184 = vld [vmem:[%s178 + $0x10] sm:$0xff]
                %185 = vst [vmem:[%s179 + $0x10] sm:$0xff] %v184
                %v186 = vld [vmem:[%s178 + $0x18] sm:$0xff]
                %187 = vst [vmem:[%s179 + $0x18] sm:$0xff] %v186
                %v188 = vld [vmem:[%s178 + $0x80] sm:$0xff]
                %189 = vst [vmem:[%s179 + $0x20] sm:$0xff] %v188
                %v190 = vld [vmem:[%s178 + $0x88] sm:$0xff]
                %191 = vst [vmem:[%s179 + $0x28] sm:$0xff] %v190
                %v192 = vld [vmem:[%s178 + $0x90] sm:$0xff]
                %193 = vst [vmem:[%s179 + $0x30] sm:$0xff] %v192
                %v194 = vld [vmem:[%s178 + $0x98] sm:$0xff]
                %195 = vst [vmem:[%s179 + $0x38] sm:$0xff] %v194
                %v196 = vld [vmem:[%s178 + $0x100] sm:$0xff]
                %197 = vst [vmem:[%s179 + $0x40] sm:$0xff] %v196
                %v198 = vld [vmem:[%s178 + $0x108] sm:$0xff]
                %199 = vst [vmem:[%s179 + $0x48] sm:$0xff] %v198
                %v200 = vld [vmem:[%s178 + $0x110] sm:$0xff]
                %201 = vst [vmem:[%s179 + $0x50] sm:$0xff] %v200
                %v202 = vld [vmem:[%s178 + $0x118] sm:$0xff]
                %203 = vst [vmem:[%s179 + $0x58] sm:$0xff] %v202
                %v204 = vld [vmem:[%s178 + $0x180] sm:$0xff]
                %205 = vst [vmem:[%s179 + $0x60] sm:$0xff] %v204
                %v206 = vld [vmem:[%s178 + $0x188] sm:$0xff]
                %207 = vst [vmem:[%s179 + $0x68] sm:$0xff] %v206
                %v208 = vld [vmem:[%s178 + $0x190] sm:$0xff]
                %209 = vst [vmem:[%s179 + $0x70] sm:$0xff] %v208
                %v210 = vld [vmem:[%s178 + $0x198] sm:$0xff]
                %211 = vst [vmem:[%s179 + $0x78] sm:$0xff] %v210
              $region37: #{_lambda_.7} parent=31 // loop_footer
                %s177 = sadd.s32 1, %s173
              $region38: #{_lambda_.7} parent=31 // loop_footer_branch
                %172 = sbr.rel target = $region34
              $region39: #{_lambda_.7} parent=31 // loop_exit
                _
            $region32: #{_lambda_.7} parent=27 // pred_fallthru
              _
            // Predicated region
            $region40: #{_lambda_.7} parent=27 // pred_check
              _
            $region41: #{_lambda_.7} parent=27 // pred_check_branch
              %213 = sbr.rel target = $region43
            $region42: #{_lambda_.7} parent=27 // pred_region
              _
            $region43: #{_lambda_.7} parent=27 // pred_fallthru
              _
          $region28: #{_lambda_.7} parent=23 // pred_fallthru
            _
          %214 = vnop
        $region24: #{_lambda_.7} parent=19 // pred_fallthru
          _
        // Predicated region
        $region44: #{_lambda_.7} parent=19 // pred_check
          %p215 = pneg %p78
        $region45: #{_lambda_.7} parent=19 // pred_check_branch
          %217 = sbr.rel (%p215) target = $region47
        $region46: #{_lambda_.7} parent=19 // pred_region
          %s218 = smul.u32 8, %s11
          %p219 = scmp.lt.s32.totalorder %s218, 31
          %s220 = scalar_select %p219, %s218, 31
          %s221 = scalar_lea.vmem %s2, %s220
          %s222 = smul.u32 8, %s11
        $region47: #{_lambda_.7} parent=19 // pred_fallthru
          _
      $region20: #{_lambda_.7} parent=5 // pred_fallthru
        _
      %p223 = scmp.le.s32.totalorder 1, %s11
      %p224 = scmp.lt.s32.totalorder %s11, 5
      %p225 = pnand %p223, %p224
      %p226 = pneg %p225
      // Predicated region
      $region48: #{_lambda_.7} parent=5 // pred_check
        _
      $region49: #{_lambda_.7} parent=5 // pred_check_branch
        %228 = sbr.rel (%p225) target = $region51
      $region50: #{_lambda_.7} parent=5 // pred_region
        %s229 = ssub.s32 %s11, 1
        %s230 = sand.u32 %s45, 1
        %s231 = sand.u32 %s45, 1
        %s232 = smul.addr %s231, 128
        %s233 = scalar_lea.vmem [#allocation2], %s232
        // Predicated region
        $region52: #{_lambda_.7} parent=50 // pred_check
          %p234 = pneg %p58
        $region53: #{_lambda_.7} parent=50 // pred_check_branch
          %236 = sbr.rel (%p234) target = $region55
        $region54: #{_lambda_.7} parent=50 // pred_region
          _
        $region55: #{_lambda_.7} parent=50 // pred_fallthru
          _
        %p237 = pneg %p32
        %p238 = pneg %p29
        %s239 = sand.u32 %s45, 1
        %s240 = sand.u32 %s45, 1
        %s241 = smul.addr %s240, 128
        %s242 = scalar_lea.vmem [#allocation2], %s241
        %p243 = pneg %p58
        %p244 = pneg %p55
        %s245 = smul.u32 8, %s16
        %p246 = scmp.lt.s32.totalorder %s245, 31
        %s247 = scalar_select %p246, %s245, 31
        %s248 = scalar_lea.vmem %s2, %s247
        %p249 = pneg %p84
        %p250 = pneg %p81
        %p251 = pneg %p110
        %p252 = pneg %p107
        %s253 = smul.u32 8, %s16
        %p254 = scmp.lt.s32.totalorder %s253, 31
        %s255 = scalar_select %p254, %s253, 31
        %s256 = smul.addr %s255, 2
        %s257 = scalar_lea.vmem %s3, %s256
        %p258 = pneg %p136
        %p259 = pneg %p133
        %s260 = smul.u32 8, %s16
        %p261 = scmp.lt.s32.totalorder %s260, 31
        %s262 = scalar_select %p261, %s260, 31
        %s263 = smul.addr %s262, 2
        %s264 = scalar_lea.vmem %s4, %s263
        %s265 = smul.u32 8, %s16
        %s266 = smul.u32 8, %s16
        %p267 = scmp.lt.s32.totalorder %s266, 31
        %s268 = scalar_select %p267, %s266, 31
        %s269 = scalar_lea.vmem %s2, %s268
        %s270 = smul.u32 8, %s16
        %s271 = smul.u32 8, %s16
        %p272 = scmp.lt.s32.totalorder %s271, 31
        %s273 = scalar_select %p272, %s271, 31
        %s274 = smul.addr %s273, 2
        %s275 = scalar_lea.vmem %s3, %s274
        %s276 = smul.u32 8, %s16
        %s277 = smul.u32 8, %s16
        %p278 = scmp.lt.s32.totalorder %s277, 31
        %s279 = scalar_select %p278, %s277, 31
        %s280 = smul.addr %s279, 2
        %s281 = scalar_lea.vmem %s4, %s280
        %s282 = smul.u32 8, %s16
        %v284 = vld [vmem:[%s0] sm:$0x1]
        %v285 = vld [vmem:[%s233] sm:$0xff]
        %v286 = vld [vmem:[%s233 + $0x8] sm:$0xff]
        %v287 = vld [vmem:[%s233 + $0x10] sm:$0xff]
        %v288 = vld [vmem:[%s233 + $0x18] sm:$0xff]
        %v289 = vld [vmem:[%s233 + $0x20] sm:$0xff]
        %v290 = vld [vmem:[%s233 + $0x28] sm:$0xff]
        %v291 = vld [vmem:[%s233 + $0x30] sm:$0xff]
        %v292 = vld [vmem:[%s233 + $0x38] sm:$0xff]
        %v293 = vld [vmem:[%s233 + $0x40] sm:$0xff]
        %v294 = vld [vmem:[%s233 + $0x48] sm:$0xff]
        %v295 = vld [vmem:[%s233 + $0x50] sm:$0xff]
        %v296 = vld [vmem:[%s233 + $0x58] sm:$0xff]
        %v297 = vld [vmem:[%s233 + $0x60] sm:$0xff]
        %v298 = vld [vmem:[%s233 + $0x68] sm:$0xff]
        %v299 = vld [vmem:[%s233 + $0x70] sm:$0xff]
        %v300 = vld [vmem:[%s233 + $0x78] sm:$0xff]
        %v301 = vld [vmem:[%s269] sm:$0xff]
        %v303 = vlaneseq
        %v304 = vshrl.u32 %v303, 7
        %v305 = vsub.s32 0, %v304
        %v306 = vrot.slane %v301, %v305
        %v307 = vlaneseq
        %v308 = vshrl.u32 %v307, 7
        %v309 = vsub.s32 1, %v308
        %v310 = vrot.slane %v301, %v309
        %v311 = vlaneseq
        %v312 = vshrl.u32 %v311, 7
        %v313 = vsub.s32 2, %v312
        %v314 = vrot.slane %v301, %v313
        %v315 = vlaneseq
        %v316 = vshrl.u32 %v315, 7
        %v317 = vsub.s32 3, %v316
        %v318 = vrot.slane %v301, %v317
        %v319 = vlaneseq
        %v320 = vshrl.u32 %v319, 7
        %v321 = vsub.s32 4, %v320
        %v322 = vrot.slane %v301, %v321
        %v323 = vlaneseq
        %v324 = vshrl.u32 %v323, 7
        %v325 = vsub.s32 5, %v324
        %v326 = vrot.slane %v301, %v325
        %v327 = vlaneseq
        %v328 = vshrl.u32 %v327, 7
        %v329 = vsub.s32 6, %v328
        %v330 = vrot.slane %v301, %v329
        %v331 = vlaneseq
        %v332 = vshrl.u32 %v331, 7
        %v333 = vsub.s32 7, %v332
        %v334 = vrot.slane %v301, %v333
        %v359 = vunpack.c.l.b16 %v285
        %v360 = vunpack.c.h.b16 %v285
        %v361 = vunpack.c.l.b16 %v286
        %v362 = vunpack.c.h.b16 %v286
        %v363 = vunpack.c.l.b16 %v287
        %v364 = vunpack.c.h.b16 %v287
        %v365 = vunpack.c.l.b16 %v288
        %v366 = vunpack.c.h.b16 %v288
        %v367 = vunpack.c.l.b16 %v289
        %v368 = vunpack.c.h.b16 %v289
        %v369 = vunpack.c.l.b16 %v290
        %v370 = vunpack.c.h.b16 %v290
        %v371 = vunpack.c.l.b16 %v291
        %v372 = vunpack.c.h.b16 %v291
        %v373 = vunpack.c.l.b16 %v292
        %v374 = vunpack.c.h.b16 %v292
        %v375 = vunpack.c.l.b16 %v293
        %v376 = vunpack.c.h.b16 %v293
        %v377 = vunpack.c.l.b16 %v294
        %v378 = vunpack.c.h.b16 %v294
        %v379 = vunpack.c.l.b16 %v295
        %v380 = vunpack.c.h.b16 %v295
        %v381 = vunpack.c.l.b16 %v296
        %v382 = vunpack.c.h.b16 %v296
        %v383 = vunpack.c.l.b16 %v297
        %v384 = vunpack.c.h.b16 %v297
        %v385 = vunpack.c.l.b16 %v298
        %v386 = vunpack.c.h.b16 %v298
        %v387 = vunpack.c.l.b16 %v299
        %v388 = vunpack.c.h.b16 %v299
        %v389 = vunpack.c.l.b16 %v300
        %v390 = vunpack.c.h.b16 %v300
        %v391 = vpack.c.b16 %v367, %v359
        %v392 = vpack.c.b16 %v368, %v360
        %v393 = vpack.c.b16 %v369, %v361
        %v394 = vpack.c.b16 %v370, %v362
        %v395 = vpack.c.b16 %v371, %v363
        %v396 = vpack.c.b16 %v372, %v364
        %v397 = vpack.c.b16 %v373, %v365
        %v398 = vpack.c.b16 %v374, %v366
        %v399 = vpack.c.b16 %v383, %v375
        %v400 = vpack.c.b16 %v384, %v376
        %v401 = vpack.c.b16 %v385, %v377
        %v402 = vpack.c.b16 %v386, %v378
        %v403 = vpack.c.b16 %v387, %v379
        %v404 = vpack.c.b16 %v388, %v380
        %v405 = vpack.c.b16 %v389, %v381
        %v406 = vpack.c.b16 %v390, %v382
        %vm423 = vcmask 261120
        %v425 = vsel %vm423, %v284, 0
        %427 = vmatprep.subr.bf16.mxu0 %v392
        %428 = vmatpush1.bf16.msra.mxu0 %v391
        %429 = vmatprep.subr.bf16.mxu0 %v400
        %430 = vmatpush1.bf16.msra.mxu0 %v399
        %431 = vmatprep.subr.bf16.mxu0 0
        %432 = vmatpush1.bf16.msra.mxu0 0
        %433 = vmatprep.subr.bf16.mxu0 0
        %434 = vmatpush1.bf16.msra.mxu0 0
        %435 = vmatprep.subr.bf16.mxu0 0
        %436 = vmatpush1.bf16.msra.mxu0 0
        %437 = vmatprep.subr.bf16.mxu0 0
        %438 = vmatpush1.bf16.msra.mxu0 0
        %439 = vmatprep.subr.bf16.mxu0 0
        %440 = vmatpush1.bf16.msra.mxu0 0
        %441 = vmatprep.subr.bf16.mxu0 0
        %442 = vmatpush1.bf16.msra.mxu0 0
        %443 = vmatprep.subr.bf16.mxu0 0
        %444 = vmatpush1.bf16.msra.mxu0 0
        %445 = vmatprep.subr.bf16.mxu0 0
        %446 = vmatpush1.bf16.msra.mxu0 0
        %447 = vmatprep.subr.bf16.mxu0 0
        %448 = vmatpush1.bf16.msra.mxu0 0
        %449 = vmatprep.subr.bf16.mxu0 0
        %450 = vmatpush1.bf16.msra.mxu0 0
        %451 = vmatprep.subr.bf16.mxu0 0
        %452 = vmatpush1.bf16.msra.mxu0 0
        %453 = vmatprep.subr.bf16.mxu0 0
        %454 = vmatpush1.bf16.msra.mxu0 0
        %455 = vmatprep.subr.bf16.mxu0 0
        %456 = vmatpush1.bf16.msra.mxu0 0
        %457 = vmatprep.subr.bf16.mxu0 0
        %458 = vmatpush1.bf16.msra.mxu0 0
        %459 = vmatprep.mubr.bf16.mxu0 0
        %460 = vmatmul.mubr.bf16.gmra.mrb[0].mxu0 %v425
        %v461 = vpop.f32.mrb[0].mxu0
        %v462 = vadd.f32 %v306, %v461
        %v463 = vpop.f32.mrb[0].mxu0
        %v464 = vadd.f32 %v310, %v463
        %v465 = vpop.f32.mrb[0].mxu0
        %v466 = vpop.f32.mrb[0].mxu0
        %467 = vdwg.mxu0
        %468 = vmatprep.subr.bf16.mxu0 %v394
        %469 = vmatpush1.bf16.msra.mxu0 %v393
        %470 = vmatprep.subr.bf16.mxu0 %v402
        %471 = vmatpush1.bf16.msra.mxu0 %v401
        %472 = vmatprep.subr.bf16.mxu0 0
        %473 = vmatpush1.bf16.msra.mxu0 0
        %474 = vmatprep.subr.bf16.mxu0 0
        %475 = vmatpush1.bf16.msra.mxu0 0
        %476 = vmatprep.subr.bf16.mxu0 0
        %477 = vmatpush1.bf16.msra.mxu0 0
        %478 = vmatprep.subr.bf16.mxu0 0
        %479 = vmatpush1.bf16.msra.mxu0 0
        %480 = vmatprep.subr.bf16.mxu0 0
        %481 = vmatpush1.bf16.msra.mxu0 0
        %482 = vmatprep.subr.bf16.mxu0 0
        %483 = vmatpush1.bf16.msra.mxu0 0
        %484 = vmatprep.subr.bf16.mxu0 0
        %485 = vmatpush1.bf16.msra.mxu0 0
        %486 = vmatprep.subr.bf16.mxu0 0
        %487 = vmatpush1.bf16.msra.mxu0 0
        %488 = vmatprep.subr.bf16.mxu0 0
        %489 = vmatpush1.bf16.msra.mxu0 0
        %490 = vmatprep.subr.bf16.mxu0 0
        %491 = vmatpush1.bf16.msra.mxu0 0
        %492 = vmatprep.subr.bf16.mxu0 0
        %493 = vmatpush1.bf16.msra.mxu0 0
        %494 = vmatprep.subr.bf16.mxu0 0
        %495 = vmatpush1.bf16.msra.mxu0 0
        %496 = vmatprep.subr.bf16.mxu0 0
        %497 = vmatpush1.bf16.msra.mxu0 0
        %498 = vmatprep.subr.bf16.mxu0 0
        %499 = vmatpush1.bf16.msra.mxu0 0
        %500 = vmatprep.mubr.bf16.mxu0 0
        %501 = vmatmul.mubr.bf16.gmra.mrb[0].mxu0 %v425
        %v502 = vpop.f32.mrb[0].mxu0
        %v503 = vadd.f32 %v314, %v502
        %v504 = vpop.f32.mrb[0].mxu0
        %v505 = vadd.f32 %v318, %v504
        %v506 = vpop.f32.mrb[0].mxu0
        %v507 = vpop.f32.mrb[0].mxu0
        %508 = vdwg.mxu0
        %509 = vmatprep.subr.bf16.mxu0 %v396
        %510 = vmatpush1.bf16.msra.mxu0 %v395
        %511 = vmatprep.subr.bf16.mxu0 %v404
        %512 = vmatpush1.bf16.msra.mxu0 %v403
        %513 = vmatprep.subr.bf16.mxu0 0
        %514 = vmatpush1.bf16.msra.mxu0 0
        %515 = vmatprep.subr.bf16.mxu0 0
        %516 = vmatpush1.bf16.msra.mxu0 0
        %517 = vmatprep.subr.bf16.mxu0 0
        %518 = vmatpush1.bf16.msra.mxu0 0
        %519 = vmatprep.subr.bf16.mxu0 0
        %520 = vmatpush1.bf16.msra.mxu0 0
        %521 = vmatprep.subr.bf16.mxu0 0
        %522 = vmatpush1.bf16.msra.mxu0 0
        %523 = vmatprep.subr.bf16.mxu0 0
        %524 = vmatpush1.bf16.msra.mxu0 0
        %525 = vmatprep.subr.bf16.mxu0 0
        %526 = vmatpush1.bf16.msra.mxu0 0
        %527 = vmatprep.subr.bf16.mxu0 0
        %528 = vmatpush1.bf16.msra.mxu0 0
        %529 = vmatprep.subr.bf16.mxu0 0
        %530 = vmatpush1.bf16.msra.mxu0 0
        %531 = vmatprep.subr.bf16.mxu0 0
        %532 = vmatpush1.bf16.msra.mxu0 0
        %533 = vmatprep.subr.bf16.mxu0 0
        %534 = vmatpush1.bf16.msra.mxu0 0
        %535 = vmatprep.subr.bf16.mxu0 0
        %536 = vmatpush1.bf16.msra.mxu0 0
        %537 = vmatprep.subr.bf16.mxu0 0
        %538 = vmatpush1.bf16.msra.mxu0 0
        %539 = vmatprep.subr.bf16.mxu0 0
        %540 = vmatpush1.bf16.msra.mxu0 0
        %541 = vmatprep.mubr.bf16.mxu0 0
        %542 = vmatmul.mubr.bf16.gmra.mrb[0].mxu0 %v425
        %v543 = vpop.f32.mrb[0].mxu0
        %v544 = vadd.f32 %v322, %v543
        %v545 = vpop.f32.mrb[0].mxu0
        %v546 = vadd.f32 %v326, %v545
        %v547 = vpop.f32.mrb[0].mxu0
        %v548 = vpop.f32.mrb[0].mxu0
        %549 = vdwg.mxu0
        %550 = vmatprep.subr.bf16.mxu0 %v398
        %551 = vmatpush1.bf16.msra.mxu0 %v397
        %552 = vmatprep.subr.bf16.mxu0 %v406
        %553 = vmatpush1.bf16.msra.mxu0 %v405
        %554 = vmatprep.subr.bf16.mxu0 0
        %555 = vmatpush1.bf16.msra.mxu0 0
        %556 = vmatprep.subr.bf16.mxu0 0
        %557 = vmatpush1.bf16.msra.mxu0 0
        %558 = vmatprep.subr.bf16.mxu0 0
        %559 = vmatpush1.bf16.msra.mxu0 0
        %560 = vmatprep.subr.bf16.mxu0 0
        %561 = vmatpush1.bf16.msra.mxu0 0
        %562 = vmatprep.subr.bf16.mxu0 0
        %563 = vmatpush1.bf16.msra.mxu0 0
        %564 = vmatprep.subr.bf16.mxu0 0
        %565 = vmatpush1.bf16.msra.mxu0 0
        %566 = vmatprep.subr.bf16.mxu0 0
        %567 = vmatpush1.bf16.msra.mxu0 0
        %568 = vmatprep.subr.bf16.mxu0 0
        %569 = vmatpush1.bf16.msra.mxu0 0
        %570 = vmatprep.subr.bf16.mxu0 0
        %571 = vmatpush1.bf16.msra.mxu0 0
        %572 = vmatprep.subr.bf16.mxu0 0
        %573 = vmatpush1.bf16.msra.mxu0 0
        %574 = vmatprep.subr.bf16.mxu0 0
        %575 = vmatpush1.bf16.msra.mxu0 0
        %576 = vmatprep.subr.bf16.mxu0 0
        %577 = vmatpush1.bf16.msra.mxu0 0
        %578 = vmatprep.subr.bf16.mxu0 0
        %579 = vmatpush1.bf16.msra.mxu0 0
        %580 = vmatprep.subr.bf16.mxu0 0
        %581 = vmatpush1.bf16.msra.mxu0 0
        %582 = vmatprep.mubr.bf16.mxu0 0
        %583 = vmatmul.mubr.bf16.gmra.mrb[0].mxu0 %v425
        %v584 = vpop.f32.mrb[0].mxu0
        %v585 = vadd.f32 %v330, %v584
        %v586 = vpop.f32.mrb[0].mxu0
        %v587 = vadd.f32 %v334, %v586
        %v588 = vpop.f32.mrb[0].mxu0
        %v589 = vpop.f32.mrb[0].mxu0
        %590 = vdwg.mxu0
        %v599 = vcombine.low %v462, %v464
        %v600 = vcombine.low %v503, %v505
        %v602 = vunpack.c.l.s4 1983009808
        %v603 = vunpack.c.0.s8 %v602
        %v604 = vlaneseq
        %v605 = vshrl.u32 %v604, 7
        %v606 = vsub.s32 %v603, %v605
        %v607 = vrot.slane %v599, %v606
        %v609 = vunpack.c.l.s4 1983009808
        %v610 = vunpack.c.0.s8 %v609
        %v611 = vlaneseq
        %v612 = vshrl.u32 %v611, 7
        %v613 = vsub.s32 %v610, %v612
        %v614 = vrot.slane %v600, %v613
        %v615 = vcombine.low %v607, %v614
        %v616 = vcombine.low %v544, %v546
        %v617 = vcombine.low %v585, %v587
        %v619 = vunpack.c.l.s4 1983009808
        %v620 = vunpack.c.0.s8 %v619
        %v621 = vlaneseq
        %v622 = vshrl.u32 %v621, 7
        %v623 = vsub.s32 %v620, %v622
        %v624 = vrot.slane %v616, %v623
        %v626 = vunpack.c.l.s4 1983009808
        %v627 = vunpack.c.0.s8 %v626
        %v628 = vlaneseq
        %v629 = vshrl.u32 %v628, 7
        %v630 = vsub.s32 %v627, %v629
        %v631 = vrot.slane %v617, %v630
        %v632 = vcombine.low %v624, %v631
        %635 = vst [vmem:[%s275] sm:$0xff] %v615
        %636 = vst [vmem:[%s275 + $0x8] sm:$0xff] %v632
        %vm637 = vcmask 1041408
        %v638 = vsel %vm637, %v462, 0.0
        %v639 = vrot.slane %v638, 4
        %v640 = vadd.f32 %v638, %v639
        %v641 = vrot.slane %v640, 2
        %v642 = vadd.f32 %v640, %v641
        %v643 = vrot.slane %v642, 1
        %v644 = vadd.f32 %v642, %v643
        %v645 = vsel %vm637, %v464, 0.0
        %v646 = vrot.slane %v645, 4
        %v647 = vadd.f32 %v645, %v646
        %v648 = vrot.slane %v647, 2
        %v649 = vadd.f32 %v647, %v648
        %v650 = vrot.slane %v649, 1
        %v651 = vadd.f32 %v649, %v650
        %v652 = vsel %vm637, %v503, 0.0
        %v653 = vrot.slane %v652, 4
        %v654 = vadd.f32 %v652, %v653
        %v655 = vrot.slane %v654, 2
        %v656 = vadd.f32 %v654, %v655
        %v657 = vrot.slane %v656, 1
        %v658 = vadd.f32 %v656, %v657
        %v659 = vsel %vm637, %v505, 0.0
        %v660 = vrot.slane %v659, 4
        %v661 = vadd.f32 %v659, %v660
        %v662 = vrot.slane %v661, 2
        %v663 = vadd.f32 %v661, %v662
        %v664 = vrot.slane %v663, 1
        %v665 = vadd.f32 %v663, %v664
        %v666 = vsel %vm637, %v544, 0.0
        %v667 = vrot.slane %v666, 4
        %v668 = vadd.f32 %v666, %v667
        %v669 = vrot.slane %v668, 2
        %v670 = vadd.f32 %v668, %v669
        %v671 = vrot.slane %v670, 1
        %v672 = vadd.f32 %v670, %v671
        %v673 = vsel %vm637, %v546, 0.0
        %v674 = vrot.slane %v673, 4
        %v675 = vadd.f32 %v673, %v674
        %v676 = vrot.slane %v675, 2
        %v677 = vadd.f32 %v675, %v676
        %v678 = vrot.slane %v677, 1
        %v679 = vadd.f32 %v677, %v678
        %v680 = vsel %vm637, %v585, 0.0
        %v681 = vrot.slane %v680, 4
        %v682 = vadd.f32 %v680, %v681
        %v683 = vrot.slane %v682, 2
        %v684 = vadd.f32 %v682, %v683
        %v685 = vrot.slane %v684, 1
        %v686 = vadd.f32 %v684, %v685
        %v687 = vsel %vm637, %v587, 0.0
        %v688 = vrot.slane %v687, 4
        %v689 = vadd.f32 %v687, %v688
        %v690 = vrot.slane %v689, 2
        %v691 = vadd.f32 %v689, %v690
        %v692 = vrot.slane %v691, 1
        %v693 = vadd.f32 %v691, %v692
        %v694 = vmul.f32 %v462, %v462
        %v695 = vmul.f32 %v464, %v464
        %v696 = vmul.f32 %v503, %v503
        %v697 = vmul.f32 %v505, %v505
        %v698 = vmul.f32 %v544, %v544
        %v699 = vmul.f32 %v546, %v546
        %v700 = vmul.f32 %v585, %v585
        %v701 = vmul.f32 %v587, %v587
        %v702 = vsel %vm637, %v694, 0.0
        %v703 = vrot.slane %v702, 4
        %v704 = vadd.f32 %v702, %v703
        %v705 = vrot.slane %v704, 2
        %v706 = vadd.f32 %v704, %v705
        %v707 = vrot.slane %v706, 1
        %v708 = vadd.f32 %v706, %v707
        %v709 = vsel %vm637, %v695, 0.0
        %v710 = vrot.slane %v709, 4
        %v711 = vadd.f32 %v709, %v710
        %v712 = vrot.slane %v711, 2
        %v713 = vadd.f32 %v711, %v712
        %v714 = vrot.slane %v713, 1
        %v715 = vadd.f32 %v713, %v714
        %v716 = vsel %vm637, %v696, 0.0
        %v717 = vrot.slane %v716, 4
        %v718 = vadd.f32 %v716, %v717
        %v719 = vrot.slane %v718, 2
        %v720 = vadd.f32 %v718, %v719
        %v721 = vrot.slane %v720, 1
        %v722 = vadd.f32 %v720, %v721
        %v723 = vsel %vm637, %v697, 0.0
        %v724 = vrot.slane %v723, 4
        %v725 = vadd.f32 %v723, %v724
        %v726 = vrot.slane %v725, 2
        %v727 = vadd.f32 %v725, %v726
        %v728 = vrot.slane %v727, 1
        %v729 = vadd.f32 %v727, %v728
        %v730 = vsel %vm637, %v698, 0.0
        %v731 = vrot.slane %v730, 4
        %v732 = vadd.f32 %v730, %v731
        %v733 = vrot.slane %v732, 2
        %v734 = vadd.f32 %v732, %v733
        %v735 = vrot.slane %v734, 1
        %v736 = vadd.f32 %v734, %v735
        %v737 = vsel %vm637, %v699, 0.0
        %v738 = vrot.slane %v737, 4
        %v739 = vadd.f32 %v737, %v738
        %v740 = vrot.slane %v739, 2
        %v741 = vadd.f32 %v739, %v740
        %v742 = vrot.slane %v741, 1
        %v743 = vadd.f32 %v741, %v742
        %v744 = vsel %vm637, %v700, 0.0
        %v745 = vrot.slane %v744, 4
        %v746 = vadd.f32 %v744, %v745
        %v747 = vrot.slane %v746, 2
        %v748 = vadd.f32 %v746, %v747
        %v749 = vrot.slane %v748, 1
        %v750 = vadd.f32 %v748, %v749
        %v751 = vsel %vm637, %v701, 0.0
        %v752 = vrot.slane %v751, 4
        %v753 = vadd.f32 %v751, %v752
        %v754 = vrot.slane %v753, 2
        %v755 = vadd.f32 %v753, %v754
        %v756 = vrot.slane %v755, 1
        %v757 = vadd.f32 %v755, %v756
        %vm758 = vcmask 1040384
        %v759 = vsel %vm758, %v644, %v708
        %v760 = vsel %vm758, %v651, %v715
        %v761 = vsel %vm758, %v658, %v722
        %v762 = vsel %vm758, %v665, %v729
        %v763 = vsel %vm758, %v672, %v736
        %v764 = vsel %vm758, %v679, %v743
        %v765 = vsel %vm758, %v686, %v750
        %v766 = vsel %vm758, %v693, %v757
        %v775 = vcombine.low %v759, %v760
        %v776 = vcombine.low %v761, %v762
        %v778 = vunpack.c.l.s4 1983009808
        %v779 = vunpack.c.0.s8 %v778
        %v780 = vlaneseq
        %v781 = vshrl.u32 %v780, 7
        %v782 = vsub.s32 %v779, %v781
        %v783 = vrot.slane %v775, %v782
        %v785 = vunpack.c.l.s4 1983009808
        %v786 = vunpack.c.0.s8 %v785
        %v787 = vlaneseq
        %v788 = vshrl.u32 %v787, 7
        %v789 = vsub.s32 %v786, %v788
        %v790 = vrot.slane %v776, %v789
        %v791 = vcombine.low %v783, %v790
        %v792 = vcombine.low %v763, %v764
        %v793 = vcombine.low %v765, %v766
        %v795 = vunpack.c.l.s4 1983009808
        %v796 = vunpack.c.0.s8 %v795
        %v797 = vlaneseq
        %v798 = vshrl.u32 %v797, 7
        %v799 = vsub.s32 %v796, %v798
        %v800 = vrot.slane %v792, %v799
        %v802 = vunpack.c.l.s4 1983009808
        %v803 = vunpack.c.0.s8 %v802
        %v804 = vlaneseq
        %v805 = vshrl.u32 %v804, 7
        %v806 = vsub.s32 %v803, %v805
        %v807 = vrot.slane %v793, %v806
        %v808 = vcombine.low %v800, %v807
        %811 = vst [vmem:[%s281] sm:$0xff] %v791
        %812 = vst [vmem:[%s281 + $0x8] sm:$0xff] %v808
        %s813 = smul.u32 8, %s16
        %p814 = scmp.lt.s32.totalorder %s813, 31
        %s815 = scalar_select %p814, %s813, 31
        %s816 = smul.addr %s815, 2
        %s817 = scalar_lea.vmem %s3, %s816
        %s818 = smul.u32 8, %s16
        %p819 = scmp.lt.s32.totalorder %s818, 31
        %s820 = scalar_select %p819, %s818, 31
        %s821 = smul.addr %s820, 2
        %s822 = scalar_lea.vmem %s4, %s821
        // Predicated region
        $region56: #{_lambda_.7} parent=50 // pred_check
          %p823 = pneg %p107
        $region57: #{_lambda_.7} parent=50 // pred_check_branch
          %825 = sbr.rel (%p823) target = $region59
        $region58: #{_lambda_.7} parent=50 // pred_region
          %s826 = smul.u32 8, %s16
        $region59: #{_lambda_.7} parent=50 // pred_fallthru
          _
        // Predicated region
        $region60: #{_lambda_.7} parent=50 // pred_check
          %p827 = pneg %p133
        $region61: #{_lambda_.7} parent=50 // pred_check_branch
          %829 = sbr.rel (%p827) target = $region63
        $region62: #{_lambda_.7} parent=50 // pred_region
          %s830 = smul.u32 8, %s16
        $region63: #{_lambda_.7} parent=50 // pred_fallthru
          _
      $region51: #{_lambda_.7} parent=5 // pred_fallthru
        _
      %p831 = scmp.le.s32.totalorder 2, %s11
      // Predicated region
      $region64: #{_lambda_.7} parent=5 // pred_check
        %p832 = pneg %p831
      $region65: #{_lambda_.7} parent=5 // pred_check_branch
        %834 = sbr.rel (%p832) target = $region67
      $region66: #{_lambda_.7} parent=5 // pred_region
        %s835 = ssub.s32 %s11, 2
        // Predicated region
        $region68: #{_lambda_.7} parent=66 // pred_check
          %p836 = pneg %p113
        $region69: #{_lambda_.7} parent=66 // pred_check_branch
          %838 = sbr.rel (%p836) target = $region71
        $region70: #{_lambda_.7} parent=66 // pred_region
          %s839 = smul.u32 8, %s17
          %p840 = scmp.lt.s32.totalorder %s839, 31
          %s841 = scalar_select %p840, %s839, 31
          %s842 = smul.addr %s841, 2
          %s843 = scalar_lea.vmem %s3, %s842
        $region71: #{_lambda_.7} parent=66 // pred_fallthru
          _
        // Predicated region
        $region72: #{_lambda_.7} parent=66 // pred_check
          %p844 = pneg %p139
        $region73: #{_lambda_.7} parent=66 // pred_check_branch
          %846 = sbr.rel (%p844) target = $region75
        $region74: #{_lambda_.7} parent=66 // pred_region
          %s847 = smul.u32 8, %s17
          %p848 = scmp.lt.s32.totalorder %s847, 31
          %s849 = scalar_select %p848, %s847, 31
          %s850 = smul.addr %s849, 2
          %s851 = scalar_lea.vmem %s4, %s850
        $region75: #{_lambda_.7} parent=66 // pred_fallthru
          _
      $region67: #{_lambda_.7} parent=5 // pred_fallthru
        _
    $region6: #{_lambda_.7} parent=1 // loop_footer
      %s15 = sadd.s32 1, %s11
    $region7: #{_lambda_.7} parent=1 // loop_footer_branch
      %10 = sbr.rel target = $region3
    $region8: #{_lambda_.7} parent=1 // loop_exit
      _

// kernel: _lambda_.10
$region0: #{_lambda_.10}
  #allocation0 [shape = 'u32[]', space=smem, size = 0x4, offset = 0x4, fixed_abs, tag = 'smem constant byte address 0x4 - core index']
  #allocation1 [shape = 'u32[144,128]{1,0:T(1,128)}', space=vmem, size = 0x12000, scoped, tag = 'internal scratch']
  %s0 = inlined_call_operand.vmem [shape: f32[128,128], index: 0, kind: input, shape index: {}]
  %s1 = inlined_call_operand.vmem [shape: f32[2,128], index: 1, kind: input, shape index: {}]
  %s2 = inlined_call_operand.vmem [shape: bf16[128,128], index: 2, kind: output, shape index: {}]
  %s3 = sld [smem:[#allocation0]]
  $region18: #{_lambda_.10} parent=0
    _
  %s5 = ssub.s32 1, %s3
  %s6 = scalar_select 0, %s5, %s3
  // Predicated region
  $region2: #{_lambda_.10} parent=0 // pred_check
    _
  $region3: #{_lambda_.10} parent=0 // pred_check_branch
    %8 = sbr.rel (0) target = $region5
  $region4: #{_lambda_.10} parent=0 // pred_region
    _
  $region5: #{_lambda_.10} parent=0 // pred_fallthru
    _
  // Predicated region
  $region6: #{_lambda_.10} parent=0 // pred_check
    _
  $region7: #{_lambda_.10} parent=0 // pred_check_branch
    %10 = sbr.rel (0) target = $region9
  $region8: #{_lambda_.10} parent=0 // pred_region
    _
  $region9: #{_lambda_.10} parent=0 // pred_fallthru
    _
  %v11 = vld [vmem:[%s0] sm:$0xff]
  %v12 = vld [vmem:[%s0 + $0x8] sm:$0xff]
  %v13 = vld [vmem:[%s0 + $0x10] sm:$0xff]
  %v14 = vld [vmem:[%s0 + $0x18] sm:$0xff]
  %v15 = vld [vmem:[%s0 + $0x20] sm:$0xff]
  %v16 = vld [vmem:[%s0 + $0x28] sm:$0xff]
  %v17 = vld [vmem:[%s0 + $0x30] sm:$0xff]
  %v18 = vld [vmem:[%s0 + $0x38] sm:$0xff]
  %v19 = vld [vmem:[%s0 + $0x40] sm:$0xff]
  %v20 = vld [vmem:[%s0 + $0x48] sm:$0xff]
  %v21 = vld [vmem:[%s0 + $0x50] sm:$0xff]
  %v22 = vld [vmem:[%s0 + $0x58] sm:$0xff]
  %v23 = vld [vmem:[%s0 + $0x60] sm:$0xff]
  %v24 = vld [vmem:[%s0 + $0x68] sm:$0xff]
  %v25 = vld [vmem:[%s0 + $0x70] sm:$0xff]
  %v26 = vld [vmem:[%s0 + $0x78] sm:$0xff]
  %v27 = vld [vmem:[%s1] sm:$0x1]
  %v28 = vlaneseq
  %v29 = vshrl.u32 %v28, 7
  %v30 = vsub.s32 0, %v29
  %v31 = vrot.slane %v27, %v30
  %v32 = vmul.f32 %v11, %v31
  %v33 = vmul.f32 %v12, %v31
  %v34 = vmul.f32 %v13, %v31
  %v35 = vmul.f32 %v14, %v31
  %v36 = vmul.f32 %v15, %v31
  %v37 = vmul.f32 %v16, %v31
  %v38 = vmul.f32 %v17, %v31
  %v39 = vmul.f32 %v18, %v31
  %v40 = vmul.f32 %v19, %v31
  %v41 = vmul.f32 %v20, %v31
  %v42 = vmul.f32 %v21, %v31
  %v43 = vmul.f32 %v22, %v31
  %v44 = vmul.f32 %v23, %v31
  %v45 = vmul.f32 %v24, %v31
  %v46 = vmul.f32 %v25, %v31
  %v47 = vmul.f32 %v26, %v31
  %v48 = vld [vmem:[%s1 + $0x1] sm:$0x1]
  %v49 = vlaneseq
  %v50 = vshrl.u32 %v49, 7
  %v51 = vsub.s32 0, %v50
  %v52 = vrot.slane %v48, %v51
  %v53 = vadd.f32 %v32, %v52
  %v54 = vadd.f32 %v33, %v52
  %v55 = vadd.f32 %v34, %v52
  %v56 = vadd.f32 %v35, %v52
  %v57 = vadd.f32 %v36, %v52
  %v58 = vadd.f32 %v37, %v52
  %v59 = vadd.f32 %v38, %v52
  %v60 = vadd.f32 %v39, %v52
  %v61 = vadd.f32 %v40, %v52
  %v62 = vadd.f32 %v41, %v52
  %v63 = vadd.f32 %v42, %v52
  %v64 = vadd.f32 %v43, %v52
  %v65 = vadd.f32 %v44, %v52
  %v66 = vadd.f32 %v45, %v52
  %v67 = vadd.f32 %v46, %v52
  %v68 = vadd.f32 %v47, %v52
  %v69 = vmax.f32 %v53, 0.0
  %v70 = vmax.f32 %v54, 0.0
  %v71 = vmax.f32 %v55, 0.0
  %v72 = vmax.f32 %v56, 0.0
  %v73 = vmax.f32 %v57, 0.0
  %v74 = vmax.f32 %v58, 0.0
  %v75 = vmax.f32 %v59, 0.0
  %v76 = vmax.f32 %v60, 0.0
  %v77 = vmax.f32 %v61, 0.0
  %v78 = vmax.f32 %v62, 0.0
  %v79 = vmax.f32 %v63, 0.0
  %v80 = vmax.f32 %v64, 0.0
  %v81 = vmax.f32 %v65, 0.0
  %v82 = vmax.f32 %v66, 0.0
  %v83 = vmax.f32 %v67, 0.0
  %v84 = vmax.f32 %v68, 0.0
  %v85 = vpack.c.bf16 %v70, %v69
  %v86 = vpack.c.bf16 %v72, %v71
  %v87 = vpack.c.bf16 %v74, %v73
  %v88 = vpack.c.bf16 %v76, %v75
  %v89 = vpack.c.bf16 %v78, %v77
  %v90 = vpack.c.bf16 %v80, %v79
  %v91 = vpack.c.bf16 %v82, %v81
  %v92 = vpack.c.bf16 %v84, %v83
  %v101 = vunpack.c.l.b16 %v85
  %v102 = vunpack.c.h.b16 %v85
  %v103 = vunpack.c.l.b16 %v86
  %v104 = vunpack.c.h.b16 %v86
  %v105 = vunpack.c.l.b16 %v87
  %v106 = vunpack.c.h.b16 %v87
  %v107 = vunpack.c.l.b16 %v88
  %v108 = vunpack.c.h.b16 %v88
  %v109 = vunpack.c.l.b16 %v89
  %v110 = vunpack.c.h.b16 %v89
  %v111 = vunpack.c.l.b16 %v90
  %v112 = vunpack.c.h.b16 %v90
  %v113 = vunpack.c.l.b16 %v91
  %v114 = vunpack.c.h.b16 %v91
  %v115 = vunpack.c.l.b16 %v92
  %v116 = vunpack.c.h.b16 %v92
  %v117 = vpack.c.b16 %v101, %v101
  %v118 = vpack.c.b16 %v102, %v102
  %v119 = vpack.c.b16 %v103, %v103
  %v120 = vpack.c.b16 %v104, %v104
  %v121 = vpack.c.b16 %v105, %v105
  %v122 = vpack.c.b16 %v106, %v106
  %v123 = vpack.c.b16 %v107, %v107
  %v124 = vpack.c.b16 %v108, %v108
  %v125 = vpack.c.b16 %v109, %v109
  %v126 = vpack.c.b16 %v110, %v110
  %v127 = vpack.c.b16 %v111, %v111
  %v128 = vpack.c.b16 %v112, %v112
  %v129 = vpack.c.b16 %v113, %v113
  %v130 = vpack.c.b16 %v114, %v114
  %v131 = vpack.c.b16 %v115, %v115
  %v132 = vpack.c.b16 %v116, %v116
  %149 = vst [vmem:[%s2] sm:$0xf] %v117
  %150 = vst [vmem:[%s2 + $0x4] sm:$0xf] %v118
  %151 = vst [vmem:[%s2 + $0x8] sm:$0xf] %v119
  %152 = vst [vmem:[%s2 + $0xc] sm:$0xf] %v120
  %153 = vst [vmem:[%s2 + $0x10] sm:$0xf] %v121
  %154 = vst [vmem:[%s2 + $0x14] sm:$0xf] %v122
  %155 = vst [vmem:[%s2 + $0x18] sm:$0xf] %v123
  %156 = vst [vmem:[%s2 + $0x1c] sm:$0xf] %v124
  %157 = vst [vmem:[%s2 + $0x20] sm:$0xf] %v125
  %158 = vst [vmem:[%s2 + $0x24] sm:$0xf] %v126
  %159 = vst [vmem:[%s2 + $0x28] sm:$0xf] %v127
  %160 = vst [vmem:[%s2 + $0x2c] sm:$0xf] %v128
  %161 = vst [vmem:[%s2 + $0x30] sm:$0xf] %v129
  %162 = vst [vmem:[%s2 + $0x34] sm:$0xf] %v130
  %163 = vst [vmem:[%s2 + $0x38] sm:$0xf] %v131
  %164 = vst [vmem:[%s2 + $0x3c] sm:$0xf] %v132
  // Predicated region
  $region10: #{_lambda_.10} parent=0 // pred_check
    _
  $region11: #{_lambda_.10} parent=0 // pred_check_branch
    %166 = sbr.rel (0) target = $region13
  $region12: #{_lambda_.10} parent=0 // pred_region
    _
  $region13: #{_lambda_.10} parent=0 // pred_fallthru
    _
  // Predicated region
  $region14: #{_lambda_.10} parent=0 // pred_check
    _
  $region15: #{_lambda_.10} parent=0 // pred_check_branch
    %168 = sbr.rel (0) target = $region17
  $region16: #{_lambda_.10} parent=0 // pred_region
    _
  $region17: #{_lambda_.10} parent=0 // pred_fallthru
    _

// kernel: _lambda_.9
$region0: #{_lambda_.9}
  #allocation0 [shape = 'u32[]', space=smem, size = 0x4, offset = 0x4, fixed_abs, tag = 'smem constant byte address 0x4 - core index']
  #allocation1 [shape = 'u32[144,128]{1,0:T(1,128)}', space=vmem, size = 0x12000, scoped, tag = 'internal scratch']
  %s0 = inlined_call_operand.vmem [shape: bf16[4,32,1024], index: 0, kind: input, shape index: {}]
  %s1 = inlined_call_operand.vmem [shape: bf16[4,1024,128], index: 1, kind: input, shape index: {}]
  %s2 = inlined_call_operand.vmem [shape: f32[1,128], index: 2, kind: input, shape index: {}]
  %s3 = inlined_call_operand.vmem [shape: f32[4,32,128], index: 3, kind: output, shape index: {0}]
  %s4 = inlined_call_operand.vmem [shape: f32[4,1,2,128], index: 4, kind: output, shape index: {1}]
  %5 = xla_tuple %s3, %s4
  %s6 = sld [smem:[#allocation0]]
  $region53: #{_lambda_.9} parent=0
    _
  %s8 = ssub.s32 1, %s6
  %s9 = scalar_select 0, %s8, %s6
  loop: start=0, step=1, limit=6
  $region2: #{_lambda_.9} parent=0 // loop_pre_header
    _
  $region3: #{_lambda_.9} parent=0 // loop_header
    %s11 = sphi 0, %s15
    %p12 = scmp.ge.s32.totalorder %s11, 6
    %s18 = sphi 0, %s30
    %s19 = sphi 0, %s26
    %s20 = sphi 0, %s18
    %s21 = sphi 0, %s19
    %s22 = sphi 0, %s20
    %s23 = sphi 0, %s21
    %s35 = sphi 0, %s37
    %s38 = sphi 0, %s35
    %s39 = sphi 0, %s38
    %s55 = sphi 0, %s39
    %s61 = sphi 0, %s63
    %s64 = sphi 0, %s61
    %s65 = sphi 0, %s64
    %s81 = sphi 0, %s65
    %s85 = sphi 0, %s85
    %s87 = sphi 0, %s85
    %s88 = sphi 0, %s87
    %s102 = sphi 0, %s88
    %s110 = sphi 0, %s112
    %s113 = sphi 0, %s110
    %s114 = sphi 0, %s113
    %s130 = sphi 0, %s114
    %s138 = sphi 0, %s140
    %s141 = sphi 0, %s138
    %s142 = sphi 0, %s141
    %s158 = sphi 0, %s142
  $region4: #{_lambda_.9} parent=0 // loop_header_branch
    %14 = sbr.rel (%p12) target = $region8
  $region5: #{_lambda_.9} parent=0 // loop_body
    %s16 = ssub.s32 %s11, 1
    %s17 = ssub.s32 %s11, 2
    %s24 = sadd.s32 1, %s19
    %p25 = scmp.ge.s32.totalorder %s24, 1
    %s26 = scalar_select %p25, 0, %s24
    %s27 = sadd.s32 1, %s18
    %s28 = scalar_select %p25, %s27, %s18
    %p29 = scmp.ge.s32.totalorder %s28, 4
    %s30 = scalar_select %p29, 0, %s28
    %s31 = ssub.s32 %s18, %s30
    %s32 = ssub.s32 %s19, %s26
    %s33 = sor.u32 %s31, %s32
    %p34 = scmp.eq.s32.totalorder %s33, 0
    %s36 = sadd.s32 %s35, 1
    %s37 = scalar_select %p34, %s35, %s36
    %p40 = pneg %p34
    %p41 = scmp.eq.s32.totalorder %s11, 3
    %p42 = por %p40, %p41
    %p43 = scmp.ne.s32.totalorder %s35, %s38
    %p44 = scmp.eq.s32.totalorder %s11, 0
    %p45 = por %p43, %p44
    %p46 = scmp.ne.s32.totalorder %s35, %s38
    %p47 = scmp.eq.s32.totalorder %s16, 3
    %p48 = por %p46, %p47
    %p49 = scmp.ne.s32.totalorder %s38, %s39
    %p50 = scmp.eq.s32.totalorder %s16, 0
    %p51 = por %p49, %p50
    %p52 = scmp.ne.s32.totalorder %s38, %s39
    %p53 = scmp.eq.s32.totalorder %s17, 3
    %p54 = por %p52, %p53
    %p56 = scmp.ne.s32.totalorder %s39, %s55
    %p57 = scmp.eq.s32.totalorder %s17, 0
    %p58 = por %p56, %p57
    %s59 = ssub.s32 %s18, %s30
    %p60 = scmp.eq.s32.totalorder %s59, 0
    %s62 = sadd.s32 %s61, 1
    %s63 = scalar_select %p60, %s61, %s62
    %p66 = pneg %p60
    %p67 = scmp.eq.s32.totalorder %s11, 3
    %p68 = por %p66, %p67
    %p69 = scmp.ne.s32.totalorder %s61, %s64
    %p70 = scmp.eq.s32.totalorder %s11, 0
    %p71 = por %p69, %p70
    %p72 = scmp.ne.s32.totalorder %s61, %s64
    %p73 = scmp.eq.s32.totalorder %s16, 3
    %p74 = por %p72, %p73
    %p75 = scmp.ne.s32.totalorder %s64, %s65
    %p76 = scmp.eq.s32.totalorder %s16, 0
    %p77 = por %p75, %p76
    %p78 = scmp.ne.s32.totalorder %s64, %s65
    %p79 = scmp.eq.s32.totalorder %s17, 3
    %p80 = por %p78, %p79
    %p82 = scmp.ne.s32.totalorder %s65, %s81
    %p83 = scmp.eq.s32.totalorder %s17, 0
    %p84 = por %p82, %p83
    %s86 = sadd.s32 %s85, 1
    %p89 = scmp.eq.s32.totalorder %s11, 3
    %p90 = scmp.ne.s32.totalorder %s85, %s87
    %p91 = scmp.eq.s32.totalorder %s11, 0
    %p92 = por %p90, %p91
    %p93 = scmp.ne.s32.totalorder %s85, %s87
    %p94 = scmp.eq.s32.totalorder %s16, 3
    %p95 = por %p93, %p94
    %p96 = scmp.ne.s32.totalorder %s87, %s88
    %p97 = scmp.eq.s32.totalorder %s16, 0
    %p98 = por %p96, %p97
    %p99 = scmp.ne.s32.totalorder %s87, %s88
    %p100 = scmp.eq.s32.totalorder %s17, 3
    %p101 = por %p99, %p100
    %p103 = scmp.ne.s32.totalorder %s88, %s102
    %p104 = scmp.eq.s32.totalorder %s17, 0
    %p105 = por %p103, %p104
    %s106 = ssub.s32 %s18, %s30
    %s107 = ssub.s32 %s19, %s26
    %s108 = sor.u32 %s106, %s107
    %p109 = scmp.eq.s32.totalorder %s108, 0
    %s111 = sadd.s32 %s110, 1
    %s112 = scalar_select %p109, %s110, %s111
    %p115 = pneg %p109
    %p116 = scmp.eq.s32.totalorder %s11, 3
    %p117 = por %p115, %p116
    %p118 = scmp.ne.s32.totalorder %s110, %s113
    %p119 = scmp.eq.s32.totalorder %s11, 0
    %p120 = por %p118, %p119
    %p121 = scmp.ne.s32.totalorder %s110, %s113
    %p122 = scmp.eq.s32.totalorder %s16, 3
    %p123 = por %p121, %p122
    %p124 = scmp.ne.s32.totalorder %s113, %s114
    %p125 = scmp.eq.s32.totalorder %s16, 0
    %p126 = por %p124, %p125
    %p127 = scmp.ne.s32.totalorder %s113, %s114
    %p128 = scmp.eq.s32.totalorder %s17, 3
    %p129 = por %p127, %p128
    %p131 = scmp.ne.s32.totalorder %s114, %s130
    %p132 = scmp.eq.s32.totalorder %s17, 0
    %p133 = por %p131, %p132
    %s134 = ssub.s32 %s18, %s30
    %s135 = ssub.s32 %s19, %s26
    %s136 = sor.u32 %s134, %s135
    %p137 = scmp.eq.s32.totalorder %s136, 0
    %s139 = sadd.s32 %s138, 1
    %s140 = scalar_select %p137, %s138, %s139
    %p143 = pneg %p137
    %p144 = scmp.eq.s32.totalorder %s11, 3
    %p145 = por %p143, %p144
    %p146 = scmp.ne.s32.totalorder %s138, %s141
    %p147 = scmp.eq.s32.totalorder %s11, 0
    %p148 = por %p146, %p147
    %p149 = scmp.ne.s32.totalorder %s138, %s141
    %p150 = scmp.eq.s32.totalorder %s16, 3
    %p151 = por %p149, %p150
    %p152 = scmp.ne.s32.totalorder %s141, %s142
    %p153 = scmp.eq.s32.totalorder %s16, 0
    %p154 = por %p152, %p153
    %p155 = scmp.ne.s32.totalorder %s141, %s142
    %p156 = scmp.eq.s32.totalorder %s17, 3
    %p157 = por %p155, %p156
    %p159 = scmp.ne.s32.totalorder %s142, %s158
    %p160 = scmp.eq.s32.totalorder %s17, 0
    %p161 = por %p159, %p160
    %p162 = scmp.le.s32.totalorder 1, %s11
    %p163 = scmp.lt.s32.totalorder %s11, 5
    %p164 = pnand %p162, %p163
    %p165 = pneg %p164
    // Predicated region
    $region9: #{_lambda_.9} parent=5 // pred_check
      _
    $region10: #{_lambda_.9} parent=5 // pred_check_branch
      %167 = sbr.rel (%p164) target = $region12
    $region11: #{_lambda_.9} parent=5 // pred_region
      %s168 = ssub.s32 %s11, 1
      // Predicated region
      $region13: #{_lambda_.9} parent=11 // pred_check
        %p169 = pneg %p98
      $region14: #{_lambda_.9} parent=11 // pred_check_branch
        %171 = sbr.rel (%p169) target = $region16
      $region15: #{_lambda_.9} parent=11 // pred_region
        _
      $region16: #{_lambda_.9} parent=11 // pred_fallthru
        _
    $region12: #{_lambda_.9} parent=5 // pred_fallthru
      _
    %p172 = scmp.lt.s32.totalorder %s11, 4
    // Predicated region
    $region17: #{_lambda_.9} parent=5 // pred_check
      %p173 = pneg %p172
    $region18: #{_lambda_.9} parent=5 // pred_check_branch
      %175 = sbr.rel (%p173) target = $region20
    $region19: #{_lambda_.9} parent=5 // pred_region
      // Predicated region
      $region21: #{_lambda_.9} parent=19 // pred_check
        %p176 = pneg %p45
      $region22: #{_lambda_.9} parent=19 // pred_check_branch
        %178 = sbr.rel (%p176) target = $region24
      $region23: #{_lambda_.9} parent=19 // pred_region
        %s179 = smul.u32 4, %s19
        %p180 = scmp.lt.s32.totalorder %s18, 3
        %s181 = scalar_select %p180, %s18, 3
        %p182 = scmp.lt.s32.totalorder %s179, 3
        %s183 = scalar_select %p182, %s179, 3
        %s184 = smul.addr %s183, 8
        %s185 = smul.addr %s181, 32
        %s186 = sadd.s32 %s184, %s185
        %s187 = smul.addr %s186, 4
        %s188 = scalar_lea.vmem %s0, %s187
        %s189 = smul.u32 4, %s19
      $region24: #{_lambda_.9} parent=19 // pred_fallthru
        _
      // Predicated region
      $region25: #{_lambda_.9} parent=19 // pred_check
        %p190 = pneg %p71
      $region26: #{_lambda_.9} parent=19 // pred_check_branch
        %192 = sbr.rel (%p190) target = $region28
      $region27: #{_lambda_.9} parent=19 // pred_region
        %p193 = scmp.lt.s32.totalorder %s18, 3
        %s194 = scalar_select %p193, %s18, 3
        %s195 = smul.addr %s194, 128
        %s196 = smul.addr %s195, 4
        %s197 = scalar_lea.vmem %s1, %s196
      $region28: #{_lambda_.9} parent=19 // pred_fallthru
        _
    $region20: #{_lambda_.9} parent=5 // pred_fallthru
      _
    %p198 = scmp.le.s32.totalorder 1, %s11
    %p199 = scmp.lt.s32.totalorder %s11, 5
    %p200 = pnand %p198, %p199
    %p201 = pneg %p200
    // Predicated region
    $region29: #{_lambda_.9} parent=5 // pred_check
      _
    $region30: #{_lambda_.9} parent=5 // pred_check_branch
      %203 = sbr.rel (%p200) target = $region32
    $region31: #{_lambda_.9} parent=5 // pred_region
      %s204 = ssub.s32 %s11, 1
      %s205 = smul.u32 4, %s21
      %p206 = scmp.lt.s32.totalorder %s20, 3
      %s207 = scalar_select %p206, %s20, 3
      %p208 = scmp.lt.s32.totalorder %s205, 3
      %s209 = scalar_select %p208, %s205, 3
      %s210 = smul.addr %s209, 8
      %s211 = smul.addr %s207, 32
      %s212 = sadd.s32 %s210, %s211
      %s213 = smul.addr %s212, 4
      %s214 = scalar_lea.vmem %s0, %s213
      %p215 = pneg %p51
      %p216 = pneg %p48
      %p217 = scmp.lt.s32.totalorder %s20, 3
      %s218 = scalar_select %p217, %s20, 3
      %s219 = smul.addr %s218, 128
      %s220 = smul.addr %s219, 4
      %s221 = scalar_lea.vmem %s1, %s220
      %p222 = pneg %p77
      %p223 = pneg %p74
      %p224 = pneg %p98
      %p225 = pneg %p95
      %p226 = pneg %p126
      %p227 = pneg %p123
      %s228 = smul.u32 4, %s21
      %p229 = scmp.lt.s32.totalorder %s20, 3
      %s230 = scalar_select %p229, %s20, 3
      %p231 = scmp.lt.s32.totalorder %s228, 3
      %s232 = scalar_select %p231, %s228, 3
      %s233 = smul.addr %s230, 4
      %s234 = sadd.s32 %s232, %s233
      %s235 = smul.addr %s234, 8
      %s236 = scalar_lea.vmem %s3, %s235
      %p237 = pneg %p154
      %p238 = pneg %p151
      %p239 = scmp.lt.s32.totalorder %s20, 3
      %s240 = scalar_select %p239, %s20, 3
      %p241 = scmp.lt.s32.totalorder %s21, 0
      %s242 = scalar_select %p241, %s21, 0
      %s243 = sadd.s32 %s242, %s240
      %s244 = smul.addr %s243, 2
      %s245 = scalar_lea.vmem %s4, %s244
      %s246 = smul.u32 4, %s21
      %p247 = scmp.lt.s32.totalorder %s20, 3
      %s248 = scalar_select %p247, %s20, 3
      %p249 = scmp.lt.s32.totalorder %s246, 3
      %s250 = scalar_select %p249, %s246, 3
      %s251 = smul.addr %s250, 8
      %s252 = smul.addr %s248, 32
      %s253 = sadd.s32 %s251, %s252
      %s254 = smul.addr %s253, 4
      %s255 = scalar_lea.vmem %s0, %s254
      %s256 = smul.u32 4, %s21
      %p257 = scmp.lt.s32.totalorder %s20, 3
      %s258 = scalar_select %p257, %s20, 3
      %s259 = smul.addr %s258, 128
      %s260 = smul.addr %s259, 4
      %s261 = scalar_lea.vmem %s1, %s260
      %s262 = smul.u32 4, %s21
      %p263 = scmp.lt.s32.totalorder %s20, 3
      %s264 = scalar_select %p263, %s20, 3
      %p265 = scmp.lt.s32.totalorder %s262, 3
      %s266 = scalar_select %p265, %s262, 3
      %s267 = smul.addr %s264, 4
      %s268 = sadd.s32 %s266, %s267
      %s269 = smul.addr %s268, 8
      %s270 = scalar_lea.vmem %s3, %s269
      %s271 = smul.u32 4, %s21
      %p272 = scmp.lt.s32.totalorder %s20, 3
      %s273 = scalar_select %p272, %s20, 3
      %p274 = scmp.lt.s32.totalorder %s21, 0
      %s275 = scalar_select %p274, %s21, 0
      %s276 = sadd.s32 %s275, %s273
      %s277 = smul.addr %s276, 2
      %s278 = scalar_lea.vmem %s4, %s277
      %v280 = vld [vmem:[%s255] sm:$0xff]
      %v281 = vld [vmem:[%s255 + $0x8] sm:$0xff]
      %v282 = vld [vmem:[%s255 + $0x10] sm:$0xff]
      %v283 = vld [vmem:[%s255 + $0x18] sm:$0xff]
      %v284 = vld [vmem:[%s255 + $0x20] sm:$0xff]
      %v285 = vld [vmem:[%s255 + $0x28] sm:$0xff]
      %v286 = vld [vmem:[%s255 + $0x30] sm:$0xff]
      %v287 = vld [vmem:[%s255 + $0x38] sm:$0xff]
      %v288 = vld [vmem:[%s255 + $0x40] sm:$0xff]
      %v289 = vld [vmem:[%s255 + $0x48] sm:$0xff]
      %v290 = vld [vmem:[%s255 + $0x50] sm:$0xff]
      %v291 = vld [vmem:[%s255 + $0x58] sm:$0xff]
      %v292 = vld [vmem:[%s255 + $0x60] sm:$0xff]
      %v293 = vld [vmem:[%s255 + $0x68] sm:$0xff]
      %v294 = vld [vmem:[%s255 + $0x70] sm:$0xff]
      %v295 = vld [vmem:[%s255 + $0x78] sm:$0xff]
      %v296 = vld [vmem:[%s261] sm:$0xf]
      %v297 = vld [vmem:[%s261 + $0x4] sm:$0xf]
      %v298 = vld [vmem:[%s261 + $0x8] sm:$0xf]
      %v299 = vld [vmem:[%s261 + $0xc] sm:$0xf]
      %v300 = vld [vmem:[%s261 + $0x10] sm:$0xf]
      %v301 = vld [vmem:[%s261 + $0x14] sm:$0xf]
      %v302 = vld [vmem:[%s261 + $0x18] sm:$0xf]
      %v303 = vld [vmem:[%s261 + $0x1c] sm:$0xf]
      %v304 = vld [vmem:[%s261 + $0x20] sm:$0xf]
      %v305 = vld [vmem:[%s261 + $0x24] sm:$0xf]
      %v306 = vld [vmem:[%s261 + $0x28] sm:$0xf]
      %v307 = vld [vmem:[%s261 + $0x2c] sm:$0xf]
      %v308 = vld [vmem:[%s261 + $0x30] sm:$0xf]
      %v309 = vld [vmem:[%s261 + $0x34] sm:$0xf]
      %v310 = vld [vmem:[%s261 + $0x38] sm:$0xf]
      %v311 = vld [vmem:[%s261 + $0x3c] sm:$0xf]
      %v312 = vld [vmem:[%s261 + $0x40] sm:$0xf]
      %v313 = vld [vmem:[%s261 + $0x44] sm:$0xf]
      %v314 = vld [vmem:[%s261 + $0x48] sm:$0xf]
      %v315 = vld [vmem:[%s261 + $0x4c] sm:$0xf]
      %v316 = vld [vmem:[%s261 + $0x50] sm:$0xf]
      %v317 = vld [vmem:[%s261 + $0x54] sm:$0xf]
      %v318 = vld [vmem:[%s261 + $0x58] sm:$0xf]
      %v319 = vld [vmem:[%s261 + $0x5c] sm:$0xf]
      %v320 = vld [vmem:[%s261 + $0x60] sm:$0xf]
      %v321 = vld [vmem:[%s261 + $0x64] sm:$0xf]
      %v322 = vld [vmem:[%s261 + $0x68] sm:$0xf]
      %v323 = vld [vmem:[%s261 + $0x6c] sm:$0xf]
      %v324 = vld [vmem:[%s261 + $0x70] sm:$0xf]
      %v325 = vld [vmem:[%s261 + $0x74] sm:$0xf]
      %v326 = vld [vmem:[%s261 + $0x78] sm:$0xf]
      %v327 = vld [vmem:[%s261 + $0x7c] sm:$0xf]
      %v328 = vld [vmem:[%s261 + $0x80] sm:$0xf]
      %v329 = vld [vmem:[%s261 + $0x84] sm:$0xf]
      %v330 = vld [vmem:[%s261 + $0x88] sm:$0xf]
      %v331 = vld [vmem:[%s261 + $0x8c] sm:$0xf]
      %v332 = vld [vmem:[%s261 + $0x90] sm:$0xf]
      %v333 = vld [vmem:[%s261 + $0x94] sm:$0xf]
      %v334 = vld [vmem:[%s261 + $0x98] sm:$0xf]
      %v335 = vld [vmem:[%s261 + $0x9c] sm:$0xf]
      %v336 = vld [vmem:[%s261 + $0xa0] sm:$0xf]
      %v337 = vld [vmem:[%s261 + $0xa4] sm:$0xf]
      %v338 = vld [vmem:[%s261 + $0xa8] sm:$0xf]
      %v339 = vld [vmem:[%s261 + $0xac] sm:$0xf]
      %v340 = vld [vmem:[%s261 + $0xb0] sm:$0xf]
      %v341 = vld [vmem:[%s261 + $0xb4] sm:$0xf]
      %v342 = vld [vmem:[%s261 + $0xb8] sm:$0xf]
      %v343 = vld [vmem:[%s261 + $0xbc] sm:$0xf]
      %v344 = vld [vmem:[%s261 + $0xc0] sm:$0xf]
      %v345 = vld [vmem:[%s261 + $0xc4] sm:$0xf]
      %v346 = vld [vmem:[%s261 + $0xc8] sm:$0xf]
      %v347 = vld [vmem:[%s261 + $0xcc] sm:$0xf]
      %v348 = vld [vmem:[%s261 + $0xd0] sm:$0xf]
      %v349 = vld [vmem:[%s261 + $0xd4] sm:$0xf]
      %v350 = vld [vmem:[%s261 + $0xd8] sm:$0xf]
      %v351 = vld [vmem:[%s261 + $0xdc] sm:$0xf]
      %v352 = vld [vmem:[%s261 + $0xe0] sm:$0xf]
      %v353 = vld [vmem:[%s261 + $0xe4] sm:$0xf]
      %v354 = vld [vmem:[%s261 + $0xe8] sm:$0xf]
      %v355 = vld [vmem:[%s261 + $0xec] sm:$0xf]
      %v356 = vld [vmem:[%s261 + $0xf0] sm:$0xf]
      %v357 = vld [vmem:[%s261 + $0xf4] sm:$0xf]
      %v358 = vld [vmem:[%s261 + $0xf8] sm:$0xf]
      %v359 = vld [vmem:[%s261 + $0xfc] sm:$0xf]
      %v360 = vld [vmem:[%s261 + $0x100] sm:$0xf]
      %v361 = vld [vmem:[%s261 + $0x104] sm:$0xf]
      %v362 = vld [vmem:[%s261 + $0x108] sm:$0xf]
      %v363 = vld [vmem:[%s261 + $0x10c] sm:$0xf]
      %v364 = vld [vmem:[%s261 + $0x110] sm:$0xf]
      %v365 = vld [vmem:[%s261 + $0x114] sm:$0xf]
      %v366 = vld [vmem:[%s261 + $0x118] sm:$0xf]
      %v367 = vld [vmem:[%s261 + $0x11c] sm:$0xf]
      %v368 = vld [vmem:[%s261 + $0x120] sm:$0xf]
      %v369 = vld [vmem:[%s261 + $0x124] sm:$0xf]
      %v370 = vld [vmem:[%s261 + $0x128] sm:$0xf]
      %v371 = vld [vmem:[%s261 + $0x12c] sm:$0xf]
      %v372 = vld [vmem:[%s261 + $0x130] sm:$0xf]
      %v373 = vld [vmem:[%s261 + $0x134] sm:$0xf]
      %v374 = vld [vmem:[%s261 + $0x138] sm:$0xf]
      %v375 = vld [vmem:[%s261 + $0x13c] sm:$0xf]
      %v376 = vld [vmem:[%s261 + $0x140] sm:$0xf]
      %v377 = vld [vmem:[%s261 + $0x144] sm:$0xf]
      %v378 = vld [vmem:[%s261 + $0x148] sm:$0xf]
      %v379 = vld [vmem:[%s261 + $0x14c] sm:$0xf]
      %v380 = vld [vmem:[%s261 + $0x150] sm:$0xf]
      %v381 = vld [vmem:[%s261 + $0x154] sm:$0xf]
      %v382 = vld [vmem:[%s261 + $0x158] sm:$0xf]
      %v383 = vld [vmem:[%s261 + $0x15c] sm:$0xf]
      %v384 = vld [vmem:[%s261 + $0x160] sm:$0xf]
      %v385 = vld [vmem:[%s261 + $0x164] sm:$0xf]
      %v386 = vld [vmem:[%s261 + $0x168] sm:$0xf]
      %v387 = vld [vmem:[%s261 + $0x16c] sm:$0xf]
      %v388 = vld [vmem:[%s261 + $0x170] sm:$0xf]
      %v389 = vld [vmem:[%s261 + $0x174] sm:$0xf]
      %v390 = vld [vmem:[%s261 + $0x178] sm:$0xf]
      %v391 = vld [vmem:[%s261 + $0x17c] sm:$0xf]
      %v392 = vld [vmem:[%s261 + $0x180] sm:$0xf]
      %v393 = vld [vmem:[%s261 + $0x184] sm:$0xf]
      %v394 = vld [vmem:[%s261 + $0x188] sm:$0xf]
      %v395 = vld [vmem:[%s261 + $0x18c] sm:$0xf]
      %v396 = vld [vmem:[%s261 + $0x190] sm:$0xf]
      %v397 = vld [vmem:[%s261 + $0x194] sm:$0xf]
      %v398 = vld [vmem:[%s261 + $0x198] sm:$0xf]
      %v399 = vld [vmem:[%s261 + $0x19c] sm:$0xf]
      %v400 = vld [vmem:[%s261 + $0x1a0] sm:$0xf]
      %v401 = vld [vmem:[%s261 + $0x1a4] sm:$0xf]
      %v402 = vld [vmem:[%s261 + $0x1a8] sm:$0xf]
      %v403 = vld [vmem:[%s261 + $0x1ac] sm:$0xf]
      %v404 = vld [vmem:[%s261 + $0x1b0] sm:$0xf]
      %v405 = vld [vmem:[%s261 + $0x1b4] sm:$0xf]
      %v406 = vld [vmem:[%s261 + $0x1b8] sm:$0xf]
      %v407 = vld [vmem:[%s261 + $0x1bc] sm:$0xf]
      %v408 = vld [vmem:[%s261 + $0x1c0] sm:$0xf]
      %v409 = vld [vmem:[%s261 + $0x1c4] sm:$0xf]
      %v410 = vld [vmem:[%s261 + $0x1c8] sm:$0xf]
      %v411 = vld [vmem:[%s261 + $0x1cc] sm:$0xf]
      %v412 = vld [vmem:[%s261 + $0x1d0] sm:$0xf]
      %v413 = vld [vmem:[%s261 + $0x1d4] sm:$0xf]
      %v414 = vld [vmem:[%s261 + $0x1d8] sm:$0xf]
      %v415 = vld [vmem:[%s261 + $0x1dc] sm:$0xf]
      %v416 = vld [vmem:[%s261 + $0x1e0] sm:$0xf]
      %v417 = vld [vmem:[%s261 + $0x1e4] sm:$0xf]
      %v418 = vld [vmem:[%s261 + $0x1e8] sm:$0xf]
      %v419 = vld [vmem:[%s261 + $0x1ec] sm:$0xf]
      %v420 = vld [vmem:[%s261 + $0x1f0] sm:$0xf]
      %v421 = vld [vmem:[%s261 + $0x1f4] sm:$0xf]
      %v422 = vld [vmem:[%s261 + $0x1f8] sm:$0xf]
      %v423 = vld [vmem:[%s261 + $0x1fc] sm:$0xf]
      %v424 = vld [vmem:[%s2] sm:$0x1]
      %v426 = vlaneseq
      %v427 = vshrl.u32 %v426, 7
      %v428 = vsub.s32 0, %v427
      %v429 = vrot.slane %v424, %v428
      %v447 = vunpack.c.l.b16 %v280
      %v448 = vunpack.c.h.b16 %v280
      %v449 = vunpack.c.l.b16 %v281
      %v450 = vunpack.c.h.b16 %v281
      %v451 = vunpack.c.l.b16 %v282
      %v452 = vunpack.c.h.b16 %v282
      %v453 = vunpack.c.l.b16 %v283
      %v454 = vunpack.c.h.b16 %v283
      %v455 = vunpack.c.l.b16 %v284
      %v456 = vunpack.c.h.b16 %v284
      %v457 = vunpack.c.l.b16 %v285
      %v458 = vunpack.c.h.b16 %v285
      %v459 = vunpack.c.l.b16 %v286
      %v460 = vunpack.c.h.b16 %v286
      %v461 = vunpack.c.l.b16 %v287
      %v462 = vunpack.c.h.b16 %v287
      %v463 = vunpack.c.l.b16 %v288
      %v464 = vunpack.c.h.b16 %v288
      %v465 = vunpack.c.l.b16 %v289
      %v466 = vunpack.c.h.b16 %v289
      %v467 = vunpack.c.l.b16 %v290
      %v468 = vunpack.c.h.b16 %v290
      %v469 = vunpack.c.l.b16 %v291
      %v470 = vunpack.c.h.b16 %v291
      %v471 = vunpack.c.l.b16 %v292
      %v472 = vunpack.c.h.b16 %v292
      %v473 = vunpack.c.l.b16 %v293
      %v474 = vunpack.c.h.b16 %v293
      %v475 = vunpack.c.l.b16 %v294
      %v476 = vunpack.c.h.b16 %v294
      %v477 = vunpack.c.l.b16 %v295
      %v478 = vunpack.c.h.b16 %v295
      %v479 = vpack.c.b16 %v455, %v447
      %v480 = vpack.c.b16 %v456, %v448
      %v481 = vpack.c.b16 %v457, %v449
      %v482 = vpack.c.b16 %v458, %v450
      %v483 = vpack.c.b16 %v459, %v451
      %v484 = vpack.c.b16 %v460, %v452
      %v485 = vpack.c.b16 %v461, %v453
      %v486 = vpack.c.b16 %v462, %v454
      %v487 = vpack.c.b16 %v471, %v463
      %v488 = vpack.c.b16 %v472, %v464
      %v489 = vpack.c.b16 %v473, %v465
      %v490 = vpack.c.b16 %v474, %v466
      %v491 = vpack.c.b16 %v475, %v467
      %v492 = vpack.c.b16 %v476, %v468
      %v493 = vpack.c.b16 %v477, %v469
      %v494 = vpack.c.b16 %v478, %v470
      %v639 = vunpack.c.l.b16 %v296
      %v640 = vunpack.c.l.b16 %v297
      %v641 = vunpack.c.l.b16 %v298
      %v642 = vunpack.c.l.b16 %v299
      %v643 = vunpack.c.l.b16 %v300
      %v644 = vunpack.c.l.b16 %v301
      %v645 = vunpack.c.l.b16 %v302
      %v646 = vunpack.c.l.b16 %v303
      %v647 = vunpack.c.l.b16 %v304
      %v648 = vunpack.c.l.b16 %v305
      %v649 = vunpack.c.l.b16 %v306
      %v650 = vunpack.c.l.b16 %v307
      %v651 = vunpack.c.l.b16 %v308
      %v652 = vunpack.c.l.b16 %v309
      %v653 = vunpack.c.l.b16 %v310
      %v654 = vunpack.c.l.b16 %v311
      %v655 = vunpack.c.l.b16 %v312
      %v656 = vunpack.c.l.b16 %v313
      %v657 = vunpack.c.l.b16 %v314
      %v658 = vunpack.c.l.b16 %v315
      %v659 = vunpack.c.l.b16 %v316
      %v660 = vunpack.c.l.b16 %v317
      %v661 = vunpack.c.l.b16 %v318
      %v662 = vunpack.c.l.b16 %v319
      %v663 = vunpack.c.l.b16 %v320
      %v664 = vunpack.c.l.b16 %v321
      %v665 = vunpack.c.l.b16 %v322
      %v666 = vunpack.c.l.b16 %v323
      %v667 = vunpack.c.l.b16 %v324
      %v668 = vunpack.c.l.b16 %v325
      %v669 = vunpack.c.l.b16 %v326
      %v670 = vunpack.c.l.b16 %v327
      %v671 = vunpack.c.l.b16 %v328
      %v672 = vunpack.c.l.b16 %v329
      %v673 = vunpack.c.l.b16 %v330
      %v674 = vunpack.c.l.b16 %v331
      %v675 = vunpack.c.l.b16 %v332
      %v676 = vunpack.c.l.b16 %v333
      %v677 = vunpack.c.l.b16 %v334
      %v678 = vunpack.c.l.b16 %v335
      %v679 = vunpack.c.l.b16 %v336
      %v680 = vunpack.c.l.b16 %v337
      %v681 = vunpack.c.l.b16 %v338
      %v682 = vunpack.c.l.b16 %v339
      %v683 = vunpack.c.l.b16 %v340
      %v684 = vunpack.c.l.b16 %v341
      %v685 = vunpack.c.l.b16 %v342
      %v686 = vunpack.c.l.b16 %v343
      %v687 = vunpack.c.l.b16 %v344
      %v688 = vunpack.c.l.b16 %v345
      %v689 = vunpack.c.l.b16 %v346
      %v690 = vunpack.c.l.b16 %v347
      %v691 = vunpack.c.l.b16 %v348
      %v692 = vunpack.c.l.b16 %v349
      %v693 = vunpack.c.l.b16 %v350
      %v694 = vunpack.c.l.b16 %v351
      %v695 = vunpack.c.l.b16 %v352
      %v696 = vunpack.c.l.b16 %v353
      %v697 = vunpack.c.l.b16 %v354
      %v698 = vunpack.c.l.b16 %v355
      %v699 = vunpack.c.l.b16 %v356
      %v700 = vunpack.c.l.b16 %v357
      %v701 = vunpack.c.l.b16 %v358
      %v702 = vunpack.c.l.b16 %v359
      %v703 = vunpack.c.l.b16 %v360
      %v704 = vunpack.c.l.b16 %v361
      %v705 = vunpack.c.l.b16 %v362
      %v706 = vunpack.c.l.b16 %v363
      %v707 = vunpack.c.l.b16 %v364
      %v708 = vunpack.c.l.b16 %v365
      %v709 = vunpack.c.l.b16 %v366
      %v710 = vunpack.c.l.b16 %v367
      %v711 = vunpack.c.l.b16 %v368
      %v712 = vunpack.c.l.b16 %v369
      %v713 = vunpack.c.l.b16 %v370
      %v714 = vunpack.c.l.b16 %v371
      %v715 = vunpack.c.l.b16 %v372
      %v716 = vunpack.c.l.b16 %v373
      %v717 = vunpack.c.l.b16 %v374
      %v718 = vunpack.c.l.b16 %v375
      %v719 = vunpack.c.l.b16 %v376
      %v720 = vunpack.c.l.b16 %v377
      %v721 = vunpack.c.l.b16 %v378
      %v722 = vunpack.c.l.b16 %v379
      %v723 = vunpack.c.l.b16 %v380
      %v724 = vunpack.c.l.b16 %v381
      %v725 = vunpack.c.l.b16 %v382
      %v726 = vunpack.c.l.b16 %v383
      %v727 = vunpack.c.l.b16 %v384
      %v728 = vunpack.c.l.b16 %v385
      %v729 = vunpack.c.l.b16 %v386
      %v730 = vunpack.c.l.b16 %v387
      %v731 = vunpack.c.l.b16 %v388
      %v732 = vunpack.c.l.b16 %v389
      %v733 = vunpack.c.l.b16 %v390
      %v734 = vunpack.c.l.b16 %v391
      %v735 = vunpack.c.l.b16 %v392
      %v736 = vunpack.c.l.b16 %v393
      %v737 = vunpack.c.l.b16 %v394
      %v738 = vunpack.c.l.b16 %v395
      %v739 = vunpack.c.l.b16 %v396
      %v740 = vunpack.c.l.b16 %v397
      %v741 = vunpack.c.l.b16 %v398
      %v742 = vunpack.c.l.b16 %v399
      %v743 = vunpack.c.l.b16 %v400
      %v744 = vunpack.c.l.b16 %v401
      %v745 = vunpack.c.l.b16 %v402
      %v746 = vunpack.c.l.b16 %v403
      %v747 = vunpack.c.l.b16 %v404
      %v748 = vunpack.c.l.b16 %v405
      %v749 = vunpack.c.l.b16 %v406
      %v750 = vunpack.c.l.b16 %v407
      %v751 = vunpack.c.l.b16 %v408
      %v752 = vunpack.c.l.b16 %v409
      %v753 = vunpack.c.l.b16 %v410
      %v754 = vunpack.c.l.b16 %v411
      %v755 = vunpack.c.l.b16 %v412
      %v756 = vunpack.c.l.b16 %v413
      %v757 = vunpack.c.l.b16 %v414
      %v758 = vunpack.c.l.b16 %v415
      %v759 = vunpack.c.l.b16 %v416
      %v760 = vunpack.c.l.b16 %v417
      %v761 = vunpack.c.l.b16 %v418
      %v762 = vunpack.c.l.b16 %v419
      %v763 = vunpack.c.l.b16 %v420
      %v764 = vunpack.c.l.b16 %v421
      %v765 = vunpack.c.l.b16 %v422
      %v766 = vunpack.c.l.b16 %v423
      %v767 = vpack.c.b16 %v640, %v639
      %v768 = vpack.c.b16 %v642, %v641
      %v769 = vpack.c.b16 %v644, %v643
      %v770 = vpack.c.b16 %v646, %v645
      %v771 = vpack.c.b16 %v648, %v647
      %v772 = vpack.c.b16 %v650, %v649
      %v773 = vpack.c.b16 %v652, %v651
      %v774 = vpack.c.b16 %v654, %v653
      %v775 = vpack.c.b16 %v656, %v655
      %v776 = vpack.c.b16 %v658, %v657
      %v777 = vpack.c.b16 %v660, %v659
      %v778 = vpack.c.b16 %v662, %v661
      %v779 = vpack.c.b16 %v664, %v663
      %v780 = vpack.c.b16 %v666, %v665
      %v781 = vpack.c.b16 %v668, %v667
      %v782 = vpack.c.b16 %v670, %v669
      %v783 = vpack.c.b16 %v672, %v671
      %v784 = vpack.c.b16 %v674, %v673
      %v785 = vpack.c.b16 %v676, %v675
      %v786 = vpack.c.b16 %v678, %v677
      %v787 = vpack.c.b16 %v680, %v679
      %v788 = vpack.c.b16 %v682, %v681
      %v789 = vpack.c.b16 %v684, %v683
      %v790 = vpack.c.b16 %v686, %v685
      %v791 = vpack.c.b16 %v688, %v687
      %v792 = vpack.c.b16 %v690, %v689
      %v793 = vpack.c.b16 %v692, %v691
      %v794 = vpack.c.b16 %v694, %v693
      %v795 = vpack.c.b16 %v696, %v695
      %v796 = vpack.c.b16 %v698, %v697
      %v797 = vpack.c.b16 %v700, %v699
      %v798 = vpack.c.b16 %v702, %v701
      %v799 = vpack.c.b16 %v704, %v703
      %v800 = vpack.c.b16 %v706, %v705
      %v801 = vpack.c.b16 %v708, %v707
      %v802 = vpack.c.b16 %v710, %v709
      %v803 = vpack.c.b16 %v712, %v711
      %v804 = vpack.c.b16 %v714, %v713
      %v805 = vpack.c.b16 %v716, %v715
      %v806 = vpack.c.b16 %v718, %v717
      %v807 = vpack.c.b16 %v720, %v719
      %v808 = vpack.c.b16 %v722, %v721
      %v809 = vpack.c.b16 %v724, %v723
      %v810 = vpack.c.b16 %v726, %v725
      %v811 = vpack.c.b16 %v728, %v727
      %v812 = vpack.c.b16 %v730, %v729
      %v813 = vpack.c.b16 %v732, %v731
      %v814 = vpack.c.b16 %v734, %v733
      %v815 = vpack.c.b16 %v736, %v735
      %v816 = vpack.c.b16 %v738, %v737
      %v817 = vpack.c.b16 %v740, %v739
      %v818 = vpack.c.b16 %v742, %v741
      %v819 = vpack.c.b16 %v744, %v743
      %v820 = vpack.c.b16 %v746, %v745
      %v821 = vpack.c.b16 %v748, %v747
      %v822 = vpack.c.b16 %v750, %v749
      %v823 = vpack.c.b16 %v752, %v751
      %v824 = vpack.c.b16 %v754, %v753
      %v825 = vpack.c.b16 %v756, %v755
      %v826 = vpack.c.b16 %v758, %v757
      %v827 = vpack.c.b16 %v760, %v759
      %v828 = vpack.c.b16 %v762, %v761
      %v829 = vpack.c.b16 %v764, %v763
      %v830 = vpack.c.b16 %v766, %v765
      %895 = vmatprep.subr.bf16.mxu0 0
      %896 = vmatpush1.bf16.msra.mxu0 %v767
      %897 = vmatprep.subr.bf16.mxu0 0
      %898 = vmatpush1.bf16.msra.mxu0 %v768
      %899 = vmatprep.subr.bf16.mxu0 0
      %900 = vmatpush1.bf16.msra.mxu0 %v769
      %901 = vmatprep.subr.bf16.mxu0 0
      %902 = vmatpush1.bf16.msra.mxu0 %v770
      %903 = vmatprep.subr.bf16.mxu0 0
      %904 = vmatpush1.bf16.msra.mxu0 %v771
      %905 = vmatprep.subr.bf16.mxu0 0
      %906 = vmatpush1.bf16.msra.mxu0 %v772
      %907 = vmatprep.subr.bf16.mxu0 0
      %908 = vmatpush1.bf16.msra.mxu0 %v773
      %909 = vmatprep.subr.bf16.mxu0 0
      %910 = vmatpush1.bf16.msra.mxu0 %v774
      %911 = vmatprep.subr.bf16.mxu0 0
      %912 = vmatpush1.bf16.msra.mxu0 %v775
      %913 = vmatprep.subr.bf16.mxu0 0
      %914 = vmatpush1.bf16.msra.mxu0 %v776
      %915 = vmatprep.subr.bf16.mxu0 0
      %916 = vmatpush1.bf16.msra.mxu0 %v777
      %917 = vmatprep.subr.bf16.mxu0 0
      %918 = vmatpush1.bf16.msra.mxu0 %v778
      %919 = vmatprep.subr.bf16.mxu0 0
      %920 = vmatpush1.bf16.msra.mxu0 %v779
      %921 = vmatprep.subr.bf16.mxu0 0
      %922 = vmatpush1.bf16.msra.mxu0 %v780
      %923 = vmatprep.subr.bf16.mxu0 0
      %924 = vmatpush1.bf16.msra.mxu0 %v781
      %925 = vmatprep.subr.bf16.mxu0 0
      %926 = vmatpush1.bf16.msra.mxu0 %v782
      %927 = vmatprep.mubr.bf16.mxu0 %v480
      %928 = vmatmul.mubr.bf16.gmra.mrb[0].mxu0 %v479
      %v929 = vpop.f32.mrb[0].mxu0
      %v930 = vadd.f32 %v429, %v929
      %v931 = vpop.f32.mrb[0].mxu0
      %v932 = vpop.f32.mrb[0].mxu0
      %v933 = vadd.f32 %v429, %v932
      %v934 = vpop.f32.mrb[0].mxu0
      %935 = vmatprep.mubr.bf16.mxu0 %v488
      %936 = vmatmul.mubr.bf16.gmra.mrb[0].mxu0 %v487
      %v937 = vpop.f32.mrb[0].mxu0
      %v938 = vadd.f32 %v429, %v937
      %v939 = vpop.f32.mrb[0].mxu0
      %v940 = vpop.f32.mrb[0].mxu0
      %v941 = vadd.f32 %v429, %v940
      %v942 = vpop.f32.mrb[0].mxu0
      %943 = vdwg.mxu0
      %944 = vmatprep.subr.bf16.mxu0 0
      %945 = vmatpush1.bf16.msra.mxu0 %v783
      %946 = vmatprep.subr.bf16.mxu0 0
      %947 = vmatpush1.bf16.msra.mxu0 %v784
      %948 = vmatprep.subr.bf16.mxu0 0
      %949 = vmatpush1.bf16.msra.mxu0 %v785
      %950 = vmatprep.subr.bf16.mxu0 0
      %951 = vmatpush1.bf16.msra.mxu0 %v786
      %952 = vmatprep.subr.bf16.mxu0 0
      %953 = vmatpush1.bf16.msra.mxu0 %v787
      %954 = vmatprep.subr.bf16.mxu0 0
      %955 = vmatpush1.bf16.msra.mxu0 %v788
      %956 = vmatprep.subr.bf16.mxu0 0
      %957 = vmatpush1.bf16.msra.mxu0 %v789
      %958 = vmatprep.subr.bf16.mxu0 0
      %959 = vmatpush1.bf16.msra.mxu0 %v790
      %960 = vmatprep.subr.bf16.mxu0 0
      %961 = vmatpush1.bf16.msra.mxu0 %v791
      %962 = vmatprep.subr.bf16.mxu0 0
      %963 = vmatpush1.bf16.msra.mxu0 %v792
      %964 = vmatprep.subr.bf16.mxu0 0
      %965 = vmatpush1.bf16.msra.mxu0 %v793
      %966 = vmatprep.subr.bf16.mxu0 0
      %967 = vmatpush1.bf16.msra.mxu0 %v794
      %968 = vmatprep.subr.bf16.mxu0 0
      %969 = vmatpush1.bf16.msra.mxu0 %v795
      %970 = vmatprep.subr.bf16.mxu0 0
      %971 = vmatpush1.bf16.msra.mxu0 %v796
      %972 = vmatprep.subr.bf16.mxu0 0
      %973 = vmatpush1.bf16.msra.mxu0 %v797
      %974 = vmatprep.subr.bf16.mxu0 0
      %975 = vmatpush1.bf16.msra.mxu0 %v798
      %976 = vmatprep.mubr.bf16.mxu0 %v482
      %977 = vmatmul.mubr.bf16.gmra.mrb[0].mxu0 %v481
      %v978 = vpop.f32.mrb[0].mxu0
      %v979 = vadd.f32 %v930, %v978
      %v980 = vpop.f32.mrb[0].mxu0
      %v981 = vpop.f32.mrb[0].mxu0
      %v982 = vadd.f32 %v933, %v981
      %v983 = vpop.f32.mrb[0].mxu0
      %984 = vmatprep.mubr.bf16.mxu0 %v490
      %985 = vmatmul.mubr.bf16.gmra.mrb[0].mxu0 %v489
      %v986 = vpop.f32.mrb[0].mxu0
      %v987 = vadd.f32 %v938, %v986
      %v988 = vpop.f32.mrb[0].mxu0
      %v989 = vpop.f32.mrb[0].mxu0
      %v990 = vadd.f32 %v941, %v989
      %v991 = vpop.f32.mrb[0].mxu0
      %992 = vdwg.mxu0
      %993 = vmatprep.subr.bf16.mxu0 0
      %994 = vmatpush1.bf16.msra.mxu0 %v799
      %995 = vmatprep.subr.bf16.mxu0 0
      %996 = vmatpush1.bf16.msra.mxu0 %v800
      %997 = vmatprep.subr.bf16.mxu0 0
      %998 = vmatpush1.bf16.msra.mxu0 %v801
      %999 = vmatprep.subr.bf16.mxu0 0
      %1000 = vmatpush1.bf16.msra.mxu0 %v802
      %1001 = vmatprep.subr.bf16.mxu0 0
      %1002 = vmatpush1.bf16.msra.mxu0 %v803
      %1003 = vmatprep.subr.bf16.mxu0 0
      %1004 = vmatpush1.bf16.msra.mxu0 %v804
      %1005 = vmatprep.subr.bf16.mxu0 0
      %1006 = vmatpush1.bf16.msra.mxu0 %v805
      %1007 = vmatprep.subr.bf16.mxu0 0
      %1008 = vmatpush1.bf16.msra.mxu0 %v806
      %1009 = vmatprep.subr.bf16.mxu0 0
      %1010 = vmatpush1.bf16.msra.mxu0 %v807
      %1011 = vmatprep.subr.bf16.mxu0 0
      %1012 = vmatpush1.bf16.msra.mxu0 %v808
      %1013 = vmatprep.subr.bf16.mxu0 0
      %1014 = vmatpush1.bf16.msra.mxu0 %v809
      %1015 = vmatprep.subr.bf16.mxu0 0
      %1016 = vmatpush1.bf16.msra.mxu0 %v810
      %1017 = vmatprep.subr.bf16.mxu0 0
      %1018 = vmatpush1.bf16.msra.mxu0 %v811
      %1019 = vmatprep.subr.bf16.mxu0 0
      %1020 = vmatpush1.bf16.msra.mxu0 %v812
      %1021 = vmatprep.subr.bf16.mxu0 0
      %1022 = vmatpush1.bf16.msra.mxu0 %v813
      %1023 = vmatprep.subr.bf16.mxu0 0
      %1024 = vmatpush1.bf16.msra.mxu0 %v814
      %1025 = vmatprep.mubr.bf16.mxu0 %v484
      %1026 = vmatmul.mubr.bf16.gmra.mrb[0].mxu0 %v483
      %v1027 = vpop.f32.mrb[0].mxu0
      %v1028 = vadd.f32 %v979, %v1027
      %v1029 = vpop.f32.mrb[0].mxu0
      %v1030 = vpop.f32.mrb[0].mxu0
      %v1031 = vadd.f32 %v982, %v1030
      %v1032 = vpop.f32.mrb[0].mxu0
      %1033 = vmatprep.mubr.bf16.mxu0 %v492
      %1034 = vmatmul.mubr.bf16.gmra.mrb[0].mxu0 %v491
      %v1035 = vpop.f32.mrb[0].mxu0
      %v1036 = vadd.f32 %v987, %v1035
      %v1037 = vpop.f32.mrb[0].mxu0
      %v1038 = vpop.f32.mrb[0].mxu0
      %v1039 = vadd.f32 %v990, %v1038
      %v1040 = vpop.f32.mrb[0].mxu0
      %1041 = vdwg.mxu0
      %1042 = vmatprep.subr.bf16.mxu0 0
      %1043 = vmatpush1.bf16.msra.mxu0 %v815
      %1044 = vmatprep.subr.bf16.mxu0 0
      %1045 = vmatpush1.bf16.msra.mxu0 %v816
      %1046 = vmatprep.subr.bf16.mxu0 0
      %1047 = vmatpush1.bf16.msra.mxu0 %v817
      %1048 = vmatprep.subr.bf16.mxu0 0
      %1049 = vmatpush1.bf16.msra.mxu0 %v818
      %1050 = vmatprep.subr.bf16.mxu0 0
      %1051 = vmatpush1.bf16.msra.mxu0 %v819
      %1052 = vmatprep.subr.bf16.mxu0 0
      %1053 = vmatpush1.bf16.msra.mxu0 %v820
      %1054 = vmatprep.subr.bf16.mxu0 0
      %1055 = vmatpush1.bf16.msra.mxu0 %v821
      %1056 = vmatprep.subr.bf16.mxu0 0
      %1057 = vmatpush1.bf16.msra.mxu0 %v822
      %1058 = vmatprep.subr.bf16.mxu0 0
      %1059 = vmatpush1.bf16.msra.mxu0 %v823
      %1060 = vmatprep.subr.bf16.mxu0 0
      %1061 = vmatpush1.bf16.msra.mxu0 %v824
      %1062 = vmatprep.subr.bf16.mxu0 0
      %1063 = vmatpush1.bf16.msra.mxu0 %v825
      %1064 = vmatprep.subr.bf16.mxu0 0
      %1065 = vmatpush1.bf16.msra.mxu0 %v826
      %1066 = vmatprep.subr.bf16.mxu0 0
      %1067 = vmatpush1.bf16.msra.mxu0 %v827
      %1068 = vmatprep.subr.bf16.mxu0 0
      %1069 = vmatpush1.bf16.msra.mxu0 %v828
      %1070 = vmatprep.subr.bf16.mxu0 0
      %1071 = vmatpush1.bf16.msra.mxu0 %v829
      %1072 = vmatprep.subr.bf16.mxu0 0
      %1073 = vmatpush1.bf16.msra.mxu0 %v830
      %1074 = vmatprep.mubr.bf16.mxu0 %v486
      %1075 = vmatmul.mubr.bf16.gmra.mrb[0].mxu0 %v485
      %v1076 = vpop.f32.mrb[0].mxu0
      %v1077 = vadd.f32 %v1028, %v1076
      %v1078 = vpop.f32.mrb[0].mxu0
      %v1079 = vpop.f32.mrb[0].mxu0
      %v1080 = vadd.f32 %v1031, %v1079
      %v1081 = vpop.f32.mrb[0].mxu0
      %1082 = vmatprep.mubr.bf16.mxu0 %v494
      %1083 = vmatmul.mubr.bf16.gmra.mrb[0].mxu0 %v493
      %v1084 = vpop.f32.mrb[0].mxu0
      %v1085 = vadd.f32 %v1036, %v1084
      %v1086 = vpop.f32.mrb[0].mxu0
      %v1087 = vpop.f32.mrb[0].mxu0
      %v1088 = vadd.f32 %v1039, %v1087
      %v1089 = vpop.f32.mrb[0].mxu0
      %1090 = vdwg.mxu0
      %1091 = vst [vmem:[%s270] sm:$0xff] %v1077
      %1092 = vst [vmem:[%s270 + $0x8] sm:$0xff] %v1080
      %1093 = vst [vmem:[%s270 + $0x10] sm:$0xff] %v1085
      %1094 = vst [vmem:[%s270 + $0x18] sm:$0xff] %v1088
      %v1095 = vadd.f32 %v1077, %v1080
      %v1096 = vadd.f32 %v1095, %v1085
      %v1097 = vadd.f32 %v1096, %v1088
      %v1098 = vrot.slane %v1097, 4
      %v1099 = vadd.f32 %v1097, %v1098
      %v1100 = vrot.slane %v1099, 2
      %v1101 = vadd.f32 %v1099, %v1100
      %v1102 = vrot.slane %v1101, 1
      %v1103 = vadd.f32 %v1101, %v1102
      %v1104 = vmul.f32 %v1077, %v1077
      %v1105 = vmul.f32 %v1080, %v1080
      %v1106 = vmul.f32 %v1085, %v1085
      %v1107 = vmul.f32 %v1088, %v1088
      %v1108 = vadd.f32 %v1104, %v1105
      %v1109 = vadd.f32 %v1108, %v1106
      %v1110 = vadd.f32 %v1109, %v1107
      %v1111 = vrot.slane %v1110, 4
      %v1112 = vadd.f32 %v1110, %v1111
      %v1113 = vrot.slane %v1112, 2
      %v1114 = vadd.f32 %v1112, %v1113
      %v1115 = vrot.slane %v1114, 1
      %v1116 = vadd.f32 %v1114, %v1115
      %vm1117 = vcmask 1040384
      %v1118 = vsel %vm1117, %v1103, %v1116
      %1119 = vst [vmem:[%s278] sm:$0x3] %v1118
      %s1120 = smul.u32 4, %s21
      %p1121 = scmp.lt.s32.totalorder %s20, 3
      %s1122 = scalar_select %p1121, %s20, 3
      %p1123 = scmp.lt.s32.totalorder %s1120, 3
      %s1124 = scalar_select %p1123, %s1120, 3
      %s1125 = smul.addr %s1122, 4
      %s1126 = sadd.s32 %s1124, %s1125
      %s1127 = smul.addr %s1126, 8
      %s1128 = scalar_lea.vmem %s3, %s1127
      %p1129 = scmp.lt.s32.totalorder %s20, 3
      %s1130 = scalar_select %p1129, %s20, 3
      %p1131 = scmp.lt.s32.totalorder %s21, 0
      %s1132 = scalar_select %p1131, %s21, 0
      %s1133 = sadd.s32 %s1132, %s1130
      %s1134 = smul.addr %s1133, 2
      %s1135 = scalar_lea.vmem %s4, %s1134
      // Predicated region
      $region33: #{_lambda_.9} parent=31 // pred_check
        %p1136 = pneg %p123
      $region34: #{_lambda_.9} parent=31 // pred_check_branch
        %1138 = sbr.rel (%p1136) target = $region36
      $region35: #{_lambda_.9} parent=31 // pred_region
        %s1139 = smul.u32 4, %s21
      $region36: #{_lambda_.9} parent=31 // pred_fallthru
        _
      // Predicated region
      $region37: #{_lambda_.9} parent=31 // pred_check
        %p1140 = pneg %p151
      $region38: #{_lambda_.9} parent=31 // pred_check_branch
        %1142 = sbr.rel (%p1140) target = $region40
      $region39: #{_lambda_.9} parent=31 // pred_region
        _
      $region40: #{_lambda_.9} parent=31 // pred_fallthru
        _
    $region32: #{_lambda_.9} parent=5 // pred_fallthru
      _
    %p1143 = scmp.le.s32.totalorder 2, %s11
    // Predicated region
    $region41: #{_lambda_.9} parent=5 // pred_check
      %p1144 = pneg %p1143
    $region42: #{_lambda_.9} parent=5 // pred_check_branch
      %1146 = sbr.rel (%p1144) target = $region44
    $region43: #{_lambda_.9} parent=5 // pred_region
      %s1147 = ssub.s32 %s11, 2
      // Predicated region
      $region45: #{_lambda_.9} parent=43 // pred_check
        %p1148 = pneg %p129
      $region46: #{_lambda_.9} parent=43 // pred_check_branch
        %1150 = sbr.rel (%p1148) target = $region48
      $region47: #{_lambda_.9} parent=43 // pred_region
        %s1151 = smul.u32 4, %s23
        %p1152 = scmp.lt.s32.totalorder %s22, 3
        %s1153 = scalar_select %p1152, %s22, 3
        %p1154 = scmp.lt.s32.totalorder %s1151, 3
        %s1155 = scalar_select %p1154, %s1151, 3
        %s1156 = smul.addr %s1153, 4
        %s1157 = sadd.s32 %s1155, %s1156
        %s1158 = smul.addr %s1157, 8
        %s1159 = scalar_lea.vmem %s3, %s1158
      $region48: #{_lambda_.9} parent=43 // pred_fallthru
        _
      // Predicated region
      $region49: #{_lambda_.9} parent=43 // pred_check
        %p1160 = pneg %p157
      $region50: #{_lambda_.9} parent=43 // pred_check_branch
        %1162 = sbr.rel (%p1160) target = $region52
      $region51: #{_lambda_.9} parent=43 // pred_region
        %p1163 = scmp.lt.s32.totalorder %s22, 3
        %s1164 = scalar_select %p1163, %s22, 3
        %p1165 = scmp.lt.s32.totalorder %s23, 0
        %s1166 = scalar_select %p1165, %s23, 0
        %s1167 = sadd.s32 %s1166, %s1164
        %s1168 = smul.addr %s1167, 2
        %s1169 = scalar_lea.vmem %s4, %s1168
      $region52: #{_lambda_.9} parent=43 // pred_fallthru
        _
    $region44: #{_lambda_.9} parent=5 // pred_fallthru
      _
  $region6: #{_lambda_.9} parent=0 // loop_footer
    %s15 = sadd.s32 1, %s11
  $region7: #{_lambda_.9} parent=0 // loop_footer_branch
    %10 = sbr.rel target = $region3
  $region8: #{_lambda_.9} parent=0 // loop_exit
    _

// kernel: _lambda_.11
$region0: #{_lambda_.11}
  #allocation0 [shape = 'u32[]', space=smem, size = 0x4, offset = 0x4, fixed_abs, tag = 'smem constant byte address 0x4 - core index']
  #allocation1 [shape = 'u32[144,128]{1,0:T(1,128)}', space=vmem, size = 0x12000, scoped, tag = 'internal scratch']
  %s0 = inlined_call_operand.vmem [shape: bf16[4,128,512], index: 0, kind: input, shape index: {}]
  %s1 = inlined_call_operand.vmem [shape: bf16[4,512,64], index: 1, kind: input, shape index: {}]
  %s2 = inlined_call_operand.vmem [shape: f32[1,64], index: 2, kind: input, shape index: {}]
  %s3 = inlined_call_operand.vmem [shape: f32[4,128,64], index: 3, kind: output, shape index: {0}]
  %s4 = inlined_call_operand.vmem [shape: f32[4,1,2,64], index: 4, kind: output, shape index: {1}]
  %5 = xla_tuple %s3, %s4
  %s6 = sld [smem:[#allocation0]]
  $region53: #{_lambda_.11} parent=0
    _
  %s8 = ssub.s32 1, %s6
  %s9 = scalar_select 0, %s8, %s6
  loop: start=0, step=1, limit=6
  $region2: #{_lambda_.11} parent=0 // loop_pre_header
    _
  $region3: #{_lambda_.11} parent=0 // loop_header
    %s11 = sphi 0, %s15
    %p12 = scmp.ge.s32.totalorder %s11, 6
    %s18 = sphi 0, %s30
    %s19 = sphi 0, %s26
    %s20 = sphi 0, %s18
    %s21 = sphi 0, %s19
    %s22 = sphi 0, %s20
    %s23 = sphi 0, %s21
    %s35 = sphi 0, %s37
    %s38 = sphi 0, %s35
    %s39 = sphi 0, %s38
    %s55 = sphi 0, %s39
    %s61 = sphi 0, %s63
    %s64 = sphi 0, %s61
    %s65 = sphi 0, %s64
    %s81 = sphi 0, %s65
    %s85 = sphi 0, %s85
    %s87 = sphi 0, %s85
    %s88 = sphi 0, %s87
    %s102 = sphi 0, %s88
    %s110 = sphi 0, %s112
    %s113 = sphi 0, %s110
    %s114 = sphi 0, %s113
    %s130 = sphi 0, %s114
    %s138 = sphi 0, %s140
    %s141 = sphi 0, %s138
    %s142 = sphi 0, %s141
    %s158 = sphi 0, %s142
  $region4: #{_lambda_.11} parent=0 // loop_header_branch
    %14 = sbr.rel (%p12) target = $region8
  $region5: #{_lambda_.11} parent=0 // loop_body
    %s16 = ssub.s32 %s11, 1
    %s17 = ssub.s32 %s11, 2
    %s24 = sadd.s32 1, %s19
    %p25 = scmp.ge.s32.totalorder %s24, 1
    %s26 = scalar_select %p25, 0, %s24
    %s27 = sadd.s32 1, %s18
    %s28 = scalar_select %p25, %s27, %s18
    %p29 = scmp.ge.s32.totalorder %s28, 4
    %s30 = scalar_select %p29, 0, %s28
    %s31 = ssub.s32 %s18, %s30
    %s32 = ssub.s32 %s19, %s26
    %s33 = sor.u32 %s31, %s32
    %p34 = scmp.eq.s32.totalorder %s33, 0
    %s36 = sadd.s32 %s35, 1
    %s37 = scalar_select %p34, %s35, %s36
    %p40 = pneg %p34
    %p41 = scmp.eq.s32.totalorder %s11, 3
    %p42 = por %p40, %p41
    %p43 = scmp.ne.s32.totalorder %s35, %s38
    %p44 = scmp.eq.s32.totalorder %s11, 0
    %p45 = por %p43, %p44
    %p46 = scmp.ne.s32.totalorder %s35, %s38
    %p47 = scmp.eq.s32.totalorder %s16, 3
    %p48 = por %p46, %p47
    %p49 = scmp.ne.s32.totalorder %s38, %s39
    %p50 = scmp.eq.s32.totalorder %s16, 0
    %p51 = por %p49, %p50
    %p52 = scmp.ne.s32.totalorder %s38, %s39
    %p53 = scmp.eq.s32.totalorder %s17, 3
    %p54 = por %p52, %p53
    %p56 = scmp.ne.s32.totalorder %s39, %s55
    %p57 = scmp.eq.s32.totalorder %s17, 0
    %p58 = por %p56, %p57
    %s59 = ssub.s32 %s18, %s30
    %p60 = scmp.eq.s32.totalorder %s59, 0
    %s62 = sadd.s32 %s61, 1
    %s63 = scalar_select %p60, %s61, %s62
    %p66 = pneg %p60
    %p67 = scmp.eq.s32.totalorder %s11, 3
    %p68 = por %p66, %p67
    %p69 = scmp.ne.s32.totalorder %s61, %s64
    %p70 = scmp.eq.s32.totalorder %s11, 0
    %p71 = por %p69, %p70
    %p72 = scmp.ne.s32.totalorder %s61, %s64
    %p73 = scmp.eq.s32.totalorder %s16, 3
    %p74 = por %p72, %p73
    %p75 = scmp.ne.s32.totalorder %s64, %s65
    %p76 = scmp.eq.s32.totalorder %s16, 0
    %p77 = por %p75, %p76
    %p78 = scmp.ne.s32.totalorder %s64, %s65
    %p79 = scmp.eq.s32.totalorder %s17, 3
    %p80 = por %p78, %p79
    %p82 = scmp.ne.s32.totalorder %s65, %s81
    %p83 = scmp.eq.s32.totalorder %s17, 0
    %p84 = por %p82, %p83
    %s86 = sadd.s32 %s85, 1
    %p89 = scmp.eq.s32.totalorder %s11, 3
    %p90 = scmp.ne.s32.totalorder %s85, %s87
    %p91 = scmp.eq.s32.totalorder %s11, 0
    %p92 = por %p90, %p91
    %p93 = scmp.ne.s32.totalorder %s85, %s87
    %p94 = scmp.eq.s32.totalorder %s16, 3
    %p95 = por %p93, %p94
    %p96 = scmp.ne.s32.totalorder %s87, %s88
    %p97 = scmp.eq.s32.totalorder %s16, 0
    %p98 = por %p96, %p97
    %p99 = scmp.ne.s32.totalorder %s87, %s88
    %p100 = scmp.eq.s32.totalorder %s17, 3
    %p101 = por %p99, %p100
    %p103 = scmp.ne.s32.totalorder %s88, %s102
    %p104 = scmp.eq.s32.totalorder %s17, 0
    %p105 = por %p103, %p104
    %s106 = ssub.s32 %s18, %s30
    %s107 = ssub.s32 %s19, %s26
    %s108 = sor.u32 %s106, %s107
    %p109 = scmp.eq.s32.totalorder %s108, 0
    %s111 = sadd.s32 %s110, 1
    %s112 = scalar_select %p109, %s110, %s111
    %p115 = pneg %p109
    %p116 = scmp.eq.s32.totalorder %s11, 3
    %p117 = por %p115, %p116
    %p118 = scmp.ne.s32.totalorder %s110, %s113
    %p119 = scmp.eq.s32.totalorder %s11, 0
    %p120 = por %p118, %p119
    %p121 = scmp.ne.s32.totalorder %s110, %s113
    %p122 = scmp.eq.s32.totalorder %s16, 3
    %p123 = por %p121, %p122
    %p124 = scmp.ne.s32.totalorder %s113, %s114
    %p125 = scmp.eq.s32.totalorder %s16, 0
    %p126 = por %p124, %p125
    %p127 = scmp.ne.s32.totalorder %s113, %s114
    %p128 = scmp.eq.s32.totalorder %s17, 3
    %p129 = por %p127, %p128
    %p131 = scmp.ne.s32.totalorder %s114, %s130
    %p132 = scmp.eq.s32.totalorder %s17, 0
    %p133 = por %p131, %p132
    %s134 = ssub.s32 %s18, %s30
    %s135 = ssub.s32 %s19, %s26
    %s136 = sor.u32 %s134, %s135
    %p137 = scmp.eq.s32.totalorder %s136, 0
    %s139 = sadd.s32 %s138, 1
    %s140 = scalar_select %p137, %s138, %s139
    %p143 = pneg %p137
    %p144 = scmp.eq.s32.totalorder %s11, 3
    %p145 = por %p143, %p144
    %p146 = scmp.ne.s32.totalorder %s138, %s141
    %p147 = scmp.eq.s32.totalorder %s11, 0
    %p148 = por %p146, %p147
    %p149 = scmp.ne.s32.totalorder %s138, %s141
    %p150 = scmp.eq.s32.totalorder %s16, 3
    %p151 = por %p149, %p150
    %p152 = scmp.ne.s32.totalorder %s141, %s142
    %p153 = scmp.eq.s32.totalorder %s16, 0
    %p154 = por %p152, %p153
    %p155 = scmp.ne.s32.totalorder %s141, %s142
    %p156 = scmp.eq.s32.totalorder %s17, 3
    %p157 = por %p155, %p156
    %p159 = scmp.ne.s32.totalorder %s142, %s158
    %p160 = scmp.eq.s32.totalorder %s17, 0
    %p161 = por %p159, %p160
    %p162 = scmp.le.s32.totalorder 1, %s11
    %p163 = scmp.lt.s32.totalorder %s11, 5
    %p164 = pnand %p162, %p163
    %p165 = pneg %p164
    // Predicated region
    $region9: #{_lambda_.11} parent=5 // pred_check
      _
    $region10: #{_lambda_.11} parent=5 // pred_check_branch
      %167 = sbr.rel (%p164) target = $region12
    $region11: #{_lambda_.11} parent=5 // pred_region
      %s168 = ssub.s32 %s11, 1
      // Predicated region
      $region13: #{_lambda_.11} parent=11 // pred_check
        %p169 = pneg %p98
      $region14: #{_lambda_.11} parent=11 // pred_check_branch
        %171 = sbr.rel (%p169) target = $region16
      $region15: #{_lambda_.11} parent=11 // pred_region
        _
      $region16: #{_lambda_.11} parent=11 // pred_fallthru
        _
    $region12: #{_lambda_.11} parent=5 // pred_fallthru
      _
    %p172 = scmp.lt.s32.totalorder %s11, 4
    // Predicated region
    $region17: #{_lambda_.11} parent=5 // pred_check
      %p173 = pneg %p172
    $region18: #{_lambda_.11} parent=5 // pred_check_branch
      %175 = sbr.rel (%p173) target = $region20
    $region19: #{_lambda_.11} parent=5 // pred_region
      // Predicated region
      $region21: #{_lambda_.11} parent=19 // pred_check
        %p176 = pneg %p45
      $region22: #{_lambda_.11} parent=19 // pred_check_branch
        %178 = sbr.rel (%p176) target = $region24
      $region23: #{_lambda_.11} parent=19 // pred_region
        %s179 = smul.u32 16, %s19
        %p180 = scmp.lt.s32.totalorder %s18, 3
        %s181 = scalar_select %p180, %s18, 3
        %p182 = scmp.lt.s32.totalorder %s179, 15
        %s183 = scalar_select %p182, %s179, 15
        %s184 = smul.addr %s183, 4
        %s185 = smul.addr %s181, 64
        %s186 = sadd.s32 %s184, %s185
        %s187 = smul.addr %s186, 4
        %s188 = scalar_lea.vmem %s0, %s187
        %s189 = smul.u32 16, %s19
      $region24: #{_lambda_.11} parent=19 // pred_fallthru
        _
      // Predicated region
      $region25: #{_lambda_.11} parent=19 // pred_check
        %p190 = pneg %p71
      $region26: #{_lambda_.11} parent=19 // pred_check_branch
        %192 = sbr.rel (%p190) target = $region28
      $region27: #{_lambda_.11} parent=19 // pred_region
        %p193 = scmp.lt.s32.totalorder %s18, 3
        %s194 = scalar_select %p193, %s18, 3
        %s195 = smul.addr %s194, 64
        %s196 = smul.addr %s195, 4
        %s197 = scalar_lea.vmem %s1, %s196
      $region28: #{_lambda_.11} parent=19 // pred_fallthru
        _
    $region20: #{_lambda_.11} parent=5 // pred_fallthru
      _
    %p198 = scmp.le.s32.totalorder 1, %s11
    %p199 = scmp.lt.s32.totalorder %s11, 5
    %p200 = pnand %p198, %p199
    %p201 = pneg %p200
    // Predicated region
    $region29: #{_lambda_.11} parent=5 // pred_check
      _
    $region30: #{_lambda_.11} parent=5 // pred_check_branch
      %203 = sbr.rel (%p200) target = $region32
    $region31: #{_lambda_.11} parent=5 // pred_region
      %s204 = ssub.s32 %s11, 1
      %s205 = smul.u32 16, %s21
      %p206 = scmp.lt.s32.totalorder %s20, 3
      %s207 = scalar_select %p206, %s20, 3
      %p208 = scmp.lt.s32.totalorder %s205, 15
      %s209 = scalar_select %p208, %s205, 15
      %s210 = smul.addr %s209, 4
      %s211 = smul.addr %s207, 64
      %s212 = sadd.s32 %s210, %s211
      %s213 = smul.addr %s212, 4
      %s214 = scalar_lea.vmem %s0, %s213
      %p215 = pneg %p51
      %p216 = pneg %p48
      %p217 = scmp.lt.s32.totalorder %s20, 3
      %s218 = scalar_select %p217, %s20, 3
      %s219 = smul.addr %s218, 64
      %s220 = smul.addr %s219, 4
      %s221 = scalar_lea.vmem %s1, %s220
      %p222 = pneg %p77
      %p223 = pneg %p74
      %p224 = pneg %p98
      %p225 = pneg %p95
      %p226 = pneg %p126
      %p227 = pneg %p123
      %s228 = smul.u32 16, %s21
      %p229 = scmp.lt.s32.totalorder %s20, 3
      %s230 = scalar_select %p229, %s20, 3
      %p231 = scmp.lt.s32.totalorder %s228, 15
      %s232 = scalar_select %p231, %s228, 15
      %s233 = smul.addr %s230, 16
      %s234 = sadd.s32 %s232, %s233
      %s235 = smul.addr %s234, 8
      %s236 = scalar_lea.vmem %s3, %s235
      %p237 = pneg %p154
      %p238 = pneg %p151
      %p239 = scmp.lt.s32.totalorder %s20, 3
      %s240 = scalar_select %p239, %s20, 3
      %p241 = scmp.lt.s32.totalorder %s21, 0
      %s242 = scalar_select %p241, %s21, 0
      %s243 = sadd.s32 %s242, %s240
      %s244 = smul.addr %s243, 2
      %s245 = scalar_lea.vmem %s4, %s244
      %s246 = smul.u32 16, %s21
      %p247 = scmp.lt.s32.totalorder %s20, 3
      %s248 = scalar_select %p247, %s20, 3
      %p249 = scmp.lt.s32.totalorder %s246, 15
      %s250 = scalar_select %p249, %s246, 15
      %s251 = smul.addr %s250, 4
      %s252 = smul.addr %s248, 64
      %s253 = sadd.s32 %s251, %s252
      %s254 = smul.addr %s253, 4
      %s255 = scalar_lea.vmem %s0, %s254
      %s256 = smul.u32 16, %s21
      %p257 = scmp.lt.s32.totalorder %s20, 3
      %s258 = scalar_select %p257, %s20, 3
      %s259 = smul.addr %s258, 64
      %s260 = smul.addr %s259, 4
      %s261 = scalar_lea.vmem %s1, %s260
      %s262 = smul.u32 16, %s21
      %p263 = scmp.lt.s32.totalorder %s20, 3
      %s264 = scalar_select %p263, %s20, 3
      %p265 = scmp.lt.s32.totalorder %s262, 15
      %s266 = scalar_select %p265, %s262, 15
      %s267 = smul.addr %s264, 16
      %s268 = sadd.s32 %s266, %s267
      %s269 = smul.addr %s268, 8
      %s270 = scalar_lea.vmem %s3, %s269
      %s271 = smul.u32 16, %s21
      %p272 = scmp.lt.s32.totalorder %s20, 3
      %s273 = scalar_select %p272, %s20, 3
      %p274 = scmp.lt.s32.totalorder %s21, 0
      %s275 = scalar_select %p274, %s21, 0
      %s276 = sadd.s32 %s275, %s273
      %s277 = smul.addr %s276, 2
      %s278 = scalar_lea.vmem %s4, %s277
      %v280 = vld [vmem:[%s255] sm:$0xff]
      %v281 = vld [vmem:[%s255 + $0x8] sm:$0xff]
      %v282 = vld [vmem:[%s255 + $0x10] sm:$0xff]
      %v283 = vld [vmem:[%s255 + $0x18] sm:$0xff]
      %v284 = vld [vmem:[%s255 + $0x20] sm:$0xff]
      %v285 = vld [vmem:[%s255 + $0x28] sm:$0xff]
      %v286 = vld [vmem:[%s255 + $0x30] sm:$0xff]
      %v287 = vld [vmem:[%s255 + $0x38] sm:$0xff]
      %v288 = vld [vmem:[%s255 + $0x40] sm:$0xff]
      %v289 = vld [vmem:[%s255 + $0x48] sm:$0xff]
      %v290 = vld [vmem:[%s255 + $0x50] sm:$0xff]
      %v291 = vld [vmem:[%s255 + $0x58] sm:$0xff]
      %v292 = vld [vmem:[%s255 + $0x60] sm:$0xff]
      %v293 = vld [vmem:[%s255 + $0x68] sm:$0xff]
      %v294 = vld [vmem:[%s255 + $0x70] sm:$0xff]
      %v295 = vld [vmem:[%s255 + $0x78] sm:$0xff]
      %v296 = vld [vmem:[%s255 + $0x80] sm:$0xff]
      %v297 = vld [vmem:[%s255 + $0x88] sm:$0xff]
      %v298 = vld [vmem:[%s255 + $0x90] sm:$0xff]
      %v299 = vld [vmem:[%s255 + $0x98] sm:$0xff]
      %v300 = vld [vmem:[%s255 + $0xa0] sm:$0xff]
      %v301 = vld [vmem:[%s255 + $0xa8] sm:$0xff]
      %v302 = vld [vmem:[%s255 + $0xb0] sm:$0xff]
      %v303 = vld [vmem:[%s255 + $0xb8] sm:$0xff]
      %v304 = vld [vmem:[%s255 + $0xc0] sm:$0xff]
      %v305 = vld [vmem:[%s255 + $0xc8] sm:$0xff]
      %v306 = vld [vmem:[%s255 + $0xd0] sm:$0xff]
      %v307 = vld [vmem:[%s255 + $0xd8] sm:$0xff]
      %v308 = vld [vmem:[%s255 + $0xe0] sm:$0xff]
      %v309 = vld [vmem:[%s255 + $0xe8] sm:$0xff]
      %v310 = vld [vmem:[%s255 + $0xf0] sm:$0xff]
      %v311 = vld [vmem:[%s255 + $0xf8] sm:$0xff]
      %v312 = vld [vmem:[%s261] sm:$0xf]
      %v313 = vld [vmem:[%s261 + $0x4] sm:$0xf]
      %v314 = vld [vmem:[%s261 + $0x8] sm:$0xf]
      %v315 = vld [vmem:[%s261 + $0xc] sm:$0xf]
      %v316 = vld [vmem:[%s261 + $0x10] sm:$0xf]
      %v317 = vld [vmem:[%s261 + $0x14] sm:$0xf]
      %v318 = vld [vmem:[%s261 + $0x18] sm:$0xf]
      %v319 = vld [vmem:[%s261 + $0x1c] sm:$0xf]
      %v320 = vld [vmem:[%s261 + $0x20] sm:$0xf]
      %v321 = vld [vmem:[%s261 + $0x24] sm:$0xf]
      %v322 = vld [vmem:[%s261 + $0x28] sm:$0xf]
      %v323 = vld [vmem:[%s261 + $0x2c] sm:$0xf]
      %v324 = vld [vmem:[%s261 + $0x30] sm:$0xf]
      %v325 = vld [vmem:[%s261 + $0x34] sm:$0xf]
      %v326 = vld [vmem:[%s261 + $0x38] sm:$0xf]
      %v327 = vld [vmem:[%s261 + $0x3c] sm:$0xf]
      %v328 = vld [vmem:[%s261 + $0x40] sm:$0xf]
      %v329 = vld [vmem:[%s261 + $0x44] sm:$0xf]
      %v330 = vld [vmem:[%s261 + $0x48] sm:$0xf]
      %v331 = vld [vmem:[%s261 + $0x4c] sm:$0xf]
      %v332 = vld [vmem:[%s261 + $0x50] sm:$0xf]
      %v333 = vld [vmem:[%s261 + $0x54] sm:$0xf]
      %v334 = vld [vmem:[%s261 + $0x58] sm:$0xf]
      %v335 = vld [vmem:[%s261 + $0x5c] sm:$0xf]
      %v336 = vld [vmem:[%s261 + $0x60] sm:$0xf]
      %v337 = vld [vmem:[%s261 + $0x64] sm:$0xf]
      %v338 = vld [vmem:[%s261 + $0x68] sm:$0xf]
      %v339 = vld [vmem:[%s261 + $0x6c] sm:$0xf]
      %v340 = vld [vmem:[%s261 + $0x70] sm:$0xf]
      %v341 = vld [vmem:[%s261 + $0x74] sm:$0xf]
      %v342 = vld [vmem:[%s261 + $0x78] sm:$0xf]
      %v343 = vld [vmem:[%s261 + $0x7c] sm:$0xf]
      %v344 = vld [vmem:[%s261 + $0x80] sm:$0xf]
      %v345 = vld [vmem:[%s261 + $0x84] sm:$0xf]
      %v346 = vld [vmem:[%s261 + $0x88] sm:$0xf]
      %v347 = vld [vmem:[%s261 + $0x8c] sm:$0xf]
      %v348 = vld [vmem:[%s261 + $0x90] sm:$0xf]
      %v349 = vld [vmem:[%s261 + $0x94] sm:$0xf]
      %v350 = vld [vmem:[%s261 + $0x98] sm:$0xf]
      %v351 = vld [vmem:[%s261 + $0x9c] sm:$0xf]
      %v352 = vld [vmem:[%s261 + $0xa0] sm:$0xf]
      %v353 = vld [vmem:[%s261 + $0xa4] sm:$0xf]
      %v354 = vld [vmem:[%s261 + $0xa8] sm:$0xf]
      %v355 = vld [vmem:[%s261 + $0xac] sm:$0xf]
      %v356 = vld [vmem:[%s261 + $0xb0] sm:$0xf]
      %v357 = vld [vmem:[%s261 + $0xb4] sm:$0xf]
      %v358 = vld [vmem:[%s261 + $0xb8] sm:$0xf]
      %v359 = vld [vmem:[%s261 + $0xbc] sm:$0xf]
      %v360 = vld [vmem:[%s261 + $0xc0] sm:$0xf]
      %v361 = vld [vmem:[%s261 + $0xc4] sm:$0xf]
      %v362 = vld [vmem:[%s261 + $0xc8] sm:$0xf]
      %v363 = vld [vmem:[%s261 + $0xcc] sm:$0xf]
      %v364 = vld [vmem:[%s261 + $0xd0] sm:$0xf]
      %v365 = vld [vmem:[%s261 + $0xd4] sm:$0xf]
      %v366 = vld [vmem:[%s261 + $0xd8] sm:$0xf]
      %v367 = vld [vmem:[%s261 + $0xdc] sm:$0xf]
      %v368 = vld [vmem:[%s261 + $0xe0] sm:$0xf]
      %v369 = vld [vmem:[%s261 + $0xe4] sm:$0xf]
      %v370 = vld [vmem:[%s261 + $0xe8] sm:$0xf]
      %v371 = vld [vmem:[%s261 + $0xec] sm:$0xf]
      %v372 = vld [vmem:[%s261 + $0xf0] sm:$0xf]
      %v373 = vld [vmem:[%s261 + $0xf4] sm:$0xf]
      %v374 = vld [vmem:[%s261 + $0xf8] sm:$0xf]
      %v375 = vld [vmem:[%s261 + $0xfc] sm:$0xf]
      %v376 = vld [vmem:[%s2] sm:$0x1]
      %v378 = vlaneseq
      %v379 = vshrl.u32 %v378, 7
      %v380 = vsub.s32 0, %v379
      %v381 = vrot.slane %v376, %v380
      %v415 = vunpack.c.l.b16 %v280
      %v416 = vunpack.c.h.b16 %v280
      %v417 = vunpack.c.l.b16 %v281
      %v418 = vunpack.c.h.b16 %v281
      %v419 = vunpack.c.l.b16 %v282
      %v420 = vunpack.c.h.b16 %v282
      %v421 = vunpack.c.l.b16 %v283
      %v422 = vunpack.c.h.b16 %v283
      %v423 = vunpack.c.l.b16 %v284
      %v424 = vunpack.c.h.b16 %v284
      %v425 = vunpack.c.l.b16 %v285
      %v426 = vunpack.c.h.b16 %v285
      %v427 = vunpack.c.l.b16 %v286
      %v428 = vunpack.c.h.b16 %v286
      %v429 = vunpack.c.l.b16 %v287
      %v430 = vunpack.c.h.b16 %v287
      %v431 = vunpack.c.l.b16 %v288
      %v432 = vunpack.c.h.b16 %v288
      %v433 = vunpack.c.l.b16 %v289
      %v434 = vunpack.c.h.b16 %v289
      %v435 = vunpack.c.l.b16 %v290
      %v436 = vunpack.c.h.b16 %v290
      %v437 = vunpack.c.l.b16 %v291
      %v438 = vunpack.c.h.b16 %v291
      %v439 = vunpack.c.l.b16 %v292
      %v440 = vunpack.c.h.b16 %v292
      %v441 = vunpack.c.l.b16 %v293
      %v442 = vunpack.c.h.b16 %v293
      %v443 = vunpack.c.l.b16 %v294
      %v444 = vunpack.c.h.b16 %v294
      %v445 = vunpack.c.l.b16 %v295
      %v446 = vunpack.c.h.b16 %v295
      %v447 = vunpack.c.l.b16 %v296
      %v448 = vunpack.c.h.b16 %v296
      %v449 = vunpack.c.l.b16 %v297
      %v450 = vunpack.c.h.b16 %v297
      %v451 = vunpack.c.l.b16 %v298
      %v452 = vunpack.c.h.b16 %v298
      %v453 = vunpack.c.l.b16 %v299
      %v454 = vunpack.c.h.b16 %v299
      %v455 = vunpack.c.l.b16 %v300
      %v456 = vunpack.c.h.b16 %v300
      %v457 = vunpack.c.l.b16 %v301
      %v458 = vunpack.c.h.b16 %v301
      %v459 = vunpack.c.l.b16 %v302
      %v460 = vunpack.c.h.b16 %v302
      %v461 = vunpack.c.l.b16 %v303
      %v462 = vunpack.c.h.b16 %v303
      %v463 = vunpack.c.l.b16 %v304
      %v464 = vunpack.c.h.b16 %v304
      %v465 = vunpack.c.l.b16 %v305
      %v466 = vunpack.c.h.b16 %v305
      %v467 = vunpack.c.l.b16 %v306
      %v468 = vunpack.c.h.b16 %v306
      %v469 = vunpack.c.l.b16 %v307
      %v470 = vunpack.c.h.b16 %v307
      %v471 = vunpack.c.l.b16 %v308
      %v472 = vunpack.c.h.b16 %v308
      %v473 = vunpack.c.l.b16 %v309
      %v474 = vunpack.c.h.b16 %v309
      %v475 = vunpack.c.l.b16 %v310
      %v476 = vunpack.c.h.b16 %v310
      %v477 = vunpack.c.l.b16 %v311
      %v478 = vunpack.c.h.b16 %v311
      %v479 = vpack.c.b16 %v419, %v415
      %v480 = vpack.c.b16 %v420, %v416
      %v481 = vpack.c.b16 %v421, %v417
      %v482 = vpack.c.b16 %v422, %v418
      %v483 = vpack.c.b16 %v427, %v423
      %v484 = vpack.c.b16 %v428, %v424
      %v485 = vpack.c.b16 %v429, %v425
      %v486 = vpack.c.b16 %v430, %v426
      %v487 = vpack.c.b16 %v435, %v431
      %v488 = vpack.c.b16 %v436, %v432
      %v489 = vpack.c.b16 %v437, %v433
      %v490 = vpack.c.b16 %v438, %v434
      %v491 = vpack.c.b16 %v443, %v439
      %v492 = vpack.c.b16 %v444, %v440
      %v493 = vpack.c.b16 %v445, %v441
      %v494 = vpack.c.b16 %v446, %v442
      %v495 = vpack.c.b16 %v451, %v447
      %v496 = vpack.c.b16 %v452, %v448
      %v497 = vpack.c.b16 %v453, %v449
      %v498 = vpack.c.b16 %v454, %v450
      %v499 = vpack.c.b16 %v459, %v455
      %v500 = vpack.c.b16 %v460, %v456
      %v501 = vpack.c.b16 %v461, %v457
      %v502 = vpack.c.b16 %v462, %v458
      %v503 = vpack.c.b16 %v467, %v463
      %v504 = vpack.c.b16 %v468, %v464
      %v505 = vpack.c.b16 %v469, %v465
      %v506 = vpack.c.b16 %v470, %v466
      %v507 = vpack.c.b16 %v475, %v471
      %v508 = vpack.c.b16 %v476, %v472
      %v509 = vpack.c.b16 %v477, %v473
      %v510 = vpack.c.b16 %v478, %v474
      %v607 = vunpack.c.l.b16 %v312
      %v608 = vunpack.c.l.b16 %v313
      %v609 = vunpack.c.l.b16 %v314
      %v610 = vunpack.c.l.b16 %v315
      %v611 = vunpack.c.l.b16 %v316
      %v612 = vunpack.c.l.b16 %v317
      %v613 = vunpack.c.l.b16 %v318
      %v614 = vunpack.c.l.b16 %v319
      %v615 = vunpack.c.l.b16 %v320
      %v616 = vunpack.c.l.b16 %v321
      %v617 = vunpack.c.l.b16 %v322
      %v618 = vunpack.c.l.b16 %v323
      %v619 = vunpack.c.l.b16 %v324
      %v620 = vunpack.c.l.b16 %v325
      %v621 = vunpack.c.l.b16 %v326
      %v622 = vunpack.c.l.b16 %v327
      %v623 = vunpack.c.l.b16 %v328
      %v624 = vunpack.c.l.b16 %v329
      %v625 = vunpack.c.l.b16 %v330
      %v626 = vunpack.c.l.b16 %v331
      %v627 = vunpack.c.l.b16 %v332
      %v628 = vunpack.c.l.b16 %v333
      %v629 = vunpack.c.l.b16 %v334
      %v630 = vunpack.c.l.b16 %v335
      %v631 = vunpack.c.l.b16 %v336
      %v632 = vunpack.c.l.b16 %v337
      %v633 = vunpack.c.l.b16 %v338
      %v634 = vunpack.c.l.b16 %v339
      %v635 = vunpack.c.l.b16 %v340
      %v636 = vunpack.c.l.b16 %v341
      %v637 = vunpack.c.l.b16 %v342
      %v638 = vunpack.c.l.b16 %v343
      %v639 = vunpack.c.l.b16 %v344
      %v640 = vunpack.c.l.b16 %v345
      %v641 = vunpack.c.l.b16 %v346
      %v642 = vunpack.c.l.b16 %v347
      %v643 = vunpack.c.l.b16 %v348
      %v644 = vunpack.c.l.b16 %v349
      %v645 = vunpack.c.l.b16 %v350
      %v646 = vunpack.c.l.b16 %v351
      %v647 = vunpack.c.l.b16 %v352
      %v648 = vunpack.c.l.b16 %v353
      %v649 = vunpack.c.l.b16 %v354
      %v650 = vunpack.c.l.b16 %v355
      %v651 = vunpack.c.l.b16 %v356
      %v652 = vunpack.c.l.b16 %v357
      %v653 = vunpack.c.l.b16 %v358
      %v654 = vunpack.c.l.b16 %v359
      %v655 = vunpack.c.l.b16 %v360
      %v656 = vunpack.c.l.b16 %v361
      %v657 = vunpack.c.l.b16 %v362
      %v658 = vunpack.c.l.b16 %v363
      %v659 = vunpack.c.l.b16 %v364
      %v660 = vunpack.c.l.b16 %v365
      %v661 = vunpack.c.l.b16 %v366
      %v662 = vunpack.c.l.b16 %v367
      %v663 = vunpack.c.l.b16 %v368
      %v664 = vunpack.c.l.b16 %v369
      %v665 = vunpack.c.l.b16 %v370
      %v666 = vunpack.c.l.b16 %v371
      %v667 = vunpack.c.l.b16 %v372
      %v668 = vunpack.c.l.b16 %v373
      %v669 = vunpack.c.l.b16 %v374
      %v670 = vunpack.c.l.b16 %v375
      %v671 = vpack.c.b16 %v608, %v607
      %v672 = vpack.c.b16 %v610, %v609
      %v673 = vpack.c.b16 %v612, %v611
      %v674 = vpack.c.b16 %v614, %v613
      %v675 = vpack.c.b16 %v616, %v615
      %v676 = vpack.c.b16 %v618, %v617
      %v677 = vpack.c.b16 %v620, %v619
      %v678 = vpack.c.b16 %v622, %v621
      %v679 = vpack.c.b16 %v624, %v623
      %v680 = vpack.c.b16 %v626, %v625
      %v681 = vpack.c.b16 %v628, %v627
      %v682 = vpack.c.b16 %v630, %v629
      %v683 = vpack.c.b16 %v632, %v631
      %v684 = vpack.c.b16 %v634, %v633
      %v685 = vpack.c.b16 %v636, %v635
      %v686 = vpack.c.b16 %v638, %v637
      %v687 = vpack.c.b16 %v640, %v639
      %v688 = vpack.c.b16 %v642, %v641
      %v689 = vpack.c.b16 %v644, %v643
      %v690 = vpack.c.b16 %v646, %v645
      %v691 = vpack.c.b16 %v648, %v647
      %v692 = vpack.c.b16 %v650, %v649
      %v693 = vpack.c.b16 %v652, %v651
      %v694 = vpack.c.b16 %v654, %v653
      %v695 = vpack.c.b16 %v656, %v655
      %v696 = vpack.c.b16 %v658, %v657
      %v697 = vpack.c.b16 %v660, %v659
      %v698 = vpack.c.b16 %v662, %v661
      %v699 = vpack.c.b16 %v664, %v663
      %v700 = vpack.c.b16 %v666, %v665
      %v701 = vpack.c.b16 %v668, %v667
      %v702 = vpack.c.b16 %v670, %v669
      %735 = vmatprep.subr.bf16.mxu0 0
      %736 = vmatpush1.bf16.msra.mxu0 %v671
      %737 = vmatprep.subr.bf16.mxu0 0
      %738 = vmatpush1.bf16.msra.mxu0 %v672
      %739 = vmatprep.subr.bf16.mxu0 0
      %740 = vmatpush1.bf16.msra.mxu0 %v673
      %741 = vmatprep.subr.bf16.mxu0 0
      %742 = vmatpush1.bf16.msra.mxu0 %v674
      %743 = vmatprep.subr.bf16.mxu0 0
      %744 = vmatpush1.bf16.msra.mxu0 %v675
      %745 = vmatprep.subr.bf16.mxu0 0
      %746 = vmatpush1.bf16.msra.mxu0 %v676
      %747 = vmatprep.subr.bf16.mxu0 0
      %748 = vmatpush1.bf16.msra.mxu0 %v677
      %749 = vmatprep.subr.bf16.mxu0 0
      %750 = vmatpush1.bf16.msra.mxu0 %v678
      %751 = vmatprep.subr.bf16.mxu0 0
      %752 = vmatpush1.bf16.msra.mxu0 %v679
      %753 = vmatprep.subr.bf16.mxu0 0
      %754 = vmatpush1.bf16.msra.mxu0 %v680
      %755 = vmatprep.subr.bf16.mxu0 0
      %756 = vmatpush1.bf16.msra.mxu0 %v681
      %757 = vmatprep.subr.bf16.mxu0 0
      %758 = vmatpush1.bf16.msra.mxu0 %v682
      %759 = vmatprep.subr.bf16.mxu0 0
      %760 = vmatpush1.bf16.msra.mxu0 %v683
      %761 = vmatprep.subr.bf16.mxu0 0
      %762 = vmatpush1.bf16.msra.mxu0 %v684
      %763 = vmatprep.subr.bf16.mxu0 0
      %764 = vmatpush1.bf16.msra.mxu0 %v685
      %765 = vmatprep.subr.bf16.mxu0 0
      %766 = vmatpush1.bf16.msra.mxu0 %v686
      %767 = vmatprep.mubr.bf16.mxu0 %v480
      %768 = vmatmul.mubr.bf16.gmra.mrb[0].mxu0 %v479
      %v769 = vpop.f32.mrb[0].mxu0
      %v770 = vadd.f32 %v381, %v769
      %v771 = vpop.f32.mrb[0].mxu0
      %v772 = vpop.f32.mrb[0].mxu0
      %v773 = vadd.f32 %v381, %v772
      %v774 = vpop.f32.mrb[0].mxu0
      %775 = vmatprep.mubr.bf16.mxu0 %v484
      %776 = vmatmul.mubr.bf16.gmra.mrb[0].mxu0 %v483
      %v777 = vpop.f32.mrb[0].mxu0
      %v778 = vadd.f32 %v381, %v777
      %v779 = vpop.f32.mrb[0].mxu0
      %v780 = vpop.f32.mrb[0].mxu0
      %v781 = vadd.f32 %v381, %v780
      %v782 = vpop.f32.mrb[0].mxu0
      %783 = vmatprep.mubr.bf16.mxu0 %v488
      %784 = vmatmul.mubr.bf16.gmra.mrb[0].mxu0 %v487
      %v785 = vpop.f32.mrb[0].mxu0
      %v786 = vadd.f32 %v381, %v785
      %v787 = vpop.f32.mrb[0].mxu0
      %v788 = vpop.f32.mrb[0].mxu0
      %v789 = vadd.f32 %v381, %v788
      %v790 = vpop.f32.mrb[0].mxu0
      %791 = vmatprep.mubr.bf16.mxu0 %v492
      %792 = vmatmul.mubr.bf16.gmra.mrb[0].mxu0 %v491
      %v793 = vpop.f32.mrb[0].mxu0
      %v794 = vadd.f32 %v381, %v793
      %v795 = vpop.f32.mrb[0].mxu0
      %v796 = vpop.f32.mrb[0].mxu0
      %v797 = vadd.f32 %v381, %v796
      %v798 = vpop.f32.mrb[0].mxu0
      %799 = vmatprep.mubr.bf16.mxu0 %v496
      %800 = vmatmul.mubr.bf16.gmra.mrb[0].mxu0 %v495
      %v801 = vpop.f32.mrb[0].mxu0
      %v802 = vadd.f32 %v381, %v801
      %v803 = vpop.f32.mrb[0].mxu0
      %v804 = vpop.f32.mrb[0].mxu0
      %v805 = vadd.f32 %v381, %v804
      %v806 = vpop.f32.mrb[0].mxu0
      %807 = vmatprep.mubr.bf16.mxu0 %v500
      %808 = vmatmul.mubr.bf16.gmra.mrb[0].mxu0 %v499
      %v809 = vpop.f32.mrb[0].mxu0
      %v810 = vadd.f32 %v381, %v809
      %v811 = vpop.f32.mrb[0].mxu0
      %v812 = vpop.f32.mrb[0].mxu0
      %v813 = vadd.f32 %v381, %v812
      %v814 = vpop.f32.mrb[0].mxu0
      %815 = vmatprep.mubr.bf16.mxu0 %v504
      %816 = vmatmul.mubr.bf16.gmra.mrb[0].mxu0 %v503
      %v817 = vpop.f32.mrb[0].mxu0
      %v818 = vadd.f32 %v381, %v817
      %v819 = vpop.f32.mrb[0].mxu0
      %v820 = vpop.f32.mrb[0].mxu0
      %v821 = vadd.f32 %v381, %v820
      %v822 = vpop.f32.mrb[0].mxu0
      %823 = vmatprep.mubr.bf16.mxu0 %v508
      %824 = vmatmul.mubr.bf16.gmra.mrb[0].mxu0 %v507
      %v825 = vpop.f32.mrb[0].mxu0
      %v826 = vadd.f32 %v381, %v825
      %v827 = vpop.f32.mrb[0].mxu0
      %v828 = vpop.f32.mrb[0].mxu0
      %v829 = vadd.f32 %v381, %v828
      %v830 = vpop.f32.mrb[0].mxu0
      %831 = vdwg.mxu0
      %832 = vmatprep.subr.bf16.mxu0 0
      %833 = vmatpush1.bf16.msra.mxu0 %v687
      %834 = vmatprep.subr.bf16.mxu0 0
      %835 = vmatpush1.bf16.msra.mxu0 %v688
      %836 = vmatprep.subr.bf16.mxu0 0
      %837 = vmatpush1.bf16.msra.mxu0 %v689
      %838 = vmatprep.subr.bf16.mxu0 0
      %839 = vmatpush1.bf16.msra.mxu0 %v690
      %840 = vmatprep.subr.bf16.mxu0 0
      %841 = vmatpush1.bf16.msra.mxu0 %v691
      %842 = vmatprep.subr.bf16.mxu0 0
      %843 = vmatpush1.bf16.msra.mxu0 %v692
      %844 = vmatprep.subr.bf16.mxu0 0
      %845 = vmatpush1.bf16.msra.mxu0 %v693
      %846 = vmatprep.subr.bf16.mxu0 0
      %847 = vmatpush1.bf16.msra.mxu0 %v694
      %848 = vmatprep.subr.bf16.mxu0 0
      %849 = vmatpush1.bf16.msra.mxu0 %v695
      %850 = vmatprep.subr.bf16.mxu0 0
      %851 = vmatpush1.bf16.msra.mxu0 %v696
      %852 = vmatprep.subr.bf16.mxu0 0
      %853 = vmatpush1.bf16.msra.mxu0 %v697
      %854 = vmatprep.subr.bf16.mxu0 0
      %855 = vmatpush1.bf16.msra.mxu0 %v698
      %856 = vmatprep.subr.bf16.mxu0 0
      %857 = vmatpush1.bf16.msra.mxu0 %v699
      %858 = vmatprep.subr.bf16.mxu0 0
      %859 = vmatpush1.bf16.msra.mxu0 %v700
      %860 = vmatprep.subr.bf16.mxu0 0
      %861 = vmatpush1.bf16.msra.mxu0 %v701
      %862 = vmatprep.subr.bf16.mxu0 0
      %863 = vmatpush1.bf16.msra.mxu0 %v702
      %864 = vmatprep.mubr.bf16.mxu0 %v482
      %865 = vmatmul.mubr.bf16.gmra.mrb[0].mxu0 %v481
      %v866 = vpop.f32.mrb[0].mxu0
      %v867 = vadd.f32 %v770, %v866
      %v868 = vpop.f32.mrb[0].mxu0
      %v869 = vpop.f32.mrb[0].mxu0
      %v870 = vadd.f32 %v773, %v869
      %v871 = vpop.f32.mrb[0].mxu0
      %872 = vmatprep.mubr.bf16.mxu0 %v486
      %873 = vmatmul.mubr.bf16.gmra.mrb[0].mxu0 %v485
      %v874 = vpop.f32.mrb[0].mxu0
      %v875 = vadd.f32 %v778, %v874
      %v876 = vpop.f32.mrb[0].mxu0
      %v877 = vpop.f32.mrb[0].mxu0
      %v878 = vadd.f32 %v781, %v877
      %v879 = vpop.f32.mrb[0].mxu0
      %880 = vmatprep.mubr.bf16.mxu0 %v490
      %881 = vmatmul.mubr.bf16.gmra.mrb[0].mxu0 %v489
      %v882 = vpop.f32.mrb[0].mxu0
      %v883 = vadd.f32 %v786, %v882
      %v884 = vpop.f32.mrb[0].mxu0
      %v885 = vpop.f32.mrb[0].mxu0
      %v886 = vadd.f32 %v789, %v885
      %v887 = vpop.f32.mrb[0].mxu0
      %888 = vmatprep.mubr.bf16.mxu0 %v494
      %889 = vmatmul.mubr.bf16.gmra.mrb[0].mxu0 %v493
      %v890 = vpop.f32.mrb[0].mxu0
      %v891 = vadd.f32 %v794, %v890
      %v892 = vpop.f32.mrb[0].mxu0
      %v893 = vpop.f32.mrb[0].mxu0
      %v894 = vadd.f32 %v797, %v893
      %v895 = vpop.f32.mrb[0].mxu0
      %896 = vmatprep.mubr.bf16.mxu0 %v498
      %897 = vmatmul.mubr.bf16.gmra.mrb[0].mxu0 %v497
      %v898 = vpop.f32.mrb[0].mxu0
      %v899 = vadd.f32 %v802, %v898
      %v900 = vpop.f32.mrb[0].mxu0
      %v901 = vpop.f32.mrb[0].mxu0
      %v902 = vadd.f32 %v805, %v901
      %v903 = vpop.f32.mrb[0].mxu0
      %904 = vmatprep.mubr.bf16.mxu0 %v502
      %905 = vmatmul.mubr.bf16.gmra.mrb[0].mxu0 %v501
      %v906 = vpop.f32.mrb[0].mxu0
      %v907 = vadd.f32 %v810, %v906
      %v908 = vpop.f32.mrb[0].mxu0
      %v909 = vpop.f32.mrb[0].mxu0
      %v910 = vadd.f32 %v813, %v909
      %v911 = vpop.f32.mrb[0].mxu0
      %912 = vmatprep.mubr.bf16.mxu0 %v506
      %913 = vmatmul.mubr.bf16.gmra.mrb[0].mxu0 %v505
      %v914 = vpop.f32.mrb[0].mxu0
      %v915 = vadd.f32 %v818, %v914
      %v916 = vpop.f32.mrb[0].mxu0
      %v917 = vpop.f32.mrb[0].mxu0
      %v918 = vadd.f32 %v821, %v917
      %v919 = vpop.f32.mrb[0].mxu0
      %920 = vmatprep.mubr.bf16.mxu0 %v510
      %921 = vmatmul.mubr.bf16.gmra.mrb[0].mxu0 %v509
      %v922 = vpop.f32.mrb[0].mxu0
      %v923 = vadd.f32 %v826, %v922
      %v924 = vpop.f32.mrb[0].mxu0
      %v925 = vpop.f32.mrb[0].mxu0
      %v926 = vadd.f32 %v829, %v925
      %v927 = vpop.f32.mrb[0].mxu0
      %928 = vdwg.mxu0
      %vm929 = vcmask 523264
      %930 = vst.msk [vmem:[%s270] sm:$0xff] %vm929, %v867
      %931 = vst.msk [vmem:[%s270 + $0x8] sm:$0xff] %vm929, %v870
      %932 = vst.msk [vmem:[%s270 + $0x10] sm:$0xff] %vm929, %v875
      %933 = vst.msk [vmem:[%s270 + $0x18] sm:$0xff] %vm929, %v878
      %934 = vst.msk [vmem:[%s270 + $0x20] sm:$0xff] %vm929, %v883
      %935 = vst.msk [vmem:[%s270 + $0x28] sm:$0xff] %vm929, %v886
      %936 = vst.msk [vmem:[%s270 + $0x30] sm:$0xff] %vm929, %v891
      %937 = vst.msk [vmem:[%s270 + $0x38] sm:$0xff] %vm929, %v894
      %938 = vst.msk [vmem:[%s270 + $0x40] sm:$0xff] %vm929, %v899
      %939 = vst.msk [vmem:[%s270 + $0x48] sm:$0xff] %vm929, %v902
      %940 = vst.msk [vmem:[%s270 + $0x50] sm:$0xff] %vm929, %v907
      %941 = vst.msk [vmem:[%s270 + $0x58] sm:$0xff] %vm929, %v910
      %942 = vst.msk [vmem:[%s270 + $0x60] sm:$0xff] %vm929, %v915
      %943 = vst.msk [vmem:[%s270 + $0x68] sm:$0xff] %vm929, %v918
      %944 = vst.msk [vmem:[%s270 + $0x70] sm:$0xff] %vm929, %v923
      %945 = vst.msk [vmem:[%s270 + $0x78] sm:$0xff] %vm929, %v926
      %v946 = vsel %vm929, %v867, 0.0
      %v947 = vsel %vm929, %v870, 0.0
      %v948 = vadd.f32 %v946, %v947
      %v949 = vsel %vm929, %v875, 0.0
      %v950 = vadd.f32 %v948, %v949
      %v951 = vsel %vm929, %v878, 0.0
      %v952 = vadd.f32 %v950, %v951
      %v953 = vsel %vm929, %v883, 0.0
      %v954 = vadd.f32 %v952, %v953
      %v955 = vsel %vm929, %v886, 0.0
      %v956 = vadd.f32 %v954, %v955
      %v957 = vsel %vm929, %v891, 0.0
      %v958 = vadd.f32 %v956, %v957
      %v959 = vsel %vm929, %v894, 0.0
      %v960 = vadd.f32 %v958, %v959
      %v961 = vsel %vm929, %v899, 0.0
      %v962 = vadd.f32 %v960, %v961
      %v963 = vsel %vm929, %v902, 0.0
      %v964 = vadd.f32 %v962, %v963
      %v965 = vsel %vm929, %v907, 0.0
      %v966 = vadd.f32 %v964, %v965
      %v967 = vsel %vm929, %v910, 0.0
      %v968 = vadd.f32 %v966, %v967
      %v969 = vsel %vm929, %v915, 0.0
      %v970 = vadd.f32 %v968, %v969
      %v971 = vsel %vm929, %v918, 0.0
      %v972 = vadd.f32 %v970, %v971
      %v973 = vsel %vm929, %v923, 0.0
      %v974 = vadd.f32 %v972, %v973
      %v975 = vsel %vm929, %v926, 0.0
      %v976 = vadd.f32 %v974, %v975
      %v977 = vrot.slane %v976, 4
      %v978 = vadd.f32 %v976, %v977
      %v979 = vrot.slane %v978, 2
      %v980 = vadd.f32 %v978, %v979
      %v981 = vrot.slane %v980, 1
      %v982 = vadd.f32 %v980, %v981
      %v983 = vmul.f32 %v867, %v867
      %v984 = vmul.f32 %v870, %v870
      %v985 = vmul.f32 %v875, %v875
      %v986 = vmul.f32 %v878, %v878
      %v987 = vmul.f32 %v883, %v883
      %v988 = vmul.f32 %v886, %v886
      %v989 = vmul.f32 %v891, %v891
      %v990 = vmul.f32 %v894, %v894
      %v991 = vmul.f32 %v899, %v899
      %v992 = vmul.f32 %v902, %v902
      %v993 = vmul.f32 %v907, %v907
      %v994 = vmul.f32 %v910, %v910
      %v995 = vmul.f32 %v915, %v915
      %v996 = vmul.f32 %v918, %v918
      %v997 = vmul.f32 %v923, %v923
      %v998 = vmul.f32 %v926, %v926
      %v999 = vsel %vm929, %v983, 0.0
      %v1000 = vsel %vm929, %v984, 0.0
      %v1001 = vadd.f32 %v999, %v1000
      %v1002 = vsel %vm929, %v985, 0.0
      %v1003 = vadd.f32 %v1001, %v1002
      %v1004 = vsel %vm929, %v986, 0.0
      %v1005 = vadd.f32 %v1003, %v1004
      %v1006 = vsel %vm929, %v987, 0.0
      %v1007 = vadd.f32 %v1005, %v1006
      %v1008 = vsel %vm929, %v988, 0.0
      %v1009 = vadd.f32 %v1007, %v1008
      %v1010 = vsel %vm929, %v989, 0.0
      %v1011 = vadd.f32 %v1009, %v1010
      %v1012 = vsel %vm929, %v990, 0.0
      %v1013 = vadd.f32 %v1011, %v1012
      %v1014 = vsel %vm929, %v991, 0.0
      %v1015 = vadd.f32 %v1013, %v1014
      %v1016 = vsel %vm929, %v992, 0.0
      %v1017 = vadd.f32 %v1015, %v1016
      %v1018 = vsel %vm929, %v993, 0.0
      %v1019 = vadd.f32 %v1017, %v1018
      %v1020 = vsel %vm929, %v994, 0.0
      %v1021 = vadd.f32 %v1019, %v1020
      %v1022 = vsel %vm929, %v995, 0.0
      %v1023 = vadd.f32 %v1021, %v1022
      %v1024 = vsel %vm929, %v996, 0.0
      %v1025 = vadd.f32 %v1023, %v1024
      %v1026 = vsel %vm929, %v997, 0.0
      %v1027 = vadd.f32 %v1025, %v1026
      %v1028 = vsel %vm929, %v998, 0.0
      %v1029 = vadd.f32 %v1027, %v1028
      %v1030 = vrot.slane %v1029, 4
      %v1031 = vadd.f32 %v1029, %v1030
      %v1032 = vrot.slane %v1031, 2
      %v1033 = vadd.f32 %v1031, %v1032
      %v1034 = vrot.slane %v1033, 1
      %v1035 = vadd.f32 %v1033, %v1034
      %vm1036 = vcmask 1040384
      %v1037 = vsel %vm1036, %v982, %v1035
      %vm1038 = vcmask 517120
      %1039 = vst.msk [vmem:[%s278] sm:$0x3] %vm1038, %v1037
      %s1040 = smul.u32 16, %s21
      %p1041 = scmp.lt.s32.totalorder %s20, 3
      %s1042 = scalar_select %p1041, %s20, 3
      %p1043 = scmp.lt.s32.totalorder %s1040, 15
      %s1044 = scalar_select %p1043, %s1040, 15
      %s1045 = smul.addr %s1042, 16
      %s1046 = sadd.s32 %s1044, %s1045
      %s1047 = smul.addr %s1046, 8
      %s1048 = scalar_lea.vmem %s3, %s1047
      %p1049 = scmp.lt.s32.totalorder %s20, 3
      %s1050 = scalar_select %p1049, %s20, 3
      %p1051 = scmp.lt.s32.totalorder %s21, 0
      %s1052 = scalar_select %p1051, %s21, 0
      %s1053 = sadd.s32 %s1052, %s1050
      %s1054 = smul.addr %s1053, 2
      %s1055 = scalar_lea.vmem %s4, %s1054
      // Predicated region
      $region33: #{_lambda_.11} parent=31 // pred_check
        %p1056 = pneg %p123
      $region34: #{_lambda_.11} parent=31 // pred_check_branch
        %1058 = sbr.rel (%p1056) target = $region36
      $region35: #{_lambda_.11} parent=31 // pred_region
        %s1059 = smul.u32 16, %s21
      $region36: #{_lambda_.11} parent=31 // pred_fallthru
        _
      // Predicated region
      $region37: #{_lambda_.11} parent=31 // pred_check
        %p1060 = pneg %p151
      $region38: #{_lambda_.11} parent=31 // pred_check_branch
        %1062 = sbr.rel (%p1060) target = $region40
      $region39: #{_lambda_.11} parent=31 // pred_region
        _
      $region40: #{_lambda_.11} parent=31 // pred_fallthru
        _
    $region32: #{_lambda_.11} parent=5 // pred_fallthru
      _
    %p1063 = scmp.le.s32.totalorder 2, %s11
    // Predicated region
    $region41: #{_lambda_.11} parent=5 // pred_check
      %p1064 = pneg %p1063
    $region42: #{_lambda_.11} parent=5 // pred_check_branch
      %1066 = sbr.rel (%p1064) target = $region44
    $region43: #{_lambda_.11} parent=5 // pred_region
      %s1067 = ssub.s32 %s11, 2
      // Predicated region
      $region45: #{_lambda_.11} parent=43 // pred_check
        %p1068 = pneg %p129
      $region46: #{_lambda_.11} parent=43 // pred_check_branch
        %1070 = sbr.rel (%p1068) target = $region48
      $region47: #{_lambda_.11} parent=43 // pred_region
        %s1071 = smul.u32 16, %s23
        %p1072 = scmp.lt.s32.totalorder %s22, 3
        %s1073 = scalar_select %p1072, %s22, 3
        %p1074 = scmp.lt.s32.totalorder %s1071, 15
        %s1075 = scalar_select %p1074, %s1071, 15
        %s1076 = smul.addr %s1073, 16
        %s1077 = sadd.s32 %s1075, %s1076
        %s1078 = smul.addr %s1077, 8
        %s1079 = scalar_lea.vmem %s3, %s1078
      $region48: #{_lambda_.11} parent=43 // pred_fallthru
        _
      // Predicated region
      $region49: #{_lambda_.11} parent=43 // pred_check
        %p1080 = pneg %p157
      $region50: #{_lambda_.11} parent=43 // pred_check_branch
        %1082 = sbr.rel (%p1080) target = $region52
      $region51: #{_lambda_.11} parent=43 // pred_region
        %p1083 = scmp.lt.s32.totalorder %s22, 3
        %s1084 = scalar_select %p1083, %s22, 3
        %p1085 = scmp.lt.s32.totalorder %s23, 0
        %s1086 = scalar_select %p1085, %s23, 0
        %s1087 = sadd.s32 %s1086, %s1084
        %s1088 = smul.addr %s1087, 2
        %s1089 = scalar_lea.vmem %s4, %s1088
      $region52: #{_lambda_.11} parent=43 // pred_fallthru
        _
    $region44: #{_lambda_.11} parent=5 // pred_fallthru
      _
  $region6: #{_lambda_.11} parent=0 // loop_footer
    %s15 = sadd.s32 1, %s11
  $region7: #{_lambda_.11} parent=0 // loop_footer_branch
    %10 = sbr.rel target = $region3
  $region8: #{_lambda_.11} parent=0 // loop_exit
    _

// kernel: _lambda_.12
$region0: #{_lambda_.12}
  #allocation0 [shape = 'u32[]', space=smem, size = 0x4, offset = 0x4, fixed_abs, tag = 'smem constant byte address 0x4 - core index']
  #allocation1 [shape = 'u32[144,128]{1,0:T(1,128)}', space=vmem, size = 0x12000, scoped, tag = 'internal scratch']
  %s0 = inlined_call_operand.vmem [shape: f32[512,64], index: 0, kind: input, shape index: {}]
  %s1 = inlined_call_operand.vmem [shape: f32[2,64], index: 1, kind: input, shape index: {}]
  %s2 = inlined_call_operand.vmem [shape: bf16[512,64], index: 2, kind: output, shape index: {}]
  %s3 = sld [smem:[#allocation0]]
  $region18: #{_lambda_.12} parent=0
    _
  %s5 = ssub.s32 1, %s3
  %s6 = scalar_select 0, %s5, %s3
  // Predicated region
  $region2: #{_lambda_.12} parent=0 // pred_check
    _
  $region3: #{_lambda_.12} parent=0 // pred_check_branch
    %8 = sbr.rel (0) target = $region5
  $region4: #{_lambda_.12} parent=0 // pred_region
    _
  $region5: #{_lambda_.12} parent=0 // pred_fallthru
    _
  // Predicated region
  $region6: #{_lambda_.12} parent=0 // pred_check
    _
  $region7: #{_lambda_.12} parent=0 // pred_check_branch
    %10 = sbr.rel (0) target = $region9
  $region8: #{_lambda_.12} parent=0 // pred_region
    _
  $region9: #{_lambda_.12} parent=0 // pred_fallthru
    _
  %v11 = vld [vmem:[%s0] sm:$0xff]
  %v12 = vld [vmem:[%s0 + $0x8] sm:$0xff]
  %v13 = vld [vmem:[%s0 + $0x10] sm:$0xff]
  %v14 = vld [vmem:[%s0 + $0x18] sm:$0xff]
  %v15 = vld [vmem:[%s0 + $0x20] sm:$0xff]
  %v16 = vld [vmem:[%s0 + $0x28] sm:$0xff]
  %v17 = vld [vmem:[%s0 + $0x30] sm:$0xff]
  %v18 = vld [vmem:[%s0 + $0x38] sm:$0xff]
  %v19 = vld [vmem:[%s0 + $0x40] sm:$0xff]
  %v20 = vld [vmem:[%s0 + $0x48] sm:$0xff]
  %v21 = vld [vmem:[%s0 + $0x50] sm:$0xff]
  %v22 = vld [vmem:[%s0 + $0x58] sm:$0xff]
  %v23 = vld [vmem:[%s0 + $0x60] sm:$0xff]
  %v24 = vld [vmem:[%s0 + $0x68] sm:$0xff]
  %v25 = vld [vmem:[%s0 + $0x70] sm:$0xff]
  %v26 = vld [vmem:[%s0 + $0x78] sm:$0xff]
  %v27 = vld [vmem:[%s0 + $0x80] sm:$0xff]
  %v28 = vld [vmem:[%s0 + $0x88] sm:$0xff]
  %v29 = vld [vmem:[%s0 + $0x90] sm:$0xff]
  %v30 = vld [vmem:[%s0 + $0x98] sm:$0xff]
  %v31 = vld [vmem:[%s0 + $0xa0] sm:$0xff]
  %v32 = vld [vmem:[%s0 + $0xa8] sm:$0xff]
  %v33 = vld [vmem:[%s0 + $0xb0] sm:$0xff]
  %v34 = vld [vmem:[%s0 + $0xb8] sm:$0xff]
  %v35 = vld [vmem:[%s0 + $0xc0] sm:$0xff]
  %v36 = vld [vmem:[%s0 + $0xc8] sm:$0xff]
  %v37 = vld [vmem:[%s0 + $0xd0] sm:$0xff]
  %v38 = vld [vmem:[%s0 + $0xd8] sm:$0xff]
  %v39 = vld [vmem:[%s0 + $0xe0] sm:$0xff]
  %v40 = vld [vmem:[%s0 + $0xe8] sm:$0xff]
  %v41 = vld [vmem:[%s0 + $0xf0] sm:$0xff]
  %v42 = vld [vmem:[%s0 + $0xf8] sm:$0xff]
  %v43 = vld [vmem:[%s0 + $0x100] sm:$0xff]
  %v44 = vld [vmem:[%s0 + $0x108] sm:$0xff]
  %v45 = vld [vmem:[%s0 + $0x110] sm:$0xff]
  %v46 = vld [vmem:[%s0 + $0x118] sm:$0xff]
  %v47 = vld [vmem:[%s0 + $0x120] sm:$0xff]
  %v48 = vld [vmem:[%s0 + $0x128] sm:$0xff]
  %v49 = vld [vmem:[%s0 + $0x130] sm:$0xff]
  %v50 = vld [vmem:[%s0 + $0x138] sm:$0xff]
  %v51 = vld [vmem:[%s0 + $0x140] sm:$0xff]
  %v52 = vld [vmem:[%s0 + $0x148] sm:$0xff]
  %v53 = vld [vmem:[%s0 + $0x150] sm:$0xff]
  %v54 = vld [vmem:[%s0 + $0x158] sm:$0xff]
  %v55 = vld [vmem:[%s0 + $0x160] sm:$0xff]
  %v56 = vld [vmem:[%s0 + $0x168] sm:$0xff]
  %v57 = vld [vmem:[%s0 + $0x170] sm:$0xff]
  %v58 = vld [vmem:[%s0 + $0x178] sm:$0xff]
  %v59 = vld [vmem:[%s0 + $0x180] sm:$0xff]
  %v60 = vld [vmem:[%s0 + $0x188] sm:$0xff]
  %v61 = vld [vmem:[%s0 + $0x190] sm:$0xff]
  %v62 = vld [vmem:[%s0 + $0x198] sm:$0xff]
  %v63 = vld [vmem:[%s0 + $0x1a0] sm:$0xff]
  %v64 = vld [vmem:[%s0 + $0x1a8] sm:$0xff]
  %v65 = vld [vmem:[%s0 + $0x1b0] sm:$0xff]
  %v66 = vld [vmem:[%s0 + $0x1b8] sm:$0xff]
  %v67 = vld [vmem:[%s0 + $0x1c0] sm:$0xff]
  %v68 = vld [vmem:[%s0 + $0x1c8] sm:$0xff]
  %v69 = vld [vmem:[%s0 + $0x1d0] sm:$0xff]
  %v70 = vld [vmem:[%s0 + $0x1d8] sm:$0xff]
  %v71 = vld [vmem:[%s0 + $0x1e0] sm:$0xff]
  %v72 = vld [vmem:[%s0 + $0x1e8] sm:$0xff]
  %v73 = vld [vmem:[%s0 + $0x1f0] sm:$0xff]
  %v74 = vld [vmem:[%s0 + $0x1f8] sm:$0xff]
  %v75 = vld [vmem:[%s1] sm:$0x1]
  %v76 = vlaneseq
  %v77 = vshrl.u32 %v76, 7
  %v78 = vsub.s32 0, %v77
  %v79 = vrot.slane %v75, %v78
  %v80 = vmul.f32 %v11, %v79
  %v81 = vmul.f32 %v12, %v79
  %v82 = vmul.f32 %v13, %v79
  %v83 = vmul.f32 %v14, %v79
  %v84 = vmul.f32 %v15, %v79
  %v85 = vmul.f32 %v16, %v79
  %v86 = vmul.f32 %v17, %v79
  %v87 = vmul.f32 %v18, %v79
  %v88 = vmul.f32 %v19, %v79
  %v89 = vmul.f32 %v20, %v79
  %v90 = vmul.f32 %v21, %v79
  %v91 = vmul.f32 %v22, %v79
  %v92 = vmul.f32 %v23, %v79
  %v93 = vmul.f32 %v24, %v79
  %v94 = vmul.f32 %v25, %v79
  %v95 = vmul.f32 %v26, %v79
  %v96 = vmul.f32 %v27, %v79
  %v97 = vmul.f32 %v28, %v79
  %v98 = vmul.f32 %v29, %v79
  %v99 = vmul.f32 %v30, %v79
  %v100 = vmul.f32 %v31, %v79
  %v101 = vmul.f32 %v32, %v79
  %v102 = vmul.f32 %v33, %v79
  %v103 = vmul.f32 %v34, %v79
  %v104 = vmul.f32 %v35, %v79
  %v105 = vmul.f32 %v36, %v79
  %v106 = vmul.f32 %v37, %v79
  %v107 = vmul.f32 %v38, %v79
  %v108 = vmul.f32 %v39, %v79
  %v109 = vmul.f32 %v40, %v79
  %v110 = vmul.f32 %v41, %v79
  %v111 = vmul.f32 %v42, %v79
  %v112 = vmul.f32 %v43, %v79
  %v113 = vmul.f32 %v44, %v79
  %v114 = vmul.f32 %v45, %v79
  %v115 = vmul.f32 %v46, %v79
  %v116 = vmul.f32 %v47, %v79
  %v117 = vmul.f32 %v48, %v79
  %v118 = vmul.f32 %v49, %v79
  %v119 = vmul.f32 %v50, %v79
  %v120 = vmul.f32 %v51, %v79
  %v121 = vmul.f32 %v52, %v79
  %v122 = vmul.f32 %v53, %v79
  %v123 = vmul.f32 %v54, %v79
  %v124 = vmul.f32 %v55, %v79
  %v125 = vmul.f32 %v56, %v79
  %v126 = vmul.f32 %v57, %v79
  %v127 = vmul.f32 %v58, %v79
  %v128 = vmul.f32 %v59, %v79
  %v129 = vmul.f32 %v60, %v79
  %v130 = vmul.f32 %v61, %v79
  %v131 = vmul.f32 %v62, %v79
  %v132 = vmul.f32 %v63, %v79
  %v133 = vmul.f32 %v64, %v79
  %v134 = vmul.f32 %v65, %v79
  %v135 = vmul.f32 %v66, %v79
  %v136 = vmul.f32 %v67, %v79
  %v137 = vmul.f32 %v68, %v79
  %v138 = vmul.f32 %v69, %v79
  %v139 = vmul.f32 %v70, %v79
  %v140 = vmul.f32 %v71, %v79
  %v141 = vmul.f32 %v72, %v79
  %v142 = vmul.f32 %v73, %v79
  %v143 = vmul.f32 %v74, %v79
  %v144 = vld [vmem:[%s1 + $0x1] sm:$0x1]
  %v145 = vlaneseq
  %v146 = vshrl.u32 %v145, 7
  %v147 = vsub.s32 0, %v146
  %v148 = vrot.slane %v144, %v147
  %v149 = vadd.f32 %v80, %v148
  %v150 = vadd.f32 %v81, %v148
  %v151 = vadd.f32 %v82, %v148
  %v152 = vadd.f32 %v83, %v148
  %v153 = vadd.f32 %v84, %v148
  %v154 = vadd.f32 %v85, %v148
  %v155 = vadd.f32 %v86, %v148
  %v156 = vadd.f32 %v87, %v148
  %v157 = vadd.f32 %v88, %v148
  %v158 = vadd.f32 %v89, %v148
  %v159 = vadd.f32 %v90, %v148
  %v160 = vadd.f32 %v91, %v148
  %v161 = vadd.f32 %v92, %v148
  %v162 = vadd.f32 %v93, %v148
  %v163 = vadd.f32 %v94, %v148
  %v164 = vadd.f32 %v95, %v148
  %v165 = vadd.f32 %v96, %v148
  %v166 = vadd.f32 %v97, %v148
  %v167 = vadd.f32 %v98, %v148
  %v168 = vadd.f32 %v99, %v148
  %v169 = vadd.f32 %v100, %v148
  %v170 = vadd.f32 %v101, %v148
  %v171 = vadd.f32 %v102, %v148
  %v172 = vadd.f32 %v103, %v148
  %v173 = vadd.f32 %v104, %v148
  %v174 = vadd.f32 %v105, %v148
  %v175 = vadd.f32 %v106, %v148
  %v176 = vadd.f32 %v107, %v148
  %v177 = vadd.f32 %v108, %v148
  %v178 = vadd.f32 %v109, %v148
  %v179 = vadd.f32 %v110, %v148
  %v180 = vadd.f32 %v111, %v148
  %v181 = vadd.f32 %v112, %v148
  %v182 = vadd.f32 %v113, %v148
  %v183 = vadd.f32 %v114, %v148
  %v184 = vadd.f32 %v115, %v148
  %v185 = vadd.f32 %v116, %v148
  %v186 = vadd.f32 %v117, %v148
  %v187 = vadd.f32 %v118, %v148
  %v188 = vadd.f32 %v119, %v148
  %v189 = vadd.f32 %v120, %v148
  %v190 = vadd.f32 %v121, %v148
  %v191 = vadd.f32 %v122, %v148
  %v192 = vadd.f32 %v123, %v148
  %v193 = vadd.f32 %v124, %v148
  %v194 = vadd.f32 %v125, %v148
  %v195 = vadd.f32 %v126, %v148
  %v196 = vadd.f32 %v127, %v148
  %v197 = vadd.f32 %v128, %v148
  %v198 = vadd.f32 %v129, %v148
  %v199 = vadd.f32 %v130, %v148
  %v200 = vadd.f32 %v131, %v148
  %v201 = vadd.f32 %v132, %v148
  %v202 = vadd.f32 %v133, %v148
  %v203 = vadd.f32 %v134, %v148
  %v204 = vadd.f32 %v135, %v148
  %v205 = vadd.f32 %v136, %v148
  %v206 = vadd.f32 %v137, %v148
  %v207 = vadd.f32 %v138, %v148
  %v208 = vadd.f32 %v139, %v148
  %v209 = vadd.f32 %v140, %v148
  %v210 = vadd.f32 %v141, %v148
  %v211 = vadd.f32 %v142, %v148
  %v212 = vadd.f32 %v143, %v148
  %v213 = vmax.f32 %v149, 0.0
  %v214 = vmax.f32 %v150, 0.0
  %v215 = vmax.f32 %v151, 0.0
  %v216 = vmax.f32 %v152, 0.0
  %v217 = vmax.f32 %v153, 0.0
  %v218 = vmax.f32 %v154, 0.0
  %v219 = vmax.f32 %v155, 0.0
  %v220 = vmax.f32 %v156, 0.0
  %v221 = vmax.f32 %v157, 0.0
  %v222 = vmax.f32 %v158, 0.0
  %v223 = vmax.f32 %v159, 0.0
  %v224 = vmax.f32 %v160, 0.0
  %v225 = vmax.f32 %v161, 0.0
  %v226 = vmax.f32 %v162, 0.0
  %v227 = vmax.f32 %v163, 0.0
  %v228 = vmax.f32 %v164, 0.0
  %v229 = vmax.f32 %v165, 0.0
  %v230 = vmax.f32 %v166, 0.0
  %v231 = vmax.f32 %v167, 0.0
  %v232 = vmax.f32 %v168, 0.0
  %v233 = vmax.f32 %v169, 0.0
  %v234 = vmax.f32 %v170, 0.0
  %v235 = vmax.f32 %v171, 0.0
  %v236 = vmax.f32 %v172, 0.0
  %v237 = vmax.f32 %v173, 0.0
  %v238 = vmax.f32 %v174, 0.0
  %v239 = vmax.f32 %v175, 0.0
  %v240 = vmax.f32 %v176, 0.0
  %v241 = vmax.f32 %v177, 0.0
  %v242 = vmax.f32 %v178, 0.0
  %v243 = vmax.f32 %v179, 0.0
  %v244 = vmax.f32 %v180, 0.0
  %v245 = vmax.f32 %v181, 0.0
  %v246 = vmax.f32 %v182, 0.0
  %v247 = vmax.f32 %v183, 0.0
  %v248 = vmax.f32 %v184, 0.0
  %v249 = vmax.f32 %v185, 0.0
  %v250 = vmax.f32 %v186, 0.0
  %v251 = vmax.f32 %v187, 0.0
  %v252 = vmax.f32 %v188, 0.0
  %v253 = vmax.f32 %v189, 0.0
  %v254 = vmax.f32 %v190, 0.0
  %v255 = vmax.f32 %v191, 0.0
  %v256 = vmax.f32 %v192, 0.0
  %v257 = vmax.f32 %v193, 0.0
  %v258 = vmax.f32 %v194, 0.0
  %v259 = vmax.f32 %v195, 0.0
  %v260 = vmax.f32 %v196, 0.0
  %v261 = vmax.f32 %v197, 0.0
  %v262 = vmax.f32 %v198, 0.0
  %v263 = vmax.f32 %v199, 0.0
  %v264 = vmax.f32 %v200, 0.0
  %v265 = vmax.f32 %v201, 0.0
  %v266 = vmax.f32 %v202, 0.0
  %v267 = vmax.f32 %v203, 0.0
  %v268 = vmax.f32 %v204, 0.0
  %v269 = vmax.f32 %v205, 0.0
  %v270 = vmax.f32 %v206, 0.0
  %v271 = vmax.f32 %v207, 0.0
  %v272 = vmax.f32 %v208, 0.0
  %v273 = vmax.f32 %v209, 0.0
  %v274 = vmax.f32 %v210, 0.0
  %v275 = vmax.f32 %v211, 0.0
  %v276 = vmax.f32 %v212, 0.0
  %v277 = vpack.c.bf16 %v214, %v213
  %v278 = vpack.c.bf16 %v216, %v215
  %v279 = vpack.c.bf16 %v218, %v217
  %v280 = vpack.c.bf16 %v220, %v219
  %v281 = vpack.c.bf16 %v222, %v221
  %v282 = vpack.c.bf16 %v224, %v223
  %v283 = vpack.c.bf16 %v226, %v225
  %v284 = vpack.c.bf16 %v228, %v227
  %v285 = vpack.c.bf16 %v230, %v229
  %v286 = vpack.c.bf16 %v232, %v231
  %v287 = vpack.c.bf16 %v234, %v233
  %v288 = vpack.c.bf16 %v236, %v235
  %v289 = vpack.c.bf16 %v238, %v237
  %v290 = vpack.c.bf16 %v240, %v239
  %v291 = vpack.c.bf16 %v242, %v241
  %v292 = vpack.c.bf16 %v244, %v243
  %v293 = vpack.c.bf16 %v246, %v245
  %v294 = vpack.c.bf16 %v248, %v247
  %v295 = vpack.c.bf16 %v250, %v249
  %v296 = vpack.c.bf16 %v252, %v251
  %v297 = vpack.c.bf16 %v254, %v253
  %v298 = vpack.c.bf16 %v256, %v255
  %v299 = vpack.c.bf16 %v258, %v257
  %v300 = vpack.c.bf16 %v260, %v259
  %v301 = vpack.c.bf16 %v262, %v261
  %v302 = vpack.c.bf16 %v264, %v263
  %v303 = vpack.c.bf16 %v266, %v265
  %v304 = vpack.c.bf16 %v268, %v267
  %v305 = vpack.c.bf16 %v270, %v269
  %v306 = vpack.c.bf16 %v272, %v271
  %v307 = vpack.c.bf16 %v274, %v273
  %v308 = vpack.c.bf16 %v276, %v275
  %v341 = vunpack.c.l.b16 %v277
  %v342 = vunpack.c.h.b16 %v277
  %v343 = vunpack.c.l.b16 %v278
  %v344 = vunpack.c.h.b16 %v278
  %v345 = vunpack.c.l.b16 %v279
  %v346 = vunpack.c.h.b16 %v279
  %v347 = vunpack.c.l.b16 %v280
  %v348 = vunpack.c.h.b16 %v280
  %v349 = vunpack.c.l.b16 %v281
  %v350 = vunpack.c.h.b16 %v281
  %v351 = vunpack.c.l.b16 %v282
  %v352 = vunpack.c.h.b16 %v282
  %v353 = vunpack.c.l.b16 %v283
  %v354 = vunpack.c.h.b16 %v283
  %v355 = vunpack.c.l.b16 %v284
  %v356 = vunpack.c.h.b16 %v284
  %v357 = vunpack.c.l.b16 %v285
  %v358 = vunpack.c.h.b16 %v285
  %v359 = vunpack.c.l.b16 %v286
  %v360 = vunpack.c.h.b16 %v286
  %v361 = vunpack.c.l.b16 %v287
  %v362 = vunpack.c.h.b16 %v287
  %v363 = vunpack.c.l.b16 %v288
  %v364 = vunpack.c.h.b16 %v288
  %v365 = vunpack.c.l.b16 %v289
  %v366 = vunpack.c.h.b16 %v289
  %v367 = vunpack.c.l.b16 %v290
  %v368 = vunpack.c.h.b16 %v290
  %v369 = vunpack.c.l.b16 %v291
  %v370 = vunpack.c.h.b16 %v291
  %v371 = vunpack.c.l.b16 %v292
  %v372 = vunpack.c.h.b16 %v292
  %v373 = vunpack.c.l.b16 %v293
  %v374 = vunpack.c.h.b16 %v293
  %v375 = vunpack.c.l.b16 %v294
  %v376 = vunpack.c.h.b16 %v294
  %v377 = vunpack.c.l.b16 %v295
  %v378 = vunpack.c.h.b16 %v295
  %v379 = vunpack.c.l.b16 %v296
  %v380 = vunpack.c.h.b16 %v296
  %v381 = vunpack.c.l.b16 %v297
  %v382 = vunpack.c.h.b16 %v297
  %v383 = vunpack.c.l.b16 %v298
  %v384 = vunpack.c.h.b16 %v298
  %v385 = vunpack.c.l.b16 %v299
  %v386 = vunpack.c.h.b16 %v299
  %v387 = vunpack.c.l.b16 %v300
  %v388 = vunpack.c.h.b16 %v300
  %v389 = vunpack.c.l.b16 %v301
  %v390 = vunpack.c.h.b16 %v301
  %v391 = vunpack.c.l.b16 %v302
  %v392 = vunpack.c.h.b16 %v302
  %v393 = vunpack.c.l.b16 %v303
  %v394 = vunpack.c.h.b16 %v303
  %v395 = vunpack.c.l.b16 %v304
  %v396 = vunpack.c.h.b16 %v304
  %v397 = vunpack.c.l.b16 %v305
  %v398 = vunpack.c.h.b16 %v305
  %v399 = vunpack.c.l.b16 %v306
  %v400 = vunpack.c.h.b16 %v306
  %v401 = vunpack.c.l.b16 %v307
  %v402 = vunpack.c.h.b16 %v307
  %v403 = vunpack.c.l.b16 %v308
  %v404 = vunpack.c.h.b16 %v308
  %v405 = vpack.c.b16 %v341, %v341
  %v406 = vpack.c.b16 %v342, %v342
  %v407 = vpack.c.b16 %v343, %v343
  %v408 = vpack.c.b16 %v344, %v344
  %v409 = vpack.c.b16 %v345, %v345
  %v410 = vpack.c.b16 %v346, %v346
  %v411 = vpack.c.b16 %v347, %v347
  %v412 = vpack.c.b16 %v348, %v348
  %v413 = vpack.c.b16 %v349, %v349
  %v414 = vpack.c.b16 %v350, %v350
  %v415 = vpack.c.b16 %v351, %v351
  %v416 = vpack.c.b16 %v352, %v352
  %v417 = vpack.c.b16 %v353, %v353
  %v418 = vpack.c.b16 %v354, %v354
  %v419 = vpack.c.b16 %v355, %v355
  %v420 = vpack.c.b16 %v356, %v356
  %v421 = vpack.c.b16 %v357, %v357
  %v422 = vpack.c.b16 %v358, %v358
  %v423 = vpack.c.b16 %v359, %v359
  %v424 = vpack.c.b16 %v360, %v360
  %v425 = vpack.c.b16 %v361, %v361
  %v426 = vpack.c.b16 %v362, %v362
  %v427 = vpack.c.b16 %v363, %v363
  %v428 = vpack.c.b16 %v364, %v364
  %v429 = vpack.c.b16 %v365, %v365
  %v430 = vpack.c.b16 %v366, %v366
  %v431 = vpack.c.b16 %v367, %v367
  %v432 = vpack.c.b16 %v368, %v368
  %v433 = vpack.c.b16 %v369, %v369
  %v434 = vpack.c.b16 %v370, %v370
  %v435 = vpack.c.b16 %v371, %v371
  %v436 = vpack.c.b16 %v372, %v372
  %v437 = vpack.c.b16 %v373, %v373
  %v438 = vpack.c.b16 %v374, %v374
  %v439 = vpack.c.b16 %v375, %v375
  %v440 = vpack.c.b16 %v376, %v376
  %v441 = vpack.c.b16 %v377, %v377
  %v442 = vpack.c.b16 %v378, %v378
  %v443 = vpack.c.b16 %v379, %v379
  %v444 = vpack.c.b16 %v380, %v380
  %v445 = vpack.c.b16 %v381, %v381
  %v446 = vpack.c.b16 %v382, %v382
  %v447 = vpack.c.b16 %v383, %v383
  %v448 = vpack.c.b16 %v384, %v384
  %v449 = vpack.c.b16 %v385, %v385
  %v450 = vpack.c.b16 %v386, %v386
  %v451 = vpack.c.b16 %v387, %v387
  %v452 = vpack.c.b16 %v388, %v388
  %v453 = vpack.c.b16 %v389, %v389
  %v454 = vpack.c.b16 %v390, %v390
  %v455 = vpack.c.b16 %v391, %v391
  %v456 = vpack.c.b16 %v392, %v392
  %v457 = vpack.c.b16 %v393, %v393
  %v458 = vpack.c.b16 %v394, %v394
  %v459 = vpack.c.b16 %v395, %v395
  %v460 = vpack.c.b16 %v396, %v396
  %v461 = vpack.c.b16 %v397, %v397
  %v462 = vpack.c.b16 %v398, %v398
  %v463 = vpack.c.b16 %v399, %v399
  %v464 = vpack.c.b16 %v400, %v400
  %v465 = vpack.c.b16 %v401, %v401
  %v466 = vpack.c.b16 %v402, %v402
  %v467 = vpack.c.b16 %v403, %v403
  %v468 = vpack.c.b16 %v404, %v404
  %vm533 = vcmask 519168
  %534 = vst.msk [vmem:[%s2] sm:$0xf] %vm533, %v405
  %535 = vst.msk [vmem:[%s2 + $0x4] sm:$0xf] %vm533, %v406
  %536 = vst.msk [vmem:[%s2 + $0x8] sm:$0xf] %vm533, %v407
  %537 = vst.msk [vmem:[%s2 + $0xc] sm:$0xf] %vm533, %v408
  %538 = vst.msk [vmem:[%s2 + $0x10] sm:$0xf] %vm533, %v409
  %539 = vst.msk [vmem:[%s2 + $0x14] sm:$0xf] %vm533, %v410
  %540 = vst.msk [vmem:[%s2 + $0x18] sm:$0xf] %vm533, %v411
  %541 = vst.msk [vmem:[%s2 + $0x1c] sm:$0xf] %vm533, %v412
  %542 = vst.msk [vmem:[%s2 + $0x20] sm:$0xf] %vm533, %v413
  %543 = vst.msk [vmem:[%s2 + $0x24] sm:$0xf] %vm533, %v414
  %544 = vst.msk [vmem:[%s2 + $0x28] sm:$0xf] %vm533, %v415
  %545 = vst.msk [vmem:[%s2 + $0x2c] sm:$0xf] %vm533, %v416
  %546 = vst.msk [vmem:[%s2 + $0x30] sm:$0xf] %vm533, %v417
  %547 = vst.msk [vmem:[%s2 + $0x34] sm:$0xf] %vm533, %v418
  %548 = vst.msk [vmem:[%s2 + $0x38] sm:$0xf] %vm533, %v419
  %549 = vst.msk [vmem:[%s2 + $0x3c] sm:$0xf] %vm533, %v420
  %550 = vst.msk [vmem:[%s2 + $0x40] sm:$0xf] %vm533, %v421
  %551 = vst.msk [vmem:[%s2 + $0x44] sm:$0xf] %vm533, %v422
  %552 = vst.msk [vmem:[%s2 + $0x48] sm:$0xf] %vm533, %v423
  %553 = vst.msk [vmem:[%s2 + $0x4c] sm:$0xf] %vm533, %v424
  %554 = vst.msk [vmem:[%s2 + $0x50] sm:$0xf] %vm533, %v425
  %555 = vst.msk [vmem:[%s2 + $0x54] sm:$0xf] %vm533, %v426
  %556 = vst.msk [vmem:[%s2 + $0x58] sm:$0xf] %vm533, %v427
  %557 = vst.msk [vmem:[%s2 + $0x5c] sm:$0xf] %vm533, %v428
  %558 = vst.msk [vmem:[%s2 + $0x60] sm:$0xf] %vm533, %v429
  %559 = vst.msk [vmem:[%s2 + $0x64] sm:$0xf] %vm533, %v430
  %560 = vst.msk [vmem:[%s2 + $0x68] sm:$0xf] %vm533, %v431
  %561 = vst.msk [vmem:[%s2 + $0x6c] sm:$0xf] %vm533, %v432
  %562 = vst.msk [vmem:[%s2 + $0x70] sm:$0xf] %vm533, %v433
  %563 = vst.msk [vmem:[%s2 + $0x74] sm:$0xf] %vm533, %v434
  %564 = vst.msk [vmem:[%s2 + $0x78] sm:$0xf] %vm533, %v435
  %565 = vst.msk [vmem:[%s2 + $0x7c] sm:$0xf] %vm533, %v436
  %566 = vst.msk [vmem:[%s2 + $0x80] sm:$0xf] %vm533, %v437
  %567 = vst.msk [vmem:[%s2 + $0x84] sm:$0xf] %vm533, %v438
  %568 = vst.msk [vmem:[%s2 + $0x88] sm:$0xf] %vm533, %v439
  %569 = vst.msk [vmem:[%s2 + $0x8c] sm:$0xf] %vm533, %v440
  %570 = vst.msk [vmem:[%s2 + $0x90] sm:$0xf] %vm533, %v441
  %571 = vst.msk [vmem:[%s2 + $0x94] sm:$0xf] %vm533, %v442
  %572 = vst.msk [vmem:[%s2 + $0x98] sm:$0xf] %vm533, %v443
  %573 = vst.msk [vmem:[%s2 + $0x9c] sm:$0xf] %vm533, %v444
  %574 = vst.msk [vmem:[%s2 + $0xa0] sm:$0xf] %vm533, %v445
  %575 = vst.msk [vmem:[%s2 + $0xa4] sm:$0xf] %vm533, %v446
  %576 = vst.msk [vmem:[%s2 + $0xa8] sm:$0xf] %vm533, %v447
  %577 = vst.msk [vmem:[%s2 + $0xac] sm:$0xf] %vm533, %v448
  %578 = vst.msk [vmem:[%s2 + $0xb0] sm:$0xf] %vm533, %v449
  %579 = vst.msk [vmem:[%s2 + $0xb4] sm:$0xf] %vm533, %v450
  %580 = vst.msk [vmem:[%s2 + $0xb8] sm:$0xf] %vm533, %v451
  %581 = vst.msk [vmem:[%s2 + $0xbc] sm:$0xf] %vm533, %v452
  %582 = vst.msk [vmem:[%s2 + $0xc0] sm:$0xf] %vm533, %v453
  %583 = vst.msk [vmem:[%s2 + $0xc4] sm:$0xf] %vm533, %v454
  %584 = vst.msk [vmem:[%s2 + $0xc8] sm:$0xf] %vm533, %v455
  %585 = vst.msk [vmem:[%s2 + $0xcc] sm:$0xf] %vm533, %v456
  %586 = vst.msk [vmem:[%s2 + $0xd0] sm:$0xf] %vm533, %v457
  %587 = vst.msk [vmem:[%s2 + $0xd4] sm:$0xf] %vm533, %v458
  %588 = vst.msk [vmem:[%s2 + $0xd8] sm:$0xf] %vm533, %v459
  %589 = vst.msk [vmem:[%s2 + $0xdc] sm:$0xf] %vm533, %v460
  %590 = vst.msk [vmem:[%s2 + $0xe0] sm:$0xf] %vm533, %v461
  %591 = vst.msk [vmem:[%s2 + $0xe4] sm:$0xf] %vm533, %v462
  %592 = vst.msk [vmem:[%s2 + $0xe8] sm:$0xf] %vm533, %v463
  %593 = vst.msk [vmem:[%s2 + $0xec] sm:$0xf] %vm533, %v464
  %594 = vst.msk [vmem:[%s2 + $0xf0] sm:$0xf] %vm533, %v465
  %595 = vst.msk [vmem:[%s2 + $0xf4] sm:$0xf] %vm533, %v466
  %596 = vst.msk [vmem:[%s2 + $0xf8] sm:$0xf] %vm533, %v467
  %597 = vst.msk [vmem:[%s2 + $0xfc] sm:$0xf] %vm533, %v468
  // Predicated region
  $region10: #{_lambda_.12} parent=0 // pred_check
    _
  $region11: #{_lambda_.12} parent=0 // pred_check_branch
    %599 = sbr.rel (0) target = $region13
  $region12: #{_lambda_.12} parent=0 // pred_region
    _
  $region13: #{_lambda_.12} parent=0 // pred_fallthru
    _
  // Predicated region
  $region14: #{_lambda_.12} parent=0 // pred_check
    _
  $region15: #{_lambda_.12} parent=0 // pred_check_branch
    %601 = sbr.rel (0) target = $region17
  $region16: #{_lambda_.12} parent=0 // pred_region
    _
  $region17: #{_lambda_.12} parent=0 // pred_fallthru
    _

// kernel: _lambda_.13
$region0: #{_lambda_.13}
  #allocation0 [shape = 'u32[]', space=smem, size = 0x4, offset = 0x4, fixed_abs, tag = 'smem constant byte address 0x4 - core index']
  #allocation1 [shape = 'u32[144,128]{1,0:T(1,128)}', space=vmem, size = 0x12000, scoped, tag = 'internal scratch']
  %s0 = inlined_call_operand.vmem [shape: bf16[512,256], index: 0, kind: input, shape index: {}]
  %s1 = inlined_call_operand.vmem [shape: bf16[256,128], index: 1, kind: input, shape index: {}]
  %s2 = inlined_call_operand.vmem [shape: f32[1,128], index: 2, kind: input, shape index: {}]
  %s3 = inlined_call_operand.vmem [shape: f32[512,128], index: 3, kind: output, shape index: {}]
  %s4 = sld [smem:[#allocation0]]
  $region22: #{_lambda_.13} parent=0
    _
  %s6 = ssub.s32 1, %s4
  %s7 = scalar_select 0, %s6, %s4
  // Predicated region
  $region2: #{_lambda_.13} parent=0 // pred_check
    _
  $region3: #{_lambda_.13} parent=0 // pred_check_branch
    %9 = sbr.rel (0) target = $region5
  $region4: #{_lambda_.13} parent=0 // pred_region
    _
  $region5: #{_lambda_.13} parent=0 // pred_fallthru
    _
  // Predicated region
  $region6: #{_lambda_.13} parent=0 // pred_check
    _
  $region7: #{_lambda_.13} parent=0 // pred_check_branch
    %11 = sbr.rel (0) target = $region9
  $region8: #{_lambda_.13} parent=0 // pred_region
    _
  $region9: #{_lambda_.13} parent=0 // pred_fallthru
    _
  // Predicated region
  $region10: #{_lambda_.13} parent=0 // pred_check
    _
  $region11: #{_lambda_.13} parent=0 // pred_check_branch
    %13 = sbr.rel (0) target = $region13
  $region12: #{_lambda_.13} parent=0 // pred_region
    _
  $region13: #{_lambda_.13} parent=0 // pred_fallthru
    _
  %v15 = vld [vmem:[%s0] sm:$0xff]
  %v16 = vld [vmem:[%s0 + $0x8] sm:$0xff]
  %v17 = vld [vmem:[%s0 + $0x10] sm:$0xff]
  %v18 = vld [vmem:[%s0 + $0x18] sm:$0xff]
  %v19 = vld [vmem:[%s0 + $0x20] sm:$0xff]
  %v20 = vld [vmem:[%s0 + $0x28] sm:$0xff]
  %v21 = vld [vmem:[%s0 + $0x30] sm:$0xff]
  %v22 = vld [vmem:[%s0 + $0x38] sm:$0xff]
  %v23 = vld [vmem:[%s0 + $0x40] sm:$0xff]
  %v24 = vld [vmem:[%s0 + $0x48] sm:$0xff]
  %v25 = vld [vmem:[%s0 + $0x50] sm:$0xff]
  %v26 = vld [vmem:[%s0 + $0x58] sm:$0xff]
  %v27 = vld [vmem:[%s0 + $0x60] sm:$0xff]
  %v28 = vld [vmem:[%s0 + $0x68] sm:$0xff]
  %v29 = vld [vmem:[%s0 + $0x70] sm:$0xff]
  %v30 = vld [vmem:[%s0 + $0x78] sm:$0xff]
  %v31 = vld [vmem:[%s0 + $0x80] sm:$0xff]
  %v32 = vld [vmem:[%s0 + $0x88] sm:$0xff]
  %v33 = vld [vmem:[%s0 + $0x90] sm:$0xff]
  %v34 = vld [vmem:[%s0 + $0x98] sm:$0xff]
  %v35 = vld [vmem:[%s0 + $0xa0] sm:$0xff]
  %v36 = vld [vmem:[%s0 + $0xa8] sm:$0xff]
  %v37 = vld [vmem:[%s0 + $0xb0] sm:$0xff]
  %v38 = vld [vmem:[%s0 + $0xb8] sm:$0xff]
  %v39 = vld [vmem:[%s0 + $0xc0] sm:$0xff]
  %v40 = vld [vmem:[%s0 + $0xc8] sm:$0xff]
  %v41 = vld [vmem:[%s0 + $0xd0] sm:$0xff]
  %v42 = vld [vmem:[%s0 + $0xd8] sm:$0xff]
  %v43 = vld [vmem:[%s0 + $0xe0] sm:$0xff]
  %v44 = vld [vmem:[%s0 + $0xe8] sm:$0xff]
  %v45 = vld [vmem:[%s0 + $0xf0] sm:$0xff]
  %v46 = vld [vmem:[%s0 + $0xf8] sm:$0xff]
  %v47 = vld [vmem:[%s0 + $0x100] sm:$0xff]
  %v48 = vld [vmem:[%s0 + $0x108] sm:$0xff]
  %v49 = vld [vmem:[%s0 + $0x110] sm:$0xff]
  %v50 = vld [vmem:[%s0 + $0x118] sm:$0xff]
  %v51 = vld [vmem:[%s0 + $0x120] sm:$0xff]
  %v52 = vld [vmem:[%s0 + $0x128] sm:$0xff]
  %v53 = vld [vmem:[%s0 + $0x130] sm:$0xff]
  %v54 = vld [vmem:[%s0 + $0x138] sm:$0xff]
  %v55 = vld [vmem:[%s0 + $0x140] sm:$0xff]
  %v56 = vld [vmem:[%s0 + $0x148] sm:$0xff]
  %v57 = vld [vmem:[%s0 + $0x150] sm:$0xff]
  %v58 = vld [vmem:[%s0 + $0x158] sm:$0xff]
  %v59 = vld [vmem:[%s0 + $0x160] sm:$0xff]
  %v60 = vld [vmem:[%s0 + $0x168] sm:$0xff]
  %v61 = vld [vmem:[%s0 + $0x170] sm:$0xff]
  %v62 = vld [vmem:[%s0 + $0x178] sm:$0xff]
  %v63 = vld [vmem:[%s0 + $0x180] sm:$0xff]
  %v64 = vld [vmem:[%s0 + $0x188] sm:$0xff]
  %v65 = vld [vmem:[%s0 + $0x190] sm:$0xff]
  %v66 = vld [vmem:[%s0 + $0x198] sm:$0xff]
  %v67 = vld [vmem:[%s0 + $0x1a0] sm:$0xff]
  %v68 = vld [vmem:[%s0 + $0x1a8] sm:$0xff]
  %v69 = vld [vmem:[%s0 + $0x1b0] sm:$0xff]
  %v70 = vld [vmem:[%s0 + $0x1b8] sm:$0xff]
  %v71 = vld [vmem:[%s0 + $0x1c0] sm:$0xff]
  %v72 = vld [vmem:[%s0 + $0x1c8] sm:$0xff]
  %v73 = vld [vmem:[%s0 + $0x1d0] sm:$0xff]
  %v74 = vld [vmem:[%s0 + $0x1d8] sm:$0xff]
  %v75 = vld [vmem:[%s0 + $0x1e0] sm:$0xff]
  %v76 = vld [vmem:[%s0 + $0x1e8] sm:$0xff]
  %v77 = vld [vmem:[%s0 + $0x1f0] sm:$0xff]
  %v78 = vld [vmem:[%s0 + $0x1f8] sm:$0xff]
  %v79 = vld [vmem:[%s1] sm:$0xf]
  %v80 = vld [vmem:[%s1 + $0x4] sm:$0xf]
  %v81 = vld [vmem:[%s1 + $0x8] sm:$0xf]
  %v82 = vld [vmem:[%s1 + $0xc] sm:$0xf]
  %v83 = vld [vmem:[%s1 + $0x10] sm:$0xf]
  %v84 = vld [vmem:[%s1 + $0x14] sm:$0xf]
  %v85 = vld [vmem:[%s1 + $0x18] sm:$0xf]
  %v86 = vld [vmem:[%s1 + $0x1c] sm:$0xf]
  %v87 = vld [vmem:[%s1 + $0x20] sm:$0xf]
  %v88 = vld [vmem:[%s1 + $0x24] sm:$0xf]
  %v89 = vld [vmem:[%s1 + $0x28] sm:$0xf]
  %v90 = vld [vmem:[%s1 + $0x2c] sm:$0xf]
  %v91 = vld [vmem:[%s1 + $0x30] sm:$0xf]
  %v92 = vld [vmem:[%s1 + $0x34] sm:$0xf]
  %v93 = vld [vmem:[%s1 + $0x38] sm:$0xf]
  %v94 = vld [vmem:[%s1 + $0x3c] sm:$0xf]
  %v95 = vld [vmem:[%s1 + $0x40] sm:$0xf]
  %v96 = vld [vmem:[%s1 + $0x44] sm:$0xf]
  %v97 = vld [vmem:[%s1 + $0x48] sm:$0xf]
  %v98 = vld [vmem:[%s1 + $0x4c] sm:$0xf]
  %v99 = vld [vmem:[%s1 + $0x50] sm:$0xf]
  %v100 = vld [vmem:[%s1 + $0x54] sm:$0xf]
  %v101 = vld [vmem:[%s1 + $0x58] sm:$0xf]
  %v102 = vld [vmem:[%s1 + $0x5c] sm:$0xf]
  %v103 = vld [vmem:[%s1 + $0x60] sm:$0xf]
  %v104 = vld [vmem:[%s1 + $0x64] sm:$0xf]
  %v105 = vld [vmem:[%s1 + $0x68] sm:$0xf]
  %v106 = vld [vmem:[%s1 + $0x6c] sm:$0xf]
  %v107 = vld [vmem:[%s1 + $0x70] sm:$0xf]
  %v108 = vld [vmem:[%s1 + $0x74] sm:$0xf]
  %v109 = vld [vmem:[%s1 + $0x78] sm:$0xf]
  %v110 = vld [vmem:[%s1 + $0x7c] sm:$0xf]
  %v111 = vld [vmem:[%s2] sm:$0x1]
  %v113 = vlaneseq
  %v114 = vshrl.u32 %v113, 7
  %v115 = vsub.s32 0, %v114
  %v116 = vrot.slane %v111, %v115
  %v182 = vunpack.c.l.b16 %v15
  %v183 = vunpack.c.h.b16 %v15
  %v184 = vunpack.c.l.b16 %v16
  %v185 = vunpack.c.h.b16 %v16
  %v186 = vunpack.c.l.b16 %v17
  %v187 = vunpack.c.h.b16 %v17
  %v188 = vunpack.c.l.b16 %v18
  %v189 = vunpack.c.h.b16 %v18
  %v190 = vunpack.c.l.b16 %v19
  %v191 = vunpack.c.h.b16 %v19
  %v192 = vunpack.c.l.b16 %v20
  %v193 = vunpack.c.h.b16 %v20
  %v194 = vunpack.c.l.b16 %v21
  %v195 = vunpack.c.h.b16 %v21
  %v196 = vunpack.c.l.b16 %v22
  %v197 = vunpack.c.h.b16 %v22
  %v198 = vunpack.c.l.b16 %v23
  %v199 = vunpack.c.h.b16 %v23
  %v200 = vunpack.c.l.b16 %v24
  %v201 = vunpack.c.h.b16 %v24
  %v202 = vunpack.c.l.b16 %v25
  %v203 = vunpack.c.h.b16 %v25
  %v204 = vunpack.c.l.b16 %v26
  %v205 = vunpack.c.h.b16 %v26
  %v206 = vunpack.c.l.b16 %v27
  %v207 = vunpack.c.h.b16 %v27
  %v208 = vunpack.c.l.b16 %v28
  %v209 = vunpack.c.h.b16 %v28
  %v210 = vunpack.c.l.b16 %v29
  %v211 = vunpack.c.h.b16 %v29
  %v212 = vunpack.c.l.b16 %v30
  %v213 = vunpack.c.h.b16 %v30
  %v214 = vunpack.c.l.b16 %v31
  %v215 = vunpack.c.h.b16 %v31
  %v216 = vunpack.c.l.b16 %v32
  %v217 = vunpack.c.h.b16 %v32
  %v218 = vunpack.c.l.b16 %v33
  %v219 = vunpack.c.h.b16 %v33
  %v220 = vunpack.c.l.b16 %v34
  %v221 = vunpack.c.h.b16 %v34
  %v222 = vunpack.c.l.b16 %v35
  %v223 = vunpack.c.h.b16 %v35
  %v224 = vunpack.c.l.b16 %v36
  %v225 = vunpack.c.h.b16 %v36
  %v226 = vunpack.c.l.b16 %v37
  %v227 = vunpack.c.h.b16 %v37
  %v228 = vunpack.c.l.b16 %v38
  %v229 = vunpack.c.h.b16 %v38
  %v230 = vunpack.c.l.b16 %v39
  %v231 = vunpack.c.h.b16 %v39
  %v232 = vunpack.c.l.b16 %v40
  %v233 = vunpack.c.h.b16 %v40
  %v234 = vunpack.c.l.b16 %v41
  %v235 = vunpack.c.h.b16 %v41
  %v236 = vunpack.c.l.b16 %v42
  %v237 = vunpack.c.h.b16 %v42
  %v238 = vunpack.c.l.b16 %v43
  %v239 = vunpack.c.h.b16 %v43
  %v240 = vunpack.c.l.b16 %v44
  %v241 = vunpack.c.h.b16 %v44
  %v242 = vunpack.c.l.b16 %v45
  %v243 = vunpack.c.h.b16 %v45
  %v244 = vunpack.c.l.b16 %v46
  %v245 = vunpack.c.h.b16 %v46
  %v246 = vunpack.c.l.b16 %v47
  %v247 = vunpack.c.h.b16 %v47
  %v248 = vunpack.c.l.b16 %v48
  %v249 = vunpack.c.h.b16 %v48
  %v250 = vunpack.c.l.b16 %v49
  %v251 = vunpack.c.h.b16 %v49
  %v252 = vunpack.c.l.b16 %v50
  %v253 = vunpack.c.h.b16 %v50
  %v254 = vunpack.c.l.b16 %v51
  %v255 = vunpack.c.h.b16 %v51
  %v256 = vunpack.c.l.b16 %v52
  %v257 = vunpack.c.h.b16 %v52
  %v258 = vunpack.c.l.b16 %v53
  %v259 = vunpack.c.h.b16 %v53
  %v260 = vunpack.c.l.b16 %v54
  %v261 = vunpack.c.h.b16 %v54
  %v262 = vunpack.c.l.b16 %v55
  %v263 = vunpack.c.h.b16 %v55
  %v264 = vunpack.c.l.b16 %v56
  %v265 = vunpack.c.h.b16 %v56
  %v266 = vunpack.c.l.b16 %v57
  %v267 = vunpack.c.h.b16 %v57
  %v268 = vunpack.c.l.b16 %v58
  %v269 = vunpack.c.h.b16 %v58
  %v270 = vunpack.c.l.b16 %v59
  %v271 = vunpack.c.h.b16 %v59
  %v272 = vunpack.c.l.b16 %v60
  %v273 = vunpack.c.h.b16 %v60
  %v274 = vunpack.c.l.b16 %v61
  %v275 = vunpack.c.h.b16 %v61
  %v276 = vunpack.c.l.b16 %v62
  %v277 = vunpack.c.h.b16 %v62
  %v278 = vunpack.c.l.b16 %v63
  %v279 = vunpack.c.h.b16 %v63
  %v280 = vunpack.c.l.b16 %v64
  %v281 = vunpack.c.h.b16 %v64
  %v282 = vunpack.c.l.b16 %v65
  %v283 = vunpack.c.h.b16 %v65
  %v284 = vunpack.c.l.b16 %v66
  %v285 = vunpack.c.h.b16 %v66
  %v286 = vunpack.c.l.b16 %v67
  %v287 = vunpack.c.h.b16 %v67
  %v288 = vunpack.c.l.b16 %v68
  %v289 = vunpack.c.h.b16 %v68
  %v290 = vunpack.c.l.b16 %v69
  %v291 = vunpack.c.h.b16 %v69
  %v292 = vunpack.c.l.b16 %v70
  %v293 = vunpack.c.h.b16 %v70
  %v294 = vunpack.c.l.b16 %v71
  %v295 = vunpack.c.h.b16 %v71
  %v296 = vunpack.c.l.b16 %v72
  %v297 = vunpack.c.h.b16 %v72
  %v298 = vunpack.c.l.b16 %v73
  %v299 = vunpack.c.h.b16 %v73
  %v300 = vunpack.c.l.b16 %v74
  %v301 = vunpack.c.h.b16 %v74
  %v302 = vunpack.c.l.b16 %v75
  %v303 = vunpack.c.h.b16 %v75
  %v304 = vunpack.c.l.b16 %v76
  %v305 = vunpack.c.h.b16 %v76
  %v306 = vunpack.c.l.b16 %v77
  %v307 = vunpack.c.h.b16 %v77
  %v308 = vunpack.c.l.b16 %v78
  %v309 = vunpack.c.h.b16 %v78
  %v310 = vpack.c.b16 %v184, %v182
  %v311 = vpack.c.b16 %v185, %v183
  %v312 = vpack.c.b16 %v188, %v186
  %v313 = vpack.c.b16 %v189, %v187
  %v314 = vpack.c.b16 %v192, %v190
  %v315 = vpack.c.b16 %v193, %v191
  %v316 = vpack.c.b16 %v196, %v194
  %v317 = vpack.c.b16 %v197, %v195
  %v318 = vpack.c.b16 %v200, %v198
  %v319 = vpack.c.b16 %v201, %v199
  %v320 = vpack.c.b16 %v204, %v202
  %v321 = vpack.c.b16 %v205, %v203
  %v322 = vpack.c.b16 %v208, %v206
  %v323 = vpack.c.b16 %v209, %v207
  %v324 = vpack.c.b16 %v212, %v210
  %v325 = vpack.c.b16 %v213, %v211
  %v326 = vpack.c.b16 %v216, %v214
  %v327 = vpack.c.b16 %v217, %v215
  %v328 = vpack.c.b16 %v220, %v218
  %v329 = vpack.c.b16 %v221, %v219
  %v330 = vpack.c.b16 %v224, %v222
  %v331 = vpack.c.b16 %v225, %v223
  %v332 = vpack.c.b16 %v228, %v226
  %v333 = vpack.c.b16 %v229, %v227
  %v334 = vpack.c.b16 %v232, %v230
  %v335 = vpack.c.b16 %v233, %v231
  %v336 = vpack.c.b16 %v236, %v234
  %v337 = vpack.c.b16 %v237, %v235
  %v338 = vpack.c.b16 %v240, %v238
  %v339 = vpack.c.b16 %v241, %v239
  %v340 = vpack.c.b16 %v244, %v242
  %v341 = vpack.c.b16 %v245, %v243
  %v342 = vpack.c.b16 %v248, %v246
  %v343 = vpack.c.b16 %v249, %v247
  %v344 = vpack.c.b16 %v252, %v250
  %v345 = vpack.c.b16 %v253, %v251
  %v346 = vpack.c.b16 %v256, %v254
  %v347 = vpack.c.b16 %v257, %v255
  %v348 = vpack.c.b16 %v260, %v258
  %v349 = vpack.c.b16 %v261, %v259
  %v350 = vpack.c.b16 %v264, %v262
  %v351 = vpack.c.b16 %v265, %v263
  %v352 = vpack.c.b16 %v268, %v266
  %v353 = vpack.c.b16 %v269, %v267
  %v354 = vpack.c.b16 %v272, %v270
  %v355 = vpack.c.b16 %v273, %v271
  %v356 = vpack.c.b16 %v276, %v274
  %v357 = vpack.c.b16 %v277, %v275
  %v358 = vpack.c.b16 %v280, %v278
  %v359 = vpack.c.b16 %v281, %v279
  %v360 = vpack.c.b16 %v284, %v282
  %v361 = vpack.c.b16 %v285, %v283
  %v362 = vpack.c.b16 %v288, %v286
  %v363 = vpack.c.b16 %v289, %v287
  %v364 = vpack.c.b16 %v292, %v290
  %v365 = vpack.c.b16 %v293, %v291
  %v366 = vpack.c.b16 %v296, %v294
  %v367 = vpack.c.b16 %v297, %v295
  %v368 = vpack.c.b16 %v300, %v298
  %v369 = vpack.c.b16 %v301, %v299
  %v370 = vpack.c.b16 %v304, %v302
  %v371 = vpack.c.b16 %v305, %v303
  %v372 = vpack.c.b16 %v308, %v306
  %v373 = vpack.c.b16 %v309, %v307
  %v470 = vunpack.c.l.b16 %v79
  %v471 = vunpack.c.l.b16 %v80
  %v472 = vunpack.c.l.b16 %v81
  %v473 = vunpack.c.l.b16 %v82
  %v474 = vunpack.c.l.b16 %v83
  %v475 = vunpack.c.l.b16 %v84
  %v476 = vunpack.c.l.b16 %v85
  %v477 = vunpack.c.l.b16 %v86
  %v478 = vunpack.c.l.b16 %v87
  %v479 = vunpack.c.l.b16 %v88
  %v480 = vunpack.c.l.b16 %v89
  %v481 = vunpack.c.l.b16 %v90
  %v482 = vunpack.c.l.b16 %v91
  %v483 = vunpack.c.l.b16 %v92
  %v484 = vunpack.c.l.b16 %v93
  %v485 = vunpack.c.l.b16 %v94
  %v486 = vunpack.c.l.b16 %v95
  %v487 = vunpack.c.l.b16 %v96
  %v488 = vunpack.c.l.b16 %v97
  %v489 = vunpack.c.l.b16 %v98
  %v490 = vunpack.c.l.b16 %v99
  %v491 = vunpack.c.l.b16 %v100
  %v492 = vunpack.c.l.b16 %v101
  %v493 = vunpack.c.l.b16 %v102
  %v494 = vunpack.c.l.b16 %v103
  %v495 = vunpack.c.l.b16 %v104
  %v496 = vunpack.c.l.b16 %v105
  %v497 = vunpack.c.l.b16 %v106
  %v498 = vunpack.c.l.b16 %v107
  %v499 = vunpack.c.l.b16 %v108
  %v500 = vunpack.c.l.b16 %v109
  %v501 = vunpack.c.l.b16 %v110
  %v502 = vpack.c.b16 %v471, %v470
  %v503 = vpack.c.b16 %v473, %v472
  %v504 = vpack.c.b16 %v475, %v474
  %v505 = vpack.c.b16 %v477, %v476
  %v506 = vpack.c.b16 %v479, %v478
  %v507 = vpack.c.b16 %v481, %v480
  %v508 = vpack.c.b16 %v483, %v482
  %v509 = vpack.c.b16 %v485, %v484
  %v510 = vpack.c.b16 %v487, %v486
  %v511 = vpack.c.b16 %v489, %v488
  %v512 = vpack.c.b16 %v491, %v490
  %v513 = vpack.c.b16 %v493, %v492
  %v514 = vpack.c.b16 %v495, %v494
  %v515 = vpack.c.b16 %v497, %v496
  %v516 = vpack.c.b16 %v499, %v498
  %v517 = vpack.c.b16 %v501, %v500
  %534 = vmatprep.subr.bf16.mxu0 0
  %535 = vmatpush1.bf16.msra.mxu0 %v502
  %536 = vmatprep.subr.bf16.mxu0 0
  %537 = vmatpush1.bf16.msra.mxu0 %v503
  %538 = vmatprep.subr.bf16.mxu0 0
  %539 = vmatpush1.bf16.msra.mxu0 %v504
  %540 = vmatprep.subr.bf16.mxu0 0
  %541 = vmatpush1.bf16.msra.mxu0 %v505
  %542 = vmatprep.subr.bf16.mxu0 0
  %543 = vmatpush1.bf16.msra.mxu0 %v506
  %544 = vmatprep.subr.bf16.mxu0 0
  %545 = vmatpush1.bf16.msra.mxu0 %v507
  %546 = vmatprep.subr.bf16.mxu0 0
  %547 = vmatpush1.bf16.msra.mxu0 %v508
  %548 = vmatprep.subr.bf16.mxu0 0
  %549 = vmatpush1.bf16.msra.mxu0 %v509
  %550 = vmatprep.subr.bf16.mxu0 0
  %551 = vmatpush1.bf16.msra.mxu0 %v510
  %552 = vmatprep.subr.bf16.mxu0 0
  %553 = vmatpush1.bf16.msra.mxu0 %v511
  %554 = vmatprep.subr.bf16.mxu0 0
  %555 = vmatpush1.bf16.msra.mxu0 %v512
  %556 = vmatprep.subr.bf16.mxu0 0
  %557 = vmatpush1.bf16.msra.mxu0 %v513
  %558 = vmatprep.subr.bf16.mxu0 0
  %559 = vmatpush1.bf16.msra.mxu0 %v514
  %560 = vmatprep.subr.bf16.mxu0 0
  %561 = vmatpush1.bf16.msra.mxu0 %v515
  %562 = vmatprep.subr.bf16.mxu0 0
  %563 = vmatpush1.bf16.msra.mxu0 %v516
  %564 = vmatprep.subr.bf16.mxu0 0
  %565 = vmatpush1.bf16.msra.mxu0 %v517
  %566 = vmatprep.mubr.bf16.mxu0 %v311
  %567 = vmatmul.mubr.bf16.gmra.mrb[0].mxu0 %v310
  %v568 = vpop.f32.mrb[0].mxu0
  %v569 = vadd.f32 %v116, %v568
  %v570 = vpop.f32.mrb[0].mxu0
  %v571 = vpop.f32.mrb[0].mxu0
  %v572 = vadd.f32 %v116, %v571
  %v573 = vpop.f32.mrb[0].mxu0
  %574 = vmatprep.mubr.bf16.mxu0 %v313
  %575 = vmatmul.mubr.bf16.gmra.mrb[0].mxu0 %v312
  %v576 = vpop.f32.mrb[0].mxu0
  %v577 = vadd.f32 %v116, %v576
  %v578 = vpop.f32.mrb[0].mxu0
  %v579 = vpop.f32.mrb[0].mxu0
  %v580 = vadd.f32 %v116, %v579
  %v581 = vpop.f32.mrb[0].mxu0
  %582 = vmatprep.mubr.bf16.mxu0 %v315
  %583 = vmatmul.mubr.bf16.gmra.mrb[0].mxu0 %v314
  %v584 = vpop.f32.mrb[0].mxu0
  %v585 = vadd.f32 %v116, %v584
  %v586 = vpop.f32.mrb[0].mxu0
  %v587 = vpop.f32.mrb[0].mxu0
  %v588 = vadd.f32 %v116, %v587
  %v589 = vpop.f32.mrb[0].mxu0
  %590 = vmatprep.mubr.bf16.mxu0 %v317
  %591 = vmatmul.mubr.bf16.gmra.mrb[0].mxu0 %v316
  %v592 = vpop.f32.mrb[0].mxu0
  %v593 = vadd.f32 %v116, %v592
  %v594 = vpop.f32.mrb[0].mxu0
  %v595 = vpop.f32.mrb[0].mxu0
  %v596 = vadd.f32 %v116, %v595
  %v597 = vpop.f32.mrb[0].mxu0
  %598 = vmatprep.mubr.bf16.mxu0 %v319
  %599 = vmatmul.mubr.bf16.gmra.mrb[0].mxu0 %v318
  %v600 = vpop.f32.mrb[0].mxu0
  %v601 = vadd.f32 %v116, %v600
  %v602 = vpop.f32.mrb[0].mxu0
  %v603 = vpop.f32.mrb[0].mxu0
  %v604 = vadd.f32 %v116, %v603
  %v605 = vpop.f32.mrb[0].mxu0
  %606 = vmatprep.mubr.bf16.mxu0 %v321
  %607 = vmatmul.mubr.bf16.gmra.mrb[0].mxu0 %v320
  %v608 = vpop.f32.mrb[0].mxu0
  %v609 = vadd.f32 %v116, %v608
  %v610 = vpop.f32.mrb[0].mxu0
  %v611 = vpop.f32.mrb[0].mxu0
  %v612 = vadd.f32 %v116, %v611
  %v613 = vpop.f32.mrb[0].mxu0
  %614 = vmatprep.mubr.bf16.mxu0 %v323
  %615 = vmatmul.mubr.bf16.gmra.mrb[0].mxu0 %v322
  %v616 = vpop.f32.mrb[0].mxu0
  %v617 = vadd.f32 %v116, %v616
  %v618 = vpop.f32.mrb[0].mxu0
  %v619 = vpop.f32.mrb[0].mxu0
  %v620 = vadd.f32 %v116, %v619
  %v621 = vpop.f32.mrb[0].mxu0
  %622 = vmatprep.mubr.bf16.mxu0 %v325
  %623 = vmatmul.mubr.bf16.gmra.mrb[0].mxu0 %v324
  %v624 = vpop.f32.mrb[0].mxu0
  %v625 = vadd.f32 %v116, %v624
  %v626 = vpop.f32.mrb[0].mxu0
  %v627 = vpop.f32.mrb[0].mxu0
  %v628 = vadd.f32 %v116, %v627
  %v629 = vpop.f32.mrb[0].mxu0
  %630 = vmatprep.mubr.bf16.mxu0 %v327
  %631 = vmatmul.mubr.bf16.gmra.mrb[0].mxu0 %v326
  %v632 = vpop.f32.mrb[0].mxu0
  %v633 = vadd.f32 %v116, %v632
  %v634 = vpop.f32.mrb[0].mxu0
  %v635 = vpop.f32.mrb[0].mxu0
  %v636 = vadd.f32 %v116, %v635
  %v637 = vpop.f32.mrb[0].mxu0
  %638 = vmatprep.mubr.bf16.mxu0 %v329
  %639 = vmatmul.mubr.bf16.gmra.mrb[0].mxu0 %v328
  %v640 = vpop.f32.mrb[0].mxu0
  %v641 = vadd.f32 %v116, %v640
  %v642 = vpop.f32.mrb[0].mxu0
  %v643 = vpop.f32.mrb[0].mxu0
  %v644 = vadd.f32 %v116, %v643
  %v645 = vpop.f32.mrb[0].mxu0
  %646 = vmatprep.mubr.bf16.mxu0 %v331
  %647 = vmatmul.mubr.bf16.gmra.mrb[0].mxu0 %v330
  %v648 = vpop.f32.mrb[0].mxu0
  %v649 = vadd.f32 %v116, %v648
  %v650 = vpop.f32.mrb[0].mxu0
  %v651 = vpop.f32.mrb[0].mxu0
  %v652 = vadd.f32 %v116, %v651
  %v653 = vpop.f32.mrb[0].mxu0
  %654 = vmatprep.mubr.bf16.mxu0 %v333
  %655 = vmatmul.mubr.bf16.gmra.mrb[0].mxu0 %v332
  %v656 = vpop.f32.mrb[0].mxu0
  %v657 = vadd.f32 %v116, %v656
  %v658 = vpop.f32.mrb[0].mxu0
  %v659 = vpop.f32.mrb[0].mxu0
  %v660 = vadd.f32 %v116, %v659
  %v661 = vpop.f32.mrb[0].mxu0
  %662 = vmatprep.mubr.bf16.mxu0 %v335
  %663 = vmatmul.mubr.bf16.gmra.mrb[0].mxu0 %v334
  %v664 = vpop.f32.mrb[0].mxu0
  %v665 = vadd.f32 %v116, %v664
  %v666 = vpop.f32.mrb[0].mxu0
  %v667 = vpop.f32.mrb[0].mxu0
  %v668 = vadd.f32 %v116, %v667
  %v669 = vpop.f32.mrb[0].mxu0
  %670 = vmatprep.mubr.bf16.mxu0 %v337
  %671 = vmatmul.mubr.bf16.gmra.mrb[0].mxu0 %v336
  %v672 = vpop.f32.mrb[0].mxu0
  %v673 = vadd.f32 %v116, %v672
  %v674 = vpop.f32.mrb[0].mxu0
  %v675 = vpop.f32.mrb[0].mxu0
  %v676 = vadd.f32 %v116, %v675
  %v677 = vpop.f32.mrb[0].mxu0
  %678 = vmatprep.mubr.bf16.mxu0 %v339
  %679 = vmatmul.mubr.bf16.gmra.mrb[0].mxu0 %v338
  %v680 = vpop.f32.mrb[0].mxu0
  %v681 = vadd.f32 %v116, %v680
  %v682 = vpop.f32.mrb[0].mxu0
  %v683 = vpop.f32.mrb[0].mxu0
  %v684 = vadd.f32 %v116, %v683
  %v685 = vpop.f32.mrb[0].mxu0
  %686 = vmatprep.mubr.bf16.mxu0 %v341
  %687 = vmatmul.mubr.bf16.gmra.mrb[0].mxu0 %v340
  %v688 = vpop.f32.mrb[0].mxu0
  %v689 = vadd.f32 %v116, %v688
  %v690 = vpop.f32.mrb[0].mxu0
  %v691 = vpop.f32.mrb[0].mxu0
  %v692 = vadd.f32 %v116, %v691
  %v693 = vpop.f32.mrb[0].mxu0
  %694 = vmatprep.mubr.bf16.mxu0 %v343
  %695 = vmatmul.mubr.bf16.gmra.mrb[0].mxu0 %v342
  %v696 = vpop.f32.mrb[0].mxu0
  %v697 = vadd.f32 %v116, %v696
  %v698 = vpop.f32.mrb[0].mxu0
  %v699 = vpop.f32.mrb[0].mxu0
  %v700 = vadd.f32 %v116, %v699
  %v701 = vpop.f32.mrb[0].mxu0
  %702 = vmatprep.mubr.bf16.mxu0 %v345
  %703 = vmatmul.mubr.bf16.gmra.mrb[0].mxu0 %v344
  %v704 = vpop.f32.mrb[0].mxu0
  %v705 = vadd.f32 %v116, %v704
  %v706 = vpop.f32.mrb[0].mxu0
  %v707 = vpop.f32.mrb[0].mxu0
  %v708 = vadd.f32 %v116, %v707
  %v709 = vpop.f32.mrb[0].mxu0
  %710 = vmatprep.mubr.bf16.mxu0 %v347
  %711 = vmatmul.mubr.bf16.gmra.mrb[0].mxu0 %v346
  %v712 = vpop.f32.mrb[0].mxu0
  %v713 = vadd.f32 %v116, %v712
  %v714 = vpop.f32.mrb[0].mxu0
  %v715 = vpop.f32.mrb[0].mxu0
  %v716 = vadd.f32 %v116, %v715
  %v717 = vpop.f32.mrb[0].mxu0
  %718 = vmatprep.mubr.bf16.mxu0 %v349
  %719 = vmatmul.mubr.bf16.gmra.mrb[0].mxu0 %v348
  %v720 = vpop.f32.mrb[0].mxu0
  %v721 = vadd.f32 %v116, %v720
  %v722 = vpop.f32.mrb[0].mxu0
  %v723 = vpop.f32.mrb[0].mxu0
  %v724 = vadd.f32 %v116, %v723
  %v725 = vpop.f32.mrb[0].mxu0
  %726 = vmatprep.mubr.bf16.mxu0 %v351
  %727 = vmatmul.mubr.bf16.gmra.mrb[0].mxu0 %v350
  %v728 = vpop.f32.mrb[0].mxu0
  %v729 = vadd.f32 %v116, %v728
  %v730 = vpop.f32.mrb[0].mxu0
  %v731 = vpop.f32.mrb[0].mxu0
  %v732 = vadd.f32 %v116, %v731
  %v733 = vpop.f32.mrb[0].mxu0
  %734 = vmatprep.mubr.bf16.mxu0 %v353
  %735 = vmatmul.mubr.bf16.gmra.mrb[0].mxu0 %v352
  %v736 = vpop.f32.mrb[0].mxu0
  %v737 = vadd.f32 %v116, %v736
  %v738 = vpop.f32.mrb[0].mxu0
  %v739 = vpop.f32.mrb[0].mxu0
  %v740 = vadd.f32 %v116, %v739
  %v741 = vpop.f32.mrb[0].mxu0
  %742 = vmatprep.mubr.bf16.mxu0 %v355
  %743 = vmatmul.mubr.bf16.gmra.mrb[0].mxu0 %v354
  %v744 = vpop.f32.mrb[0].mxu0
  %v745 = vadd.f32 %v116, %v744
  %v746 = vpop.f32.mrb[0].mxu0
  %v747 = vpop.f32.mrb[0].mxu0
  %v748 = vadd.f32 %v116, %v747
  %v749 = vpop.f32.mrb[0].mxu0
  %750 = vmatprep.mubr.bf16.mxu0 %v357
  %751 = vmatmul.mubr.bf16.gmra.mrb[0].mxu0 %v356
  %v752 = vpop.f32.mrb[0].mxu0
  %v753 = vadd.f32 %v116, %v752
  %v754 = vpop.f32.mrb[0].mxu0
  %v755 = vpop.f32.mrb[0].mxu0
  %v756 = vadd.f32 %v116, %v755
  %v757 = vpop.f32.mrb[0].mxu0
  %758 = vmatprep.mubr.bf16.mxu0 %v359
  %759 = vmatmul.mubr.bf16.gmra.mrb[0].mxu0 %v358
  %v760 = vpop.f32.mrb[0].mxu0
  %v761 = vadd.f32 %v116, %v760
  %v762 = vpop.f32.mrb[0].mxu0
  %v763 = vpop.f32.mrb[0].mxu0
  %v764 = vadd.f32 %v116, %v763
  %v765 = vpop.f32.mrb[0].mxu0
  %766 = vmatprep.mubr.bf16.mxu0 %v361
  %767 = vmatmul.mubr.bf16.gmra.mrb[0].mxu0 %v360
  %v768 = vpop.f32.mrb[0].mxu0
  %v769 = vadd.f32 %v116, %v768
  %v770 = vpop.f32.mrb[0].mxu0
  %v771 = vpop.f32.mrb[0].mxu0
  %v772 = vadd.f32 %v116, %v771
  %v773 = vpop.f32.mrb[0].mxu0
  %774 = vmatprep.mubr.bf16.mxu0 %v363
  %775 = vmatmul.mubr.bf16.gmra.mrb[0].mxu0 %v362
  %v776 = vpop.f32.mrb[0].mxu0
  %v777 = vadd.f32 %v116, %v776
  %v778 = vpop.f32.mrb[0].mxu0
  %v779 = vpop.f32.mrb[0].mxu0
  %v780 = vadd.f32 %v116, %v779
  %v781 = vpop.f32.mrb[0].mxu0
  %782 = vmatprep.mubr.bf16.mxu0 %v365
  %783 = vmatmul.mubr.bf16.gmra.mrb[0].mxu0 %v364
  %v784 = vpop.f32.mrb[0].mxu0
  %v785 = vadd.f32 %v116, %v784
  %v786 = vpop.f32.mrb[0].mxu0
  %v787 = vpop.f32.mrb[0].mxu0
  %v788 = vadd.f32 %v116, %v787
  %v789 = vpop.f32.mrb[0].mxu0
  %790 = vmatprep.mubr.bf16.mxu0 %v367
  %791 = vmatmul.mubr.bf16.gmra.mrb[0].mxu0 %v366
  %v792 = vpop.f32.mrb[0].mxu0
  %v793 = vadd.f32 %v116, %v792
  %v794 = vpop.f32.mrb[0].mxu0
  %v795 = vpop.f32.mrb[0].mxu0
  %v796 = vadd.f32 %v116, %v795
  %v797 = vpop.f32.mrb[0].mxu0
  %798 = vmatprep.mubr.bf16.mxu0 %v369
  %799 = vmatmul.mubr.bf16.gmra.mrb[0].mxu0 %v368
  %v800 = vpop.f32.mrb[0].mxu0
  %v801 = vadd.f32 %v116, %v800
  %v802 = vpop.f32.mrb[0].mxu0
  %v803 = vpop.f32.mrb[0].mxu0
  %v804 = vadd.f32 %v116, %v803
  %v805 = vpop.f32.mrb[0].mxu0
  %806 = vmatprep.mubr.bf16.mxu0 %v371
  %807 = vmatmul.mubr.bf16.gmra.mrb[0].mxu0 %v370
  %v808 = vpop.f32.mrb[0].mxu0
  %v809 = vadd.f32 %v116, %v808
  %v810 = vpop.f32.mrb[0].mxu0
  %v811 = vpop.f32.mrb[0].mxu0
  %v812 = vadd.f32 %v116, %v811
  %v813 = vpop.f32.mrb[0].mxu0
  %814 = vmatprep.mubr.bf16.mxu0 %v373
  %815 = vmatmul.mubr.bf16.gmra.mrb[0].mxu0 %v372
  %v816 = vpop.f32.mrb[0].mxu0
  %v817 = vadd.f32 %v116, %v816
  %v818 = vpop.f32.mrb[0].mxu0
  %v819 = vpop.f32.mrb[0].mxu0
  %v820 = vadd.f32 %v116, %v819
  %v821 = vpop.f32.mrb[0].mxu0
  %822 = vdwg.mxu0
  %v823 = vtanh.pop %v569
  %v824 = vtanh.pop %v572
  %v825 = vtanh.pop %v577
  %v826 = vtanh.pop %v580
  %v827 = vtanh.pop %v585
  %v828 = vtanh.pop %v588
  %v829 = vtanh.pop %v593
  %v830 = vtanh.pop %v596
  %v831 = vtanh.pop %v601
  %v832 = vtanh.pop %v604
  %v833 = vtanh.pop %v609
  %v834 = vtanh.pop %v612
  %v835 = vtanh.pop %v617
  %v836 = vtanh.pop %v620
  %v837 = vtanh.pop %v625
  %v838 = vtanh.pop %v628
  %v839 = vtanh.pop %v633
  %v840 = vtanh.pop %v636
  %v841 = vtanh.pop %v641
  %v842 = vtanh.pop %v644
  %v843 = vtanh.pop %v649
  %v844 = vtanh.pop %v652
  %v845 = vtanh.pop %v657
  %v846 = vtanh.pop %v660
  %v847 = vtanh.pop %v665
  %v848 = vtanh.pop %v668
  %v849 = vtanh.pop %v673
  %v850 = vtanh.pop %v676
  %v851 = vtanh.pop %v681
  %v852 = vtanh.pop %v684
  %v853 = vtanh.pop %v689
  %v854 = vtanh.pop %v692
  %v855 = vtanh.pop %v697
  %v856 = vtanh.pop %v700
  %v857 = vtanh.pop %v705
  %v858 = vtanh.pop %v708
  %v859 = vtanh.pop %v713
  %v860 = vtanh.pop %v716
  %v861 = vtanh.pop %v721
  %v862 = vtanh.pop %v724
  %v863 = vtanh.pop %v729
  %v864 = vtanh.pop %v732
  %v865 = vtanh.pop %v737
  %v866 = vtanh.pop %v740
  %v867 = vtanh.pop %v745
  %v868 = vtanh.pop %v748
  %v869 = vtanh.pop %v753
  %v870 = vtanh.pop %v756
  %v871 = vtanh.pop %v761
  %v872 = vtanh.pop %v764
  %v873 = vtanh.pop %v769
  %v874 = vtanh.pop %v772
  %v875 = vtanh.pop %v777
  %v876 = vtanh.pop %v780
  %v877 = vtanh.pop %v785
  %v878 = vtanh.pop %v788
  %v879 = vtanh.pop %v793
  %v880 = vtanh.pop %v796
  %v881 = vtanh.pop %v801
  %v882 = vtanh.pop %v804
  %v883 = vtanh.pop %v809
  %v884 = vtanh.pop %v812
  %v885 = vtanh.pop %v817
  %v886 = vtanh.pop %v820
  %887 = vst [vmem:[%s3] sm:$0xff] %v823
  %888 = vst [vmem:[%s3 + $0x8] sm:$0xff] %v824
  %889 = vst [vmem:[%s3 + $0x10] sm:$0xff] %v825
  %890 = vst [vmem:[%s3 + $0x18] sm:$0xff] %v826
  %891 = vst [vmem:[%s3 + $0x20] sm:$0xff] %v827
  %892 = vst [vmem:[%s3 + $0x28] sm:$0xff] %v828
  %893 = vst [vmem:[%s3 + $0x30] sm:$0xff] %v829
  %894 = vst [vmem:[%s3 + $0x38] sm:$0xff] %v830
  %895 = vst [vmem:[%s3 + $0x40] sm:$0xff] %v831
  %896 = vst [vmem:[%s3 + $0x48] sm:$0xff] %v832
  %897 = vst [vmem:[%s3 + $0x50] sm:$0xff] %v833
  %898 = vst [vmem:[%s3 + $0x58] sm:$0xff] %v834
  %899 = vst [vmem:[%s3 + $0x60] sm:$0xff] %v835
  %900 = vst [vmem:[%s3 + $0x68] sm:$0xff] %v836
  %901 = vst [vmem:[%s3 + $0x70] sm:$0xff] %v837
  %902 = vst [vmem:[%s3 + $0x78] sm:$0xff] %v838
  %903 = vst [vmem:[%s3 + $0x80] sm:$0xff] %v839
  %904 = vst [vmem:[%s3 + $0x88] sm:$0xff] %v840
  %905 = vst [vmem:[%s3 + $0x90] sm:$0xff] %v841
  %906 = vst [vmem:[%s3 + $0x98] sm:$0xff] %v842
  %907 = vst [vmem:[%s3 + $0xa0] sm:$0xff] %v843
  %908 = vst [vmem:[%s3 + $0xa8] sm:$0xff] %v844
  %909 = vst [vmem:[%s3 + $0xb0] sm:$0xff] %v845
  %910 = vst [vmem:[%s3 + $0xb8] sm:$0xff] %v846
  %911 = vst [vmem:[%s3 + $0xc0] sm:$0xff] %v847
  %912 = vst [vmem:[%s3 + $0xc8] sm:$0xff] %v848
  %913 = vst [vmem:[%s3 + $0xd0] sm:$0xff] %v849
  %914 = vst [vmem:[%s3 + $0xd8] sm:$0xff] %v850
  %915 = vst [vmem:[%s3 + $0xe0] sm:$0xff] %v851
  %916 = vst [vmem:[%s3 + $0xe8] sm:$0xff] %v852
  %917 = vst [vmem:[%s3 + $0xf0] sm:$0xff] %v853
  %918 = vst [vmem:[%s3 + $0xf8] sm:$0xff] %v854
  %919 = vst [vmem:[%s3 + $0x100] sm:$0xff] %v855
  %920 = vst [vmem:[%s3 + $0x108] sm:$0xff] %v856
  %921 = vst [vmem:[%s3 + $0x110] sm:$0xff] %v857
  %922 = vst [vmem:[%s3 + $0x118] sm:$0xff] %v858
  %923 = vst [vmem:[%s3 + $0x120] sm:$0xff] %v859
  %924 = vst [vmem:[%s3 + $0x128] sm:$0xff] %v860
  %925 = vst [vmem:[%s3 + $0x130] sm:$0xff] %v861
  %926 = vst [vmem:[%s3 + $0x138] sm:$0xff] %v862
  %927 = vst [vmem:[%s3 + $0x140] sm:$0xff] %v863
  %928 = vst [vmem:[%s3 + $0x148] sm:$0xff] %v864
  %929 = vst [vmem:[%s3 + $0x150] sm:$0xff] %v865
  %930 = vst [vmem:[%s3 + $0x158] sm:$0xff] %v866
  %931 = vst [vmem:[%s3 + $0x160] sm:$0xff] %v867
  %932 = vst [vmem:[%s3 + $0x168] sm:$0xff] %v868
  %933 = vst [vmem:[%s3 + $0x170] sm:$0xff] %v869
  %934 = vst [vmem:[%s3 + $0x178] sm:$0xff] %v870
  %935 = vst [vmem:[%s3 + $0x180] sm:$0xff] %v871
  %936 = vst [vmem:[%s3 + $0x188] sm:$0xff] %v872
  %937 = vst [vmem:[%s3 + $0x190] sm:$0xff] %v873
  %938 = vst [vmem:[%s3 + $0x198] sm:$0xff] %v874
  %939 = vst [vmem:[%s3 + $0x1a0] sm:$0xff] %v875
  %940 = vst [vmem:[%s3 + $0x1a8] sm:$0xff] %v876
  %941 = vst [vmem:[%s3 + $0x1b0] sm:$0xff] %v877
  %942 = vst [vmem:[%s3 + $0x1b8] sm:$0xff] %v878
  %943 = vst [vmem:[%s3 + $0x1c0] sm:$0xff] %v879
  %944 = vst [vmem:[%s3 + $0x1c8] sm:$0xff] %v880
  %945 = vst [vmem:[%s3 + $0x1d0] sm:$0xff] %v881
  %946 = vst [vmem:[%s3 + $0x1d8] sm:$0xff] %v882
  %947 = vst [vmem:[%s3 + $0x1e0] sm:$0xff] %v883
  %948 = vst [vmem:[%s3 + $0x1e8] sm:$0xff] %v884
  %949 = vst [vmem:[%s3 + $0x1f0] sm:$0xff] %v885
  %950 = vst [vmem:[%s3 + $0x1f8] sm:$0xff] %v886
  // Predicated region
  $region14: #{_lambda_.13} parent=0 // pred_check
    _
  $region15: #{_lambda_.13} parent=0 // pred_check_branch
    %952 = sbr.rel (0) target = $region17
  $region16: #{_lambda_.13} parent=0 // pred_region
    _
  $region17: #{_lambda_.13} parent=0 // pred_fallthru
    _
  // Predicated region
  $region18: #{_lambda_.13} parent=0 // pred_check
    _
  $region19: #{_lambda_.13} parent=0 // pred_check_branch
    %954 = sbr.rel (0) target = $region21
  $region20: #{_lambda_.13} parent=0 // pred_region
    _
  $region21: #{_lambda_.13} parent=0 // pred_fallthru
    _

</llo_original>
